<compile_context>
chip_gen: v5e
topology: v5e:2x2
jax: 0.10.0
libtpu: 0.0.40
codegen_flags: <defaults>
</compile_context>

<pallas_src>
import functools

import jax
import jax.numpy as jnp
from jax.experimental import pallas as pl
from jax.experimental.pallas import tpu as pltpu


_VMEM_LIMIT = 48 * 1024 * 1024  # below v7x's 64 MiB physical VMEM


def _round_up(x, m):
    return ((x + m - 1) // m) * m


# --------------------------- Pallas kernels ---------------------------------

def _matmul_bias_kernel(a_ref, w_ref, b_ref, o_ref, acc_ref, *, relu):
    """One (i, j, k) grid step of out = (relu?)(A @ W + bias)."""
    @pl.when(pl.program_id(2) == 0)
    def _():
        acc_ref[...] = jnp.zeros_like(acc_ref)

    acc_ref[...] += jnp.dot(a_ref[...], w_ref[...],
                            preferred_element_type=jnp.float32)

    @pl.when(pl.program_id(2) == pl.num_programs(2) - 1)
    def _():
        out = acc_ref[...] + b_ref[...]          # bias added once, at finalize
        if relu:
            out = jnp.maximum(out, 0.0)
        o_ref[...] = out.astype(o_ref.dtype)


def pallas_matmul_bias(a, w, bias, relu=False, out_dtype=jnp.float32):
    """out = (relu?)(a @ w + bias); a:(M,K), w:(K,N), bias:(N,).

    M/N/K tiled, bf16 MXU inputs, f32 accumulation in VMEM scratch,
    lane-dense (128-multiple) padded N, sliced back before returning."""
    M, K = a.shape
    K2, N = w.shape
    assert K == K2

    # N (lane) padding: keep output stores lane-dense.
    N_pad = _round_up(N, 128)
    tile_n = N_pad if N_pad <= 512 else 512
    N_pad = _round_up(N_pad, tile_n)

    tile_m = min(512, _round_up(M, 128))
    # v7x has 2 TensorCores: prefer >= 2 parallel grid steps when M allows.
    if (_round_up(M, tile_m) // tile_m) * (N_pad // tile_n) < 2 and tile_m > 128:
        tile_m //= 2
    M_pad = _round_up(M, tile_m)

    if K <= 1024:
        tile_k, K_pad = K, K
    else:
        tile_k = 512
        K_pad = _round_up(K, tile_k)

    a = a.astype(jnp.bfloat16)
    w = w.astype(jnp.bfloat16)
    if (M_pad, K_pad) != (M, K):
        a = jnp.pad(a, ((0, M_pad - M), (0, K_pad - K)))
    if (K_pad, N_pad) != (K, N):
        w = jnp.pad(w, ((0, K_pad - K), (0, N_pad - N)))
    bias = jnp.pad(bias.astype(jnp.float32), (0, N_pad - N)).reshape(1, N_pad)

    grid = (M_pad // tile_m, N_pad // tile_n, K_pad // tile_k)
    out = pl.pallas_call(
        functools.partial(_matmul_bias_kernel, relu=relu),
        out_shape=jax.ShapeDtypeStruct((M_pad, N_pad), out_dtype),
        grid=grid,
        in_specs=[
            pl.BlockSpec((tile_m, tile_k), lambda i, j, k: (i, k)),
            pl.BlockSpec((tile_k, tile_n), lambda i, j, k: (k, j)),
            pl.BlockSpec((1, tile_n), lambda i, j, k: (0, j)),
        ],
        out_specs=pl.BlockSpec((tile_m, tile_n), lambda i, j, k: (i, j)),
        scratch_shapes=[pltpu.VMEM((tile_m, tile_n), jnp.float32)],
        compiler_params=pltpu.CompilerParams(
            dimension_semantics=("parallel", "parallel", "arbitrary"),
            vmem_limit_bytes=_VMEM_LIMIT),
    )(a, w, bias)
    return out[:M, :N]


def _gumbel_codebook_kernel(logits_ref, g_ref, cb_ref, o_ref, *, inv_tau):
    """softmax((logits + g)/tau) @ codebook, fused; softmax never hits HBM."""
    x = (logits_ref[...].astype(jnp.float32) + g_ref[...]) * inv_tau
    x = x - jnp.max(x, axis=-1, keepdims=True)
    e = jnp.exp(x)                                   # f32 on the EUP
    denom = jnp.sum(e, axis=-1, keepdims=True)
    num = jnp.dot(e.astype(cb_ref.dtype), cb_ref[...],
                  preferred_element_type=jnp.float32)
    o_ref[...] = (num * pl.reciprocal(denom, approx=True)).astype(o_ref.dtype)


def pallas_gumbel_softmax_codebook(logits2d, gumbel2d, codebook, tau,
                                   out_dtype=jnp.float32):
    """rows of soft gumbel-softmax(logits) times codebook, in one kernel."""
    M, Nt = logits2d.shape
    Nt2, D = codebook.shape
    assert Nt == Nt2
    D_pad = _round_up(D, 128)
    cb = codebook.astype(jnp.bfloat16)
    if D_pad != D:
        cb = jnp.pad(cb, ((0, 0), (0, D_pad - D)))

    tile_m = 512
    while tile_m > 128 and tile_m * Nt * 4 > (4 << 20):   # keep blocks modest
        tile_m //= 2
    tile_m = min(tile_m, _round_up(M, 128))
    M_pad = _round_up(M, tile_m)

    logits2d = logits2d.astype(jnp.float32)
    gumbel2d = gumbel2d.astype(jnp.float32)
    if M_pad != M:
        logits2d = jnp.pad(logits2d, ((0, M_pad - M), (0, 0)))
        gumbel2d = jnp.pad(gumbel2d, ((0, M_pad - M), (0, 0)))

    out = pl.pallas_call(
        functools.partial(_gumbel_codebook_kernel, inv_tau=float(1.0 / tau)),
        out_shape=jax.ShapeDtypeStruct((M_pad, D_pad), out_dtype),
        grid=(M_pad // tile_m,),
        in_specs=[
            pl.BlockSpec((tile_m, Nt), lambda i: (i, 0)),
            pl.BlockSpec((tile_m, Nt), lambda i: (i, 0)),
            pl.BlockSpec((Nt, D_pad), lambda i: (0, 0)),   # resident codebook
        ],
        out_specs=pl.BlockSpec((tile_m, D_pad), lambda i: (i, 0)),
        compiler_params=pltpu.CompilerParams(
            dimension_semantics=("parallel",),
            vmem_limit_bytes=_VMEM_LIMIT),
    )(logits2d, gumbel2d, cb)
    return out[:M, :D]


# ------------------------------ JAX glue -------------------------------------

def _im2col_k2(x):
    """k=2, s=1, p=0 patch extraction; K ordering = (jy, jx, channel)."""
    B, H, W, C = x.shape
    Ho, Wo = H - 1, W - 1
    p00 = x[:, :Ho, :Wo, :]
    p01 = x[:, :Ho, 1:, :]
    p10 = x[:, 1:, :Wo, :]
    p11 = x[:, 1:, 1:, :]
    patches = jnp.stack([p00, p01, p10, p11], axis=3)    # (B,Ho,Wo,4,C)
    return patches.reshape(B * Ho * Wo, 4 * C), (B, Ho, Wo)


def conv2d_k4s2p1(x, w_oikk, bias, *, relu, out_dtype):
    """PyTorch Conv2d(Cin,Cout,4,stride=2,padding=1) on NHWC input.

    Space-to-depth of the padded input turns it into a k=2,s=1 conv with
    4*Cin channels, so the materialized patch matrix is only 4x (not 16x)
    the activation."""
    Cout, Cin, KH, KW = w_oikk.shape
    assert (KH, KW) == (4, 4)
    B, H, W, C = x.shape
    assert C == Cin and H % 2 == 0 and W % 2 == 0
    xp = jnp.pad(x, ((0, 0), (1, 1), (1, 1), (0, 0)))           # (B,H+2,W+2,C)
    Hp, Wp = H + 2, W + 2
    # xs[b, r, c, (py*2+px)*Cin + ci] = xp[b, 2r+py, 2c+px, ci]
    xs = xp.reshape(B, Hp // 2, 2, Wp // 2, 2, C)
    xs = xs.transpose(0, 1, 3, 2, 4, 5).reshape(B, Hp // 2, Wp // 2, 4 * C)
    # weight reorder: rows must be (jy, jx, py, px, ci) with ky=2jy+py, kx=2jx+px
    w6 = w_oikk.reshape(Cout, Cin, 2, 2, 2, 2)                  # (co,ci,jy,py,jx,px)
    w2d = w6.transpose(2, 4, 3, 5, 1, 0).reshape(16 * Cin, Cout)
    a, (B2, Ho, Wo) = _im2col_k2(xs)                            # Ho=H//2, Wo=W//2
    out = pallas_matmul_bias(a, w2d, bias, relu=relu, out_dtype=out_dtype)
    return out.reshape(B2, Ho, Wo, Cout)


# phase (r) -> which original ky/kx taps feed k=2 tap j=0, j=1
_DECONV_TAP_MAP = ((3, 1), (2, 0))


def conv_transpose2d_k4s2p1(x, w_iokk, bias, *, relu, out_dtype):
    """PyTorch ConvTranspose2d(Cin,Cout,4,stride=2,padding=1), NHWC input.

    Sub-pixel (phase-split) formulation: each of the 4 output phases
    (oy%2, ox%2) is a k=2,s=1 conv over the once-padded input with a 2x2
    subset of the transposed-conv taps; results are interleaved."""
    Cin, Cout, KH, KW = w_iokk.shape
    assert (KH, KW) == (4, 4)
    B, H, W, C = x.shape
    assert C == Cin
    xp = jnp.pad(x, ((0, 0), (1, 1), (1, 1), (0, 0)))           # (B,H+2,W+2,C)

    phase_rows = []
    for ry in range(2):
        row = []
        for rx in range(2):
            # weight for this phase: rows ordered (jy, jx, ci) -> co
            wp = jnp.stack(
                [jnp.stack([w_iokk[:, :, _DECONV_TAP_MAP[ry][jy],
                                    _DECONV_TAP_MAP[rx][jx]]
                            for jx in range(2)], axis=0)
                 for jy in range(2)], axis=0)                   # (2,2,Cin,Cout)
            wp2d = wp.reshape(4 * Cin, Cout)
            xph = xp[:, ry:ry + H + 1, rx:rx + W + 1, :]        # (B,H+1,W+1,C)
            a, (B2, Ho, Wo) = _im2col_k2(xph)                   # Ho=H, Wo=W
            out = pallas_matmul_bias(a, wp2d, bias, relu=relu,
                                     out_dtype=out_dtype)
            row.append(out.reshape(B, H, W, Cout))
        phase_rows.append(row)

    # interleave: out[b, 2q+ry, 2r+rx, :] = phase[ry][rx][b, q, r, :]
    stacked = jnp.stack([jnp.stack(r, axis=0) for r in phase_rows], axis=0)
    out = stacked.transpose(2, 3, 0, 4, 1, 5).reshape(B, 2 * H, 2 * W, Cout)
    return out


def conv2d_1x1(x, w_oikk, bias, *, relu, out_dtype):
    Cout, Cin, _, _ = w_oikk.shape
    B, H, W, C = x.shape
    assert C == Cin
    w2d = w_oikk[:, :, 0, 0].T                                  # (Cin, Cout)
    out = pallas_matmul_bias(x.reshape(B * H * W, C), w2d, bias, relu=relu,
                             out_dtype=out_dtype)
    return out.reshape(B, H, W, Cout)


# --------------------------- model parameters --------------------------------

def _winit(key, shape, scale=0.05):
    return scale * jax.random.normal(key, shape, jnp.float32)


def init_discrete_vae_params(key, *, num_tokens, codebook_dim, num_layers,
                             hidden_dim, channels):
    keys = iter(jax.random.split(key, 64))
    enc_chans = [channels] + [hidden_dim] * num_layers
    dec_chans = [codebook_dim] + [hidden_dim] * num_layers   # no resnet blocks
    params = {"enc": [], "dec": []}
    for cin, cout in zip(enc_chans[:-1], enc_chans[1:]):
        params["enc"].append({"w": _winit(next(keys), (cout, cin, 4, 4)),
                              "b": _winit(next(keys), (cout,))})
    params["enc_head"] = {"w": _winit(next(keys), (num_tokens, enc_chans[-1], 1, 1)),
                          "b": _winit(next(keys), (num_tokens,))}
    for cin, cout in zip(dec_chans[:-1], dec_chans[1:]):
        # ConvTranspose2d weight layout: (C_in, C_out, KH, KW)
        params["dec"].append({"w": _winit(next(keys), (cin, cout, 4, 4)),
                              "b": _winit(next(keys), (cout,))})
    params["dec_head"] = {"w": _winit(next(keys), (channels, dec_chans[-1], 1, 1)),
                          "b": _winit(next(keys), (channels,))}
    params["codebook"] = _winit(next(keys), (num_tokens, codebook_dim), scale=1.0)
    return params


# ------------------------------ forward pass ---------------------------------

def discrete_vae_forward(params, img_nchw, gumbel_key, *, temperature=0.9,
                         channels=3):
    B, C, H, W = img_nchw.shape
    x = jnp.transpose(img_nchw, (0, 2, 3, 1)).astype(jnp.float32)   # NHWC

    # self.norm(img): (img - 0.5) / 0.5 per channel, folded into the first
    # encoder conv:  w' = w/std,  b' = b - sum_ci,ky,kx w * mean/std.
    means = jnp.full((channels,), 0.5, jnp.float32)
    stds = jnp.full((channels,), 0.5, jnp.float32)
    enc0 = params["enc"][0]
    w0 = enc0["w"] / stds[None, :, None, None]
    b0 = enc0["b"] - jnp.sum(enc0["w"] * (means / stds)[None, :, None, None],
                             axis=(1, 2, 3))

    # encoder: [Conv2d(k4,s2,p1)+ReLU] * num_layers, then 1x1 conv -> logits
    x = conv2d_k4s2p1(x, w0, b0, relu=True, out_dtype=jnp.bfloat16)
    for layer in params["enc"][1:]:
        x = conv2d_k4s2p1(x, layer["w"], layer["b"], relu=True,
                          out_dtype=jnp.bfloat16)
    logits = conv2d_1x1(x, params["enc_head"]["w"], params["enc_head"]["b"],
                        relu=False, out_dtype=jnp.float32)
    Bf, Hf, Wf, Nt = logits.shape

    # F.gumbel_softmax(logits, tau, dim=1, hard=False) over the token axis,
    # fused with einsum('b n h w, n d -> b d h w', soft_one_hot, codebook).
    logits2d = logits.reshape(Bf * Hf * Wf, Nt)
    g = jax.random.gumbel(gumbel_key, logits2d.shape, jnp.float32)
    sampled = pallas_gumbel_softmax_codebook(logits2d, g, params["codebook"],
                                             temperature,
                                             out_dtype=jnp.bfloat16)
    x = sampled.reshape(Bf, Hf, Wf, params["codebook"].shape[1])

    # decoder: [ConvTranspose2d(k4,s2,p1)+ReLU] * num_layers, then 1x1 conv
    for layer in params["dec"]:
        x = conv_transpose2d_k4s2p1(x, layer["w"], layer["b"], relu=True,
                                    out_dtype=jnp.bfloat16)
    x = conv2d_1x1(x, params["dec_head"]["w"], params["dec_head"]["b"],
                   relu=False, out_dtype=jnp.float32)

    # TODO(synk): return_loss / kl_div branch not implemented (default forward
    # returns only the reconstruction).
    return jnp.transpose(x, (0, 3, 1, 2))                            # NCHW out


# --------------------------------- main ---------------------------------------

if __name__ == "__main__":
    # small config consistent with the module: image_size=16 (power of 2),
    # num_tokens=64, codebook_dim=32, num_layers=2, hidden_dim=16, channels=3
    B, C, IMG = 2, 3, 16
    NUM_TOKENS, CODEBOOK_DIM, NUM_LAYERS, HIDDEN = 64, 32, 2, 16

    key = jax.random.PRNGKey(0)
    k_img, k_param, k_gumbel = jax.random.split(key, 3)

    img = jax.random.uniform(k_img, (B, C, IMG, IMG), jnp.float32)
    params = init_discrete_vae_params(
        k_param, num_tokens=NUM_TOKENS, codebook_dim=CODEBOOK_DIM,
        num_layers=NUM_LAYERS, hidden_dim=HIDDEN, channels=C)

    fwd = jax.jit(functools.partial(discrete_vae_forward, temperature=0.9,
                                    channels=C))
    out = fwd(params, img, k_gumbel)
    out = jax.block_until_ready(out)

    assert out.shape == (B, C, IMG, IMG), out.shape
    assert bool(jnp.all(jnp.isfinite(out)))
    print("KERNEL_OK")
</pallas_src>

<mosaic_0001>
module attributes {stable_mosaic.version = 11 : i64} {
  func.func @_matmul_bias_kernel(%arg0: i32, %arg1: i32, %arg2: i32, %arg3: memref<128x48xbf16, #tpu.memory_space<vmem>>, %arg4: memref<48x128xbf16, #tpu.memory_space<vmem>>, %arg5: memref<1x128xf32, #tpu.memory_space<vmem>>, %arg6: memref<128x128xbf16, #tpu.memory_space<vmem>>, %arg7: memref<128x128xf32, #tpu.memory_space<vmem>>) attributes {dimension_semantics = [#tpu.dimension_semantics<parallel>, #tpu.dimension_semantics<parallel>, #tpu.dimension_semantics<arbitrary>], iteration_bounds = array<i64: 1, 1, 1>, scalar_prefetch = 0 : i64, scratch_operands = 1 : i64, tpu.core_type = #tpu.core_type<tc>, window_params = [{transform_indices = @transform_0, window_bounds = array<i64: 128, 48>}, {transform_indices = @transform_1, window_bounds = array<i64: 48, 128>}, {transform_indices = @transform_2, window_bounds = array<i64: 1, 128>}, {transform_indices = @transform_3, window_bounds = array<i64: 128, 128>}]} {
    %c0_i32 = arith.constant 0 : i32
    %0 = arith.cmpi eq, %arg2, %c0_i32 : i32
    %1 = arith.extui %0 : i1 to i32
    %c0_i32_0 = arith.constant 0 : i32
    %2 = arith.cmpi ne, %1, %c0_i32_0 : i32
    scf.if %2 {
      %cst_10 = arith.constant 0.000000e+00 : f32
      %12 = vector.broadcast %cst_10 : f32 to vector<128x128xf32>
      %c0_11 = arith.constant 0 : index
      %c0_12 = arith.constant 0 : index
      %13 = vector.load %arg7[%c0_11, %c0_12] : memref<128x128xf32, #tpu.memory_space<vmem>>, vector<128x128xf32>
      tpu.vector_store %arg7[%c0_11, %c0_12], %12 {strides = array<i32>} : memref<128x128xf32, #tpu.memory_space<vmem>>, vector<128x128xf32>,
    } else {
    }
    %c0 = arith.constant 0 : index
    %c0_1 = arith.constant 0 : index
    %3 = vector.load %arg7[%c0, %c0_1] : memref<128x128xf32, #tpu.memory_space<vmem>>, vector<128x128xf32>
    %c0_2 = arith.constant 0 : index
    %c0_3 = arith.constant 0 : index
    %4 = vector.load %arg3[%c0_2, %c0_3] : memref<128x48xbf16, #tpu.memory_space<vmem>>, vector<128x48xbf16>
    %c0_4 = arith.constant 0 : index
    %c0_5 = arith.constant 0 : index
    %5 = vector.load %arg4[%c0_4, %c0_5] : memref<48x128xbf16, #tpu.memory_space<vmem>>, vector<48x128xbf16>
    %cst = arith.constant dense<0.000000e+00> : vector<128x128xf32>
    %6 = tpu.matmul %4, %5, %cst {dimension_numbers = #tpu.dot_dimension_numbers<[1], [0], [0], [1], [0, 0, 1, 1], [], []>} : vector<128x48xbf16>, vector<48x128xbf16>, vector<128x128xf32> -> vector<128x128xf32>
    %7 = arith.addf %3, %6 : vector<128x128xf32>
    %c0_6 = arith.constant 0 : index
    %c0_7 = arith.constant 0 : index
    %8 = vector.load %arg7[%c0_6, %c0_7] : memref<128x128xf32, #tpu.memory_space<vmem>>, vector<128x128xf32>
    tpu.vector_store %arg7[%c0_6, %c0_7], %7 {strides = array<i32>} : memref<128x128xf32, #tpu.memory_space<vmem>>, vector<128x128xf32>,
    %c0_i32_8 = arith.constant 0 : i32
    %9 = arith.cmpi eq, %arg2, %c0_i32_8 : i32
    %10 = arith.extui %9 : i1 to i32
    %c0_i32_9 = arith.constant 0 : i32
    %11 = arith.cmpi ne, %10, %c0_i32_9 : i32
    scf.if %11 {
      %c0_10 = arith.constant 0 : index
      %c0_11 = arith.constant 0 : index
      %12 = vector.load %arg7[%c0_10, %c0_11] : memref<128x128xf32, #tpu.memory_space<vmem>>, vector<128x128xf32>
      %c0_12 = arith.constant 0 : index
      %c0_13 = arith.constant 0 : index
      %13 = vector.load %arg5[%c0_12, %c0_13] : memref<1x128xf32, #tpu.memory_space<vmem>>, vector<1x128xf32>
      %14 = vector.broadcast %13 : vector<1x128xf32> to vector<128x128xf32>
      %15 = arith.addf %12, %14 : vector<128x128xf32>
      %cst_14 = arith.constant 0.000000e+00 : f32
      %16 = vector.broadcast %cst_14 : f32 to vector<128x128xf32>
      %17 = arith.maximumf %15, %16 : vector<128x128xf32>
      %18 = arith.truncf %17 : vector<128x128xf32> to vector<128x128xbf16>
      %c0_15 = arith.constant 0 : index
      %c0_16 = arith.constant 0 : index
      %19 = vector.load %arg6[%c0_15, %c0_16] : memref<128x128xbf16, #tpu.memory_space<vmem>>, vector<128x128xbf16>
      tpu.vector_store %arg6[%c0_15, %c0_16], %18 {strides = array<i32>} : memref<128x128xbf16, #tpu.memory_space<vmem>>, vector<128x128xbf16>,
    } else {
    }
    return
  }
  func.func @transform_0(%arg0: i32, %arg1: i32, %arg2: i32) -> (i32, i32) {
    %c0_i32 = arith.constant 0 : i32
    return %arg0, %arg2 : i32, i32
  }
  func.func @transform_1(%arg0: i32, %arg1: i32, %arg2: i32) -> (i32, i32) {
    %c0_i32 = arith.constant 0 : i32
    return %arg2, %arg1 : i32, i32
  }
  func.func @transform_2(%arg0: i32, %arg1: i32, %arg2: i32) -> (i32, i32) {
    %c0_i32 = arith.constant 0 : i32
    %c0_i32_0 = arith.constant 0 : i32
    return %c0_i32, %arg1 : i32, i32
  }
  func.func @transform_3(%arg0: i32, %arg1: i32, %arg2: i32) -> (i32, i32) {
    %c0_i32 = arith.constant 0 : i32
    return %arg0, %arg1 : i32, i32
  }
}

module attributes {stable_mosaic.version = 11 : i64} {
  func.func @_matmul_bias_kernel(%arg0: i32, %arg1: i32, %arg2: i32, %arg3: memref<128x256xbf16, #tpu.memory_space<vmem>>, %arg4: memref<256x128xbf16, #tpu.memory_space<vmem>>, %arg5: memref<1x128xf32, #tpu.memory_space<vmem>>, %arg6: memref<128x128xbf16, #tpu.memory_space<vmem>>, %arg7: memref<128x128xf32, #tpu.memory_space<vmem>>) attributes {dimension_semantics = [#tpu.dimension_semantics<parallel>, #tpu.dimension_semantics<parallel>, #tpu.dimension_semantics<arbitrary>], iteration_bounds = array<i64: 1, 1, 1>, scalar_prefetch = 0 : i64, scratch_operands = 1 : i64, tpu.core_type = #tpu.core_type<tc>, window_params = [{transform_indices = @transform_0, window_bounds = array<i64: 128, 256>}, {transform_indices = @transform_1, window_bounds = array<i64: 256, 128>}, {transform_indices = @transform_2, window_bounds = array<i64: 1, 128>}, {transform_indices = @transform_3, window_bounds = array<i64: 128, 128>}]} {
    %c0_i32 = arith.constant 0 : i32
    %0 = arith.cmpi eq, %arg2, %c0_i32 : i32
    %1 = arith.extui %0 : i1 to i32
    %c0_i32_0 = arith.constant 0 : i32
    %2 = arith.cmpi ne, %1, %c0_i32_0 : i32
    scf.if %2 {
      %cst_10 = arith.constant 0.000000e+00 : f32
      %12 = vector.broadcast %cst_10 : f32 to vector<128x128xf32>
      %c0_11 = arith.constant 0 : index
      %c0_12 = arith.constant 0 : index
      %13 = vector.load %arg7[%c0_11, %c0_12] : memref<128x128xf32, #tpu.memory_space<vmem>>, vector<128x128xf32>
      tpu.vector_store %arg7[%c0_11, %c0_12], %12 {strides = array<i32>} : memref<128x128xf32, #tpu.memory_space<vmem>>, vector<128x128xf32>,
    } else {
    }
    %c0 = arith.constant 0 : index
    %c0_1 = arith.constant 0 : index
    %3 = vector.load %arg7[%c0, %c0_1] : memref<128x128xf32, #tpu.memory_space<vmem>>, vector<128x128xf32>
    %c0_2 = arith.constant 0 : index
    %c0_3 = arith.constant 0 : index
    %4 = vector.load %arg3[%c0_2, %c0_3] : memref<128x256xbf16, #tpu.memory_space<vmem>>, vector<128x256xbf16>
    %c0_4 = arith.constant 0 : index
    %c0_5 = arith.constant 0 : index
    %5 = vector.load %arg4[%c0_4, %c0_5] : memref<256x128xbf16, #tpu.memory_space<vmem>>, vector<256x128xbf16>
    %cst = arith.constant dense<0.000000e+00> : vector<128x128xf32>
    %6 = tpu.matmul %4, %5, %cst {dimension_numbers = #tpu.dot_dimension_numbers<[1], [0], [0], [1], [0, 0, 1, 1], [], []>} : vector<128x256xbf16>, vector<256x128xbf16>, vector<128x128xf32> -> vector<128x128xf32>
    %7 = arith.addf %3, %6 : vector<128x128xf32>
    %c0_6 = arith.constant 0 : index
    %c0_7 = arith.constant 0 : index
    %8 = vector.load %arg7[%c0_6, %c0_7] : memref<128x128xf32, #tpu.memory_space<vmem>>, vector<128x128xf32>
    tpu.vector_store %arg7[%c0_6, %c0_7], %7 {strides = array<i32>} : memref<128x128xf32, #tpu.memory_space<vmem>>, vector<128x128xf32>,
    %c0_i32_8 = arith.constant 0 : i32
    %9 = arith.cmpi eq, %arg2, %c0_i32_8 : i32
    %10 = arith.extui %9 : i1 to i32
    %c0_i32_9 = arith.constant 0 : i32
    %11 = arith.cmpi ne, %10, %c0_i32_9 : i32
    scf.if %11 {
      %c0_10 = arith.constant 0 : index
      %c0_11 = arith.constant 0 : index
      %12 = vector.load %arg7[%c0_10, %c0_11] : memref<128x128xf32, #tpu.memory_space<vmem>>, vector<128x128xf32>
      %c0_12 = arith.constant 0 : index
      %c0_13 = arith.constant 0 : index
      %13 = vector.load %arg5[%c0_12, %c0_13] : memref<1x128xf32, #tpu.memory_space<vmem>>, vector<1x128xf32>
      %14 = vector.broadcast %13 : vector<1x128xf32> to vector<128x128xf32>
      %15 = arith.addf %12, %14 : vector<128x128xf32>
      %cst_14 = arith.constant 0.000000e+00 : f32
      %16 = vector.broadcast %cst_14 : f32 to vector<128x128xf32>
      %17 = arith.maximumf %15, %16 : vector<128x128xf32>
      %18 = arith.truncf %17 : vector<128x128xf32> to vector<128x128xbf16>
      %c0_15 = arith.constant 0 : index
      %c0_16 = arith.constant 0 : index
      %19 = vector.load %arg6[%c0_15, %c0_16] : memref<128x128xbf16, #tpu.memory_space<vmem>>, vector<128x128xbf16>
      tpu.vector_store %arg6[%c0_15, %c0_16], %18 {strides = array<i32>} : memref<128x128xbf16, #tpu.memory_space<vmem>>, vector<128x128xbf16>,
    } else {
    }
    return
  }
  func.func @transform_0(%arg0: i32, %arg1: i32, %arg2: i32) -> (i32, i32) {
    %c0_i32 = arith.constant 0 : i32
    return %arg0, %arg2 : i32, i32
  }
  func.func @transform_1(%arg0: i32, %arg1: i32, %arg2: i32) -> (i32, i32) {
    %c0_i32 = arith.constant 0 : i32
    return %arg2, %arg1 : i32, i32
  }
  func.func @transform_2(%arg0: i32, %arg1: i32, %arg2: i32) -> (i32, i32) {
    %c0_i32 = arith.constant 0 : i32
    %c0_i32_0 = arith.constant 0 : i32
    return %c0_i32, %arg1 : i32, i32
  }
  func.func @transform_3(%arg0: i32, %arg1: i32, %arg2: i32) -> (i32, i32) {
    %c0_i32 = arith.constant 0 : i32
    return %arg0, %arg1 : i32, i32
  }
}

module attributes {stable_mosaic.version = 11 : i64} {
  func.func @_matmul_bias_kernel(%arg0: i32, %arg1: i32, %arg2: i32, %arg3: memref<128x16xbf16, #tpu.memory_space<vmem>>, %arg4: memref<16x128xbf16, #tpu.memory_space<vmem>>, %arg5: memref<1x128xf32, #tpu.memory_space<vmem>>, %arg6: memref<128x128xf32, #tpu.memory_space<vmem>>, %arg7: memref<128x128xf32, #tpu.memory_space<vmem>>) attributes {dimension_semantics = [#tpu.dimension_semantics<parallel>, #tpu.dimension_semantics<parallel>, #tpu.dimension_semantics<arbitrary>], iteration_bounds = array<i64: 1, 1, 1>, scalar_prefetch = 0 : i64, scratch_operands = 1 : i64, tpu.core_type = #tpu.core_type<tc>, window_params = [{transform_indices = @transform_0, window_bounds = array<i64: 128, 16>}, {transform_indices = @transform_1, window_bounds = array<i64: 16, 128>}, {transform_indices = @transform_2, window_bounds = array<i64: 1, 128>}, {transform_indices = @transform_3, window_bounds = array<i64: 128, 128>}]} {
    %c0_i32 = arith.constant 0 : i32
    %0 = arith.cmpi eq, %arg2, %c0_i32 : i32
    %1 = arith.extui %0 : i1 to i32
    %c0_i32_0 = arith.constant 0 : i32
    %2 = arith.cmpi ne, %1, %c0_i32_0 : i32
    scf.if %2 {
      %cst_10 = arith.constant 0.000000e+00 : f32
      %12 = vector.broadcast %cst_10 : f32 to vector<128x128xf32>
      %c0_11 = arith.constant 0 : index
      %c0_12 = arith.constant 0 : index
      %13 = vector.load %arg7[%c0_11, %c0_12] : memref<128x128xf32, #tpu.memory_space<vmem>>, vector<128x128xf32>
      tpu.vector_store %arg7[%c0_11, %c0_12], %12 {strides = array<i32>} : memref<128x128xf32, #tpu.memory_space<vmem>>, vector<128x128xf32>,
    } else {
    }
    %c0 = arith.constant 0 : index
    %c0_1 = arith.constant 0 : index
    %3 = vector.load %arg7[%c0, %c0_1] : memref<128x128xf32, #tpu.memory_space<vmem>>, vector<128x128xf32>
    %c0_2 = arith.constant 0 : index
    %c0_3 = arith.constant 0 : index
    %4 = vector.load %arg3[%c0_2, %c0_3] : memref<128x16xbf16, #tpu.memory_space<vmem>>, vector<128x16xbf16>
    %c0_4 = arith.constant 0 : index
    %c0_5 = arith.constant 0 : index
    %5 = vector.load %arg4[%c0_4, %c0_5] : memref<16x128xbf16, #tpu.memory_space<vmem>>, vector<16x128xbf16>
    %cst = arith.constant dense<0.000000e+00> : vector<128x128xf32>
    %6 = tpu.matmul %4, %5, %cst {dimension_numbers = #tpu.dot_dimension_numbers<[1], [0], [0], [1], [0, 0, 1, 1], [], []>} : vector<128x16xbf16>, vector<16x128xbf16>, vector<128x128xf32> -> vector<128x128xf32>
    %7 = arith.addf %3, %6 : vector<128x128xf32>
    %c0_6 = arith.constant 0 : index
    %c0_7 = arith.constant 0 : index
    %8 = vector.load %arg7[%c0_6, %c0_7] : memref<128x128xf32, #tpu.memory_space<vmem>>, vector<128x128xf32>
    tpu.vector_store %arg7[%c0_6, %c0_7], %7 {strides = array<i32>} : memref<128x128xf32, #tpu.memory_space<vmem>>, vector<128x128xf32>,
    %c0_i32_8 = arith.constant 0 : i32
    %9 = arith.cmpi eq, %arg2, %c0_i32_8 : i32
    %10 = arith.extui %9 : i1 to i32
    %c0_i32_9 = arith.constant 0 : i32
    %11 = arith.cmpi ne, %10, %c0_i32_9 : i32
    scf.if %11 {
      %c0_10 = arith.constant 0 : index
      %c0_11 = arith.constant 0 : index
      %12 = vector.load %arg7[%c0_10, %c0_11] : memref<128x128xf32, #tpu.memory_space<vmem>>, vector<128x128xf32>
      %c0_12 = arith.constant 0 : index
      %c0_13 = arith.constant 0 : index
      %13 = vector.load %arg5[%c0_12, %c0_13] : memref<1x128xf32, #tpu.memory_space<vmem>>, vector<1x128xf32>
      %14 = vector.broadcast %13 : vector<1x128xf32> to vector<128x128xf32>
      %15 = arith.addf %12, %14 : vector<128x128xf32>
      %c0_14 = arith.constant 0 : index
      %c0_15 = arith.constant 0 : index
      %16 = vector.load %arg6[%c0_14, %c0_15] : memref<128x128xf32, #tpu.memory_space<vmem>>, vector<128x128xf32>
      tpu.vector_store %arg6[%c0_14, %c0_15], %15 {strides = array<i32>} : memref<128x128xf32, #tpu.memory_space<vmem>>, vector<128x128xf32>,
    } else {
    }
    return
  }
  func.func @transform_0(%arg0: i32, %arg1: i32, %arg2: i32) -> (i32, i32) {
    %c0_i32 = arith.constant 0 : i32
    return %arg0, %arg2 : i32, i32
  }
  func.func @transform_1(%arg0: i32, %arg1: i32, %arg2: i32) -> (i32, i32) {
    %c0_i32 = arith.constant 0 : i32
    return %arg2, %arg1 : i32, i32
  }
  func.func @transform_2(%arg0: i32, %arg1: i32, %arg2: i32) -> (i32, i32) {
    %c0_i32 = arith.constant 0 : i32
    %c0_i32_0 = arith.constant 0 : i32
    return %c0_i32, %arg1 : i32, i32
  }
  func.func @transform_3(%arg0: i32, %arg1: i32, %arg2: i32) -> (i32, i32) {
    %c0_i32 = arith.constant 0 : i32
    return %arg0, %arg1 : i32, i32
  }
}

module attributes {stable_mosaic.version = 11 : i64} {
  func.func @_gumbel_codebook_kernel(%arg0: i32, %arg1: memref<128x64xf32, #tpu.memory_space<vmem>>, %arg2: memref<128x64xf32, #tpu.memory_space<vmem>>, %arg3: memref<64x128xbf16, #tpu.memory_space<vmem>>, %arg4: memref<128x128xbf16, #tpu.memory_space<vmem>>) attributes {dimension_semantics = [#tpu.dimension_semantics<parallel>], iteration_bounds = array<i64: 1>, scalar_prefetch = 0 : i64, scratch_operands = 0 : i64, tpu.core_type = #tpu.core_type<tc>, window_params = [{transform_indices = @transform_0, window_bounds = array<i64: 128, 64>}, {transform_indices = @transform_1, window_bounds = array<i64: 128, 64>}, {pipeline_mode = #tpu.pipeline_mode<synchronous>, transform_indices = @transform_2, window_bounds = array<i64: 64, 128>}, {transform_indices = @transform_3, window_bounds = array<i64: 128, 128>}]} {
    %c0 = arith.constant 0 : index
    %c0_0 = arith.constant 0 : index
    %0 = vector.load %arg1[%c0, %c0_0] : memref<128x64xf32, #tpu.memory_space<vmem>>, vector<128x64xf32>
    %c0_1 = arith.constant 0 : index
    %c0_2 = arith.constant 0 : index
    %1 = vector.load %arg2[%c0_1, %c0_2] : memref<128x64xf32, #tpu.memory_space<vmem>>, vector<128x64xf32>
    %2 = arith.addf %0, %1 : vector<128x64xf32>
    %cst = arith.constant 1.11111116 : f32
    %3 = vector.broadcast %cst : f32 to vector<128x64xf32>
    %4 = arith.mulf %2, %3 : vector<128x64xf32>
    %cst_3 = arith.constant dense<0xFF800000> : vector<128xf32>
    %5 = vector.multi_reduction <maximumf>, %4, %cst_3 [1] : vector<128x64xf32> to vector<128xf32>
    %6 = vector.shape_cast %5 : vector<128xf32> to vector<128x1xf32>
    %7 = vector.broadcast %6 : vector<128x1xf32> to vector<128x64xf32>
    %8 = arith.subf %4, %7 : vector<128x64xf32>
    %9 = math.exp %8 : vector<128x64xf32>
    %cst_4 = arith.constant dense<0.000000e+00> : vector<128xf32>
    %10 = vector.multi_reduction <add>, %9, %cst_4 [1] : vector<128x64xf32> to vector<128xf32>
    %11 = vector.shape_cast %10 : vector<128xf32> to vector<128x1xf32>
    %12 = arith.truncf %9 : vector<128x64xf32> to vector<128x64xbf16>
    %c0_5 = arith.constant 0 : index
    %c0_6 = arith.constant 0 : index
    %13 = vector.load %arg3[%c0_5, %c0_6] : memref<64x128xbf16, #tpu.memory_space<vmem>>, vector<64x128xbf16>
    %cst_7 = arith.constant dense<0.000000e+00> : vector<128x128xf32>
    %14 = tpu.matmul %12, %13, %cst_7 {dimension_numbers = #tpu.dot_dimension_numbers<[1], [0], [0], [1], [0, 0, 1, 1], [], []>} : vector<128x64xbf16>, vector<64x128xbf16>, vector<128x128xf32> -> vector<128x128xf32>
    %15 = tpu.reciprocal %11 {approx = true} : vector<128x1xf32> -> vector<128x1xf32>
    %16 = vector.broadcast %15 : vector<128x1xf32> to vector<128x128xf32>
    %17 = arith.mulf %14, %16 : vector<128x128xf32>
    %18 = arith.truncf %17 : vector<128x128xf32> to vector<128x128xbf16>
    %c0_8 = arith.constant 0 : index
    %c0_9 = arith.constant 0 : index
    %19 = vector.load %arg4[%c0_8, %c0_9] : memref<128x128xbf16, #tpu.memory_space<vmem>>, vector<128x128xbf16>
    tpu.vector_store %arg4[%c0_8, %c0_9], %18 {strides = array<i32>} : memref<128x128xbf16, #tpu.memory_space<vmem>>, vector<128x128xbf16>,
    return
  }
  func.func @transform_0(%arg0: i32) -> (i32, i32) {
    %c0_i32 = arith.constant 0 : i32
    %c0_i32_0 = arith.constant 0 : i32
    return %arg0, %c0_i32 : i32, i32
  }
  func.func @transform_1(%arg0: i32) -> (i32, i32) {
    %c0_i32 = arith.constant 0 : i32
    %c0_i32_0 = arith.constant 0 : i32
    return %arg0, %c0_i32 : i32, i32
  }
  func.func @transform_2(%arg0: i32) -> (i32, i32) {
    %c0_i32 = arith.constant 0 : i32
    %c0_i32_0 = arith.constant 0 : i32
    %c0_i32_1 = arith.constant 0 : i32
    return %c0_i32, %c0_i32_0 : i32, i32
  }
  func.func @transform_3(%arg0: i32) -> (i32, i32) {
    %c0_i32 = arith.constant 0 : i32
    %c0_i32_0 = arith.constant 0 : i32
    return %arg0, %c0_i32 : i32, i32
  }
}

module attributes {stable_mosaic.version = 11 : i64} {
  func.func @_matmul_bias_kernel(%arg0: i32, %arg1: i32, %arg2: i32, %arg3: memref<128x128xbf16, #tpu.memory_space<vmem>>, %arg4: memref<128x128xbf16, #tpu.memory_space<vmem>>, %arg5: memref<1x128xf32, #tpu.memory_space<vmem>>, %arg6: memref<128x128xbf16, #tpu.memory_space<vmem>>, %arg7: memref<128x128xf32, #tpu.memory_space<vmem>>) attributes {dimension_semantics = [#tpu.dimension_semantics<parallel>, #tpu.dimension_semantics<parallel>, #tpu.dimension_semantics<arbitrary>], iteration_bounds = array<i64: 1, 1, 1>, scalar_prefetch = 0 : i64, scratch_operands = 1 : i64, tpu.core_type = #tpu.core_type<tc>, window_params = [{transform_indices = @transform_0, window_bounds = array<i64: 128, 128>}, {transform_indices = @transform_1, window_bounds = array<i64: 128, 128>}, {transform_indices = @transform_2, window_bounds = array<i64: 1, 128>}, {transform_indices = @transform_3, window_bounds = array<i64: 128, 128>}]} {
    %c0_i32 = arith.constant 0 : i32
    %0 = arith.cmpi eq, %arg2, %c0_i32 : i32
    %1 = arith.extui %0 : i1 to i32
    %c0_i32_0 = arith.constant 0 : i32
    %2 = arith.cmpi ne, %1, %c0_i32_0 : i32
    scf.if %2 {
      %cst_10 = arith.constant 0.000000e+00 : f32
      %12 = vector.broadcast %cst_10 : f32 to vector<128x128xf32>
      %c0_11 = arith.constant 0 : index
      %c0_12 = arith.constant 0 : index
      %13 = vector.load %arg7[%c0_11, %c0_12] : memref<128x128xf32, #tpu.memory_space<vmem>>, vector<128x128xf32>
      tpu.vector_store %arg7[%c0_11, %c0_12], %12 {strides = array<i32>} : memref<128x128xf32, #tpu.memory_space<vmem>>, vector<128x128xf32>,
    } else {
    }
    %c0 = arith.constant 0 : index
    %c0_1 = arith.constant 0 : index
    %3 = vector.load %arg7[%c0, %c0_1] : memref<128x128xf32, #tpu.memory_space<vmem>>, vector<128x128xf32>
    %c0_2 = arith.constant 0 : index
    %c0_3 = arith.constant 0 : index
    %4 = vector.load %arg3[%c0_2, %c0_3] : memref<128x128xbf16, #tpu.memory_space<vmem>>, vector<128x128xbf16>
    %c0_4 = arith.constant 0 : index
    %c0_5 = arith.constant 0 : index
    %5 = vector.load %arg4[%c0_4, %c0_5] : memref<128x128xbf16, #tpu.memory_space<vmem>>, vector<128x128xbf16>
    %cst = arith.constant dense<0.000000e+00> : vector<128x128xf32>
    %6 = tpu.matmul %4, %5, %cst {dimension_numbers = #tpu.dot_dimension_numbers<[1], [0], [0], [1], [0, 0, 1, 1], [], []>} : vector<128x128xbf16>, vector<128x128xbf16>, vector<128x128xf32> -> vector<128x128xf32>
    %7 = arith.addf %3, %6 : vector<128x128xf32>
    %c0_6 = arith.constant 0 : index
    %c0_7 = arith.constant 0 : index
    %8 = vector.load %arg7[%c0_6, %c0_7] : memref<128x128xf32, #tpu.memory_space<vmem>>, vector<128x128xf32>
    tpu.vector_store %arg7[%c0_6, %c0_7], %7 {strides = array<i32>} : memref<128x128xf32, #tpu.memory_space<vmem>>, vector<128x128xf32>,
    %c0_i32_8 = arith.constant 0 : i32
    %9 = arith.cmpi eq, %arg2, %c0_i32_8 : i32
    %10 = arith.extui %9 : i1 to i32
    %c0_i32_9 = arith.constant 0 : i32
    %11 = arith.cmpi ne, %10, %c0_i32_9 : i32
    scf.if %11 {
      %c0_10 = arith.constant 0 : index
      %c0_11 = arith.constant 0 : index
      %12 = vector.load %arg7[%c0_10, %c0_11] : memref<128x128xf32, #tpu.memory_space<vmem>>, vector<128x128xf32>
      %c0_12 = arith.constant 0 : index
      %c0_13 = arith.constant 0 : index
      %13 = vector.load %arg5[%c0_12, %c0_13] : memref<1x128xf32, #tpu.memory_space<vmem>>, vector<1x128xf32>
      %14 = vector.broadcast %13 : vector<1x128xf32> to vector<128x128xf32>
      %15 = arith.addf %12, %14 : vector<128x128xf32>
      %cst_14 = arith.constant 0.000000e+00 : f32
      %16 = vector.broadcast %cst_14 : f32 to vector<128x128xf32>
      %17 = arith.maximumf %15, %16 : vector<128x128xf32>
      %18 = arith.truncf %17 : vector<128x128xf32> to vector<128x128xbf16>
      %c0_15 = arith.constant 0 : index
      %c0_16 = arith.constant 0 : index
      %19 = vector.load %arg6[%c0_15, %c0_16] : memref<128x128xbf16, #tpu.memory_space<vmem>>, vector<128x128xbf16>
      tpu.vector_store %arg6[%c0_15, %c0_16], %18 {strides = array<i32>} : memref<128x128xbf16, #tpu.memory_space<vmem>>, vector<128x128xbf16>,
    } else {
    }
    return
  }
  func.func @transform_0(%arg0: i32, %arg1: i32, %arg2: i32) -> (i32, i32) {
    %c0_i32 = arith.constant 0 : i32
    return %arg0, %arg2 : i32, i32
  }
  func.func @transform_1(%arg0: i32, %arg1: i32, %arg2: i32) -> (i32, i32) {
    %c0_i32 = arith.constant 0 : i32
    return %arg2, %arg1 : i32, i32
  }
  func.func @transform_2(%arg0: i32, %arg1: i32, %arg2: i32) -> (i32, i32) {
    %c0_i32 = arith.constant 0 : i32
    %c0_i32_0 = arith.constant 0 : i32
    return %c0_i32, %arg1 : i32, i32
  }
  func.func @transform_3(%arg0: i32, %arg1: i32, %arg2: i32) -> (i32, i32) {
    %c0_i32 = arith.constant 0 : i32
    return %arg0, %arg1 : i32, i32
  }
}

module attributes {stable_mosaic.version = 11 : i64} {
  func.func @_matmul_bias_kernel(%arg0: i32, %arg1: i32, %arg2: i32, %arg3: memref<128x64xbf16, #tpu.memory_space<vmem>>, %arg4: memref<64x128xbf16, #tpu.memory_space<vmem>>, %arg5: memref<1x128xf32, #tpu.memory_space<vmem>>, %arg6: memref<128x128xbf16, #tpu.memory_space<vmem>>, %arg7: memref<128x128xf32, #tpu.memory_space<vmem>>) attributes {dimension_semantics = [#tpu.dimension_semantics<parallel>, #tpu.dimension_semantics<parallel>, #tpu.dimension_semantics<arbitrary>], iteration_bounds = array<i64: 1, 1, 1>, scalar_prefetch = 0 : i64, scratch_operands = 1 : i64, tpu.core_type = #tpu.core_type<tc>, window_params = [{transform_indices = @transform_0, window_bounds = array<i64: 128, 64>}, {transform_indices = @transform_1, window_bounds = array<i64: 64, 128>}, {transform_indices = @transform_2, window_bounds = array<i64: 1, 128>}, {transform_indices = @transform_3, window_bounds = array<i64: 128, 128>}]} {
    %c0_i32 = arith.constant 0 : i32
    %0 = arith.cmpi eq, %arg2, %c0_i32 : i32
    %1 = arith.extui %0 : i1 to i32
    %c0_i32_0 = arith.constant 0 : i32
    %2 = arith.cmpi ne, %1, %c0_i32_0 : i32
    scf.if %2 {
      %cst_10 = arith.constant 0.000000e+00 : f32
      %12 = vector.broadcast %cst_10 : f32 to vector<128x128xf32>
      %c0_11 = arith.constant 0 : index
      %c0_12 = arith.constant 0 : index
      %13 = vector.load %arg7[%c0_11, %c0_12] : memref<128x128xf32, #tpu.memory_space<vmem>>, vector<128x128xf32>
      tpu.vector_store %arg7[%c0_11, %c0_12], %12 {strides = array<i32>} : memref<128x128xf32, #tpu.memory_space<vmem>>, vector<128x128xf32>,
    } else {
    }
    %c0 = arith.constant 0 : index
    %c0_1 = arith.constant 0 : index
    %3 = vector.load %arg7[%c0, %c0_1] : memref<128x128xf32, #tpu.memory_space<vmem>>, vector<128x128xf32>
    %c0_2 = arith.constant 0 : index
    %c0_3 = arith.constant 0 : index
    %4 = vector.load %arg3[%c0_2, %c0_3] : memref<128x64xbf16, #tpu.memory_space<vmem>>, vector<128x64xbf16>
    %c0_4 = arith.constant 0 : index
    %c0_5 = arith.constant 0 : index
    %5 = vector.load %arg4[%c0_4, %c0_5] : memref<64x128xbf16, #tpu.memory_space<vmem>>, vector<64x128xbf16>
    %cst = arith.constant dense<0.000000e+00> : vector<128x128xf32>
    %6 = tpu.matmul %4, %5, %cst {dimension_numbers = #tpu.dot_dimension_numbers<[1], [0], [0], [1], [0, 0, 1, 1], [], []>} : vector<128x64xbf16>, vector<64x128xbf16>, vector<128x128xf32> -> vector<128x128xf32>
    %7 = arith.addf %3, %6 : vector<128x128xf32>
    %c0_6 = arith.constant 0 : index
    %c0_7 = arith.constant 0 : index
    %8 = vector.load %arg7[%c0_6, %c0_7] : memref<128x128xf32, #tpu.memory_space<vmem>>, vector<128x128xf32>
    tpu.vector_store %arg7[%c0_6, %c0_7], %7 {strides = array<i32>} : memref<128x128xf32, #tpu.memory_space<vmem>>, vector<128x128xf32>,
    %c0_i32_8 = arith.constant 0 : i32
    %9 = arith.cmpi eq, %arg2, %c0_i32_8 : i32
    %10 = arith.extui %9 : i1 to i32
    %c0_i32_9 = arith.constant 0 : i32
    %11 = arith.cmpi ne, %10, %c0_i32_9 : i32
    scf.if %11 {
      %c0_10 = arith.constant 0 : index
      %c0_11 = arith.constant 0 : index
      %12 = vector.load %arg7[%c0_10, %c0_11] : memref<128x128xf32, #tpu.memory_space<vmem>>, vector<128x128xf32>
      %c0_12 = arith.constant 0 : index
      %c0_13 = arith.constant 0 : index
      %13 = vector.load %arg5[%c0_12, %c0_13] : memref<1x128xf32, #tpu.memory_space<vmem>>, vector<1x128xf32>
      %14 = vector.broadcast %13 : vector<1x128xf32> to vector<128x128xf32>
      %15 = arith.addf %12, %14 : vector<128x128xf32>
      %cst_14 = arith.constant 0.000000e+00 : f32
      %16 = vector.broadcast %cst_14 : f32 to vector<128x128xf32>
      %17 = arith.maximumf %15, %16 : vector<128x128xf32>
      %18 = arith.truncf %17 : vector<128x128xf32> to vector<128x128xbf16>
      %c0_15 = arith.constant 0 : index
      %c0_16 = arith.constant 0 : index
      %19 = vector.load %arg6[%c0_15, %c0_16] : memref<128x128xbf16, #tpu.memory_space<vmem>>, vector<128x128xbf16>
      tpu.vector_store %arg6[%c0_15, %c0_16], %18 {strides = array<i32>} : memref<128x128xbf16, #tpu.memory_space<vmem>>, vector<128x128xbf16>,
    } else {
    }
    return
  }
  func.func @transform_0(%arg0: i32, %arg1: i32, %arg2: i32) -> (i32, i32) {
    %c0_i32 = arith.constant 0 : i32
    return %arg0, %arg2 : i32, i32
  }
  func.func @transform_1(%arg0: i32, %arg1: i32, %arg2: i32) -> (i32, i32) {
    %c0_i32 = arith.constant 0 : i32
    return %arg2, %arg1 : i32, i32
  }
  func.func @transform_2(%arg0: i32, %arg1: i32, %arg2: i32) -> (i32, i32) {
    %c0_i32 = arith.constant 0 : i32
    %c0_i32_0 = arith.constant 0 : i32
    return %c0_i32, %arg1 : i32, i32
  }
  func.func @transform_3(%arg0: i32, %arg1: i32, %arg2: i32) -> (i32, i32) {
    %c0_i32 = arith.constant 0 : i32
    return %arg0, %arg1 : i32, i32
  }
}

module attributes {stable_mosaic.version = 11 : i64} {
  func.func @_matmul_bias_kernel(%arg0: i32, %arg1: i32, %arg2: i32, %arg3: memref<256x16xbf16, #tpu.memory_space<vmem>>, %arg4: memref<16x128xbf16, #tpu.memory_space<vmem>>, %arg5: memref<1x128xf32, #tpu.memory_space<vmem>>, %arg6: memref<256x128xf32, #tpu.memory_space<vmem>>, %arg7: memref<256x128xf32, #tpu.memory_space<vmem>>) attributes {dimension_semantics = [#tpu.dimension_semantics<parallel>, #tpu.dimension_semantics<parallel>, #tpu.dimension_semantics<arbitrary>], iteration_bounds = array<i64: 2, 1, 1>, scalar_prefetch = 0 : i64, scratch_operands = 1 : i64, tpu.core_type = #tpu.core_type<tc>, window_params = [{transform_indices = @transform_0, window_bounds = array<i64: 256, 16>}, {transform_indices = @transform_1, window_bounds = array<i64: 16, 128>}, {transform_indices = @transform_2, window_bounds = array<i64: 1, 128>}, {transform_indices = @transform_3, window_bounds = array<i64: 256, 128>}]} {
    %c0_i32 = arith.constant 0 : i32
    %0 = arith.cmpi eq, %arg2, %c0_i32 : i32
    %1 = arith.extui %0 : i1 to i32
    %c0_i32_0 = arith.constant 0 : i32
    %2 = arith.cmpi ne, %1, %c0_i32_0 : i32
    scf.if %2 {
      %cst_10 = arith.constant 0.000000e+00 : f32
      %12 = vector.broadcast %cst_10 : f32 to vector<256x128xf32>
      %c0_11 = arith.constant 0 : index
      %c0_12 = arith.constant 0 : index
      %13 = vector.load %arg7[%c0_11, %c0_12] : memref<256x128xf32, #tpu.memory_space<vmem>>, vector<256x128xf32>
      tpu.vector_store %arg7[%c0_11, %c0_12], %12 {strides = array<i32>} : memref<256x128xf32, #tpu.memory_space<vmem>>, vector<256x128xf32>,
    } else {
    }
    %c0 = arith.constant 0 : index
    %c0_1 = arith.constant 0 : index
    %3 = vector.load %arg7[%c0, %c0_1] : memref<256x128xf32, #tpu.memory_space<vmem>>, vector<256x128xf32>
    %c0_2 = arith.constant 0 : index
    %c0_3 = arith.constant 0 : index
    %4 = vector.load %arg3[%c0_2, %c0_3] : memref<256x16xbf16, #tpu.memory_space<vmem>>, vector<256x16xbf16>
    %c0_4 = arith.constant 0 : index
    %c0_5 = arith.constant 0 : index
    %5 = vector.load %arg4[%c0_4, %c0_5] : memref<16x128xbf16, #tpu.memory_space<vmem>>, vector<16x128xbf16>
    %cst = arith.constant dense<0.000000e+00> : vector<256x128xf32>
    %6 = tpu.matmul %4, %5, %cst {dimension_numbers = #tpu.dot_dimension_numbers<[1], [0], [0], [1], [0, 0, 1, 1], [], []>} : vector<256x16xbf16>, vector<16x128xbf16>, vector<256x128xf32> -> vector<256x128xf32>
    %7 = arith.addf %3, %6 : vector<256x128xf32>
    %c0_6 = arith.constant 0 : index
    %c0_7 = arith.constant 0 : index
    %8 = vector.load %arg7[%c0_6, %c0_7] : memref<256x128xf32, #tpu.memory_space<vmem>>, vector<256x128xf32>
    tpu.vector_store %arg7[%c0_6, %c0_7], %7 {strides = array<i32>} : memref<256x128xf32, #tpu.memory_space<vmem>>, vector<256x128xf32>,
    %c0_i32_8 = arith.constant 0 : i32
    %9 = arith.cmpi eq, %arg2, %c0_i32_8 : i32
    %10 = arith.extui %9 : i1 to i32
    %c0_i32_9 = arith.constant 0 : i32
    %11 = arith.cmpi ne, %10, %c0_i32_9 : i32
    scf.if %11 {
      %c0_10 = arith.constant 0 : index
      %c0_11 = arith.constant 0 : index
      %12 = vector.load %arg7[%c0_10, %c0_11] : memref<256x128xf32, #tpu.memory_space<vmem>>, vector<256x128xf32>
      %c0_12 = arith.constant 0 : index
      %c0_13 = arith.constant 0 : index
      %13 = vector.load %arg5[%c0_12, %c0_13] : memref<1x128xf32, #tpu.memory_space<vmem>>, vector<1x128xf32>
      %14 = vector.broadcast %13 : vector<1x128xf32> to vector<256x128xf32>
      %15 = arith.addf %12, %14 : vector<256x128xf32>
      %c0_14 = arith.constant 0 : index
      %c0_15 = arith.constant 0 : index
      %16 = vector.load %arg6[%c0_14, %c0_15] : memref<256x128xf32, #tpu.memory_space<vmem>>, vector<256x128xf32>
      tpu.vector_store %arg6[%c0_14, %c0_15], %15 {strides = array<i32>} : memref<256x128xf32, #tpu.memory_space<vmem>>, vector<256x128xf32>,
    } else {
    }
    return
  }
  func.func @transform_0(%arg0: i32, %arg1: i32, %arg2: i32) -> (i32, i32) {
    %c0_i32 = arith.constant 0 : i32
    return %arg0, %arg2 : i32, i32
  }
  func.func @transform_1(%arg0: i32, %arg1: i32, %arg2: i32) -> (i32, i32) {
    %c0_i32 = arith.constant 0 : i32
    return %arg2, %arg1 : i32, i32
  }
  func.func @transform_2(%arg0: i32, %arg1: i32, %arg2: i32) -> (i32, i32) {
    %c0_i32 = arith.constant 0 : i32
    %c0_i32_0 = arith.constant 0 : i32
    return %c0_i32, %arg1 : i32, i32
  }
  func.func @transform_3(%arg0: i32, %arg1: i32, %arg2: i32) -> (i32, i32) {
    %c0_i32 = arith.constant 0 : i32
    return %arg0, %arg1 : i32, i32
  }
}

</mosaic_0001>

<llo_original>
// kernel: sub.7
$region0: #{sub.7}
  #allocation0 [shape = 's32[1]{0}', space=sflag, size = 0x4, scoped, tag = 'scoped memory for sub.7']
  %s0 = inlined_call_operand.vmem [shape: f32[16], index: 0, kind: input, shape index: {}]
  %s1 = inlined_call_operand.vmem [shape: f32[16], index: 1, kind: input, shape index: {}]
  %s2 = inlined_call_operand.vmem [shape: f32[16], index: 2, kind: output, shape index: {}]
  %v3 = vld [vmem:[%s0] sm:$0x1]
  %v4 = vld [vmem:[%s1] sm:$0x1]
  %5 = xla_tuple %v3, %v4
  %6 = xla_tuple %5
  %v7 = vsub.f32 %v3, %v4
  %8 = xla_tuple %v7
  %9 = vst [vmem:[%s2] sm:$0x1] %v7

// kernel: discrete_vae_forward.13
$region0: #{discrete_vae_forward.13}
  #allocation0 [shape = 'u32[]', space=smem, size = 0x4, offset = 0x4, fixed_abs, tag = 'smem constant byte address 0x4 - core index']
  #allocation1 [shape = 'u32[72,128]{1,0:T(1,128)}', space=vmem, size = 0x9000, scoped, tag = 'internal scratch']
  #allocation2 [shape = 'f32[128,128]{1,0:T(8,128)}', space=vmem, size = 0x10000, scoped, tag = 'scratch operand']
  %s0 = inlined_call_operand.vmem [shape: bf16[128,48], index: 0, kind: input, shape index: {}]
  %s1 = inlined_call_operand.vmem [shape: bf16[48,128], index: 1, kind: input, shape index: {}]
  %s2 = inlined_call_operand.vmem [shape: f32[1,128], index: 2, kind: input, shape index: {}]
  %s3 = inlined_call_operand.vmem [shape: bf16[128,128], index: 3, kind: output, shape index: {}]
  %s4 = sld [smem:[#allocation0]]
  $region30: #{discrete_vae_forward.13} parent=0
    _
  %s6 = ssub.s32 1, %s4
  %s7 = scalar_select 0, %s6, %s4
  // Predicated region
  $region2: #{discrete_vae_forward.13} parent=0 // pred_check
    _
  $region3: #{discrete_vae_forward.13} parent=0 // pred_check_branch
    %9 = sbr.rel (0) target = $region5
  $region4: #{discrete_vae_forward.13} parent=0 // pred_region
    _
  $region5: #{discrete_vae_forward.13} parent=0 // pred_fallthru
    _
  // Predicated region
  $region6: #{discrete_vae_forward.13} parent=0 // pred_check
    _
  $region7: #{discrete_vae_forward.13} parent=0 // pred_check_branch
    %11 = sbr.rel (0) target = $region9
  $region8: #{discrete_vae_forward.13} parent=0 // pred_region
    _
  $region9: #{discrete_vae_forward.13} parent=0 // pred_fallthru
    _
  // Predicated region
  $region10: #{discrete_vae_forward.13} parent=0 // pred_check
    _
  $region11: #{discrete_vae_forward.13} parent=0 // pred_check_branch
    %13 = sbr.rel (0) target = $region13
  $region12: #{discrete_vae_forward.13} parent=0 // pred_region
    _
  $region13: #{discrete_vae_forward.13} parent=0 // pred_fallthru
    _
  %p15 = scmp.eq.s32.totalorder 0, 0
  // Predicated region
  $region14: #{discrete_vae_forward.13} parent=0 // pred_check
    %p16 = pneg %p15
  $region15: #{discrete_vae_forward.13} parent=0 // pred_check_branch
    %18 = sbr.rel (%p16) target = $region17
  $region16: #{discrete_vae_forward.13} parent=0 // pred_region
    %19 = vst [vmem:[#allocation2] sm:$0xff] 0.0
    %20 = vst [vmem:[#allocation2 + $0x8] sm:$0xff] 0.0
    %21 = vst [vmem:[#allocation2 + $0x10] sm:$0xff] 0.0
    %22 = vst [vmem:[#allocation2 + $0x18] sm:$0xff] 0.0
    %23 = vst [vmem:[#allocation2 + $0x20] sm:$0xff] 0.0
    %24 = vst [vmem:[#allocation2 + $0x28] sm:$0xff] 0.0
    %25 = vst [vmem:[#allocation2 + $0x30] sm:$0xff] 0.0
    %26 = vst [vmem:[#allocation2 + $0x38] sm:$0xff] 0.0
    %27 = vst [vmem:[#allocation2 + $0x40] sm:$0xff] 0.0
    %28 = vst [vmem:[#allocation2 + $0x48] sm:$0xff] 0.0
    %29 = vst [vmem:[#allocation2 + $0x50] sm:$0xff] 0.0
    %30 = vst [vmem:[#allocation2 + $0x58] sm:$0xff] 0.0
    %31 = vst [vmem:[#allocation2 + $0x60] sm:$0xff] 0.0
    %32 = vst [vmem:[#allocation2 + $0x68] sm:$0xff] 0.0
    %33 = vst [vmem:[#allocation2 + $0x70] sm:$0xff] 0.0
    %34 = vst [vmem:[#allocation2 + $0x78] sm:$0xff] 0.0
  $region17: #{discrete_vae_forward.13} parent=0 // pred_fallthru
    _
  %v35 = vld [vmem:[#allocation2] sm:$0xff]
  %v36 = vld [vmem:[#allocation2 + $0x8] sm:$0xff]
  %v37 = vld [vmem:[#allocation2 + $0x10] sm:$0xff]
  %v38 = vld [vmem:[#allocation2 + $0x18] sm:$0xff]
  %v39 = vld [vmem:[#allocation2 + $0x20] sm:$0xff]
  %v40 = vld [vmem:[#allocation2 + $0x28] sm:$0xff]
  %v41 = vld [vmem:[#allocation2 + $0x30] sm:$0xff]
  %v42 = vld [vmem:[#allocation2 + $0x38] sm:$0xff]
  %v43 = vld [vmem:[#allocation2 + $0x40] sm:$0xff]
  %v44 = vld [vmem:[#allocation2 + $0x48] sm:$0xff]
  %v45 = vld [vmem:[#allocation2 + $0x50] sm:$0xff]
  %v46 = vld [vmem:[#allocation2 + $0x58] sm:$0xff]
  %v47 = vld [vmem:[#allocation2 + $0x60] sm:$0xff]
  %v48 = vld [vmem:[#allocation2 + $0x68] sm:$0xff]
  %v49 = vld [vmem:[#allocation2 + $0x70] sm:$0xff]
  %v50 = vld [vmem:[#allocation2 + $0x78] sm:$0xff]
  %v51 = vld [vmem:[%s0] sm:$0xf]
  %v52 = vld [vmem:[%s0 + $0x4] sm:$0xf]
  %v53 = vld [vmem:[%s0 + $0x8] sm:$0xf]
  %v54 = vld [vmem:[%s0 + $0xc] sm:$0xf]
  %v55 = vld [vmem:[%s0 + $0x10] sm:$0xf]
  %v56 = vld [vmem:[%s0 + $0x14] sm:$0xf]
  %v57 = vld [vmem:[%s0 + $0x18] sm:$0xf]
  %v58 = vld [vmem:[%s0 + $0x1c] sm:$0xf]
  %v59 = vld [vmem:[%s0 + $0x20] sm:$0xf]
  %v60 = vld [vmem:[%s0 + $0x24] sm:$0xf]
  %v61 = vld [vmem:[%s0 + $0x28] sm:$0xf]
  %v62 = vld [vmem:[%s0 + $0x2c] sm:$0xf]
  %v63 = vld [vmem:[%s0 + $0x30] sm:$0xf]
  %v64 = vld [vmem:[%s0 + $0x34] sm:$0xf]
  %v65 = vld [vmem:[%s0 + $0x38] sm:$0xf]
  %v66 = vld [vmem:[%s0 + $0x3c] sm:$0xf]
  %v67 = vld [vmem:[%s1] sm:$0xf]
  %v68 = vld [vmem:[%s1 + $0x4] sm:$0xf]
  %v69 = vld [vmem:[%s1 + $0x8] sm:$0xf]
  %v70 = vld [vmem:[%s1 + $0xc] sm:$0xf]
  %v71 = vld [vmem:[%s1 + $0x10] sm:$0xf]
  %v72 = vld [vmem:[%s1 + $0x14] sm:$0xf]
  %v89 = vunpack.c.l.b16 %v51
  %v90 = vunpack.c.l.b16 %v52
  %v91 = vunpack.c.l.b16 %v53
  %v92 = vunpack.c.l.b16 %v54
  %v93 = vunpack.c.l.b16 %v55
  %v94 = vunpack.c.l.b16 %v56
  %v95 = vunpack.c.l.b16 %v57
  %v96 = vunpack.c.l.b16 %v58
  %v97 = vunpack.c.l.b16 %v59
  %v98 = vunpack.c.l.b16 %v60
  %v99 = vunpack.c.l.b16 %v61
  %v100 = vunpack.c.l.b16 %v62
  %v101 = vunpack.c.l.b16 %v63
  %v102 = vunpack.c.l.b16 %v64
  %v103 = vunpack.c.l.b16 %v65
  %v104 = vunpack.c.l.b16 %v66
  %v105 = vpack.c.b16 %v90, %v89
  %v106 = vpack.c.b16 %v92, %v91
  %v107 = vpack.c.b16 %v94, %v93
  %v108 = vpack.c.b16 %v96, %v95
  %v109 = vpack.c.b16 %v98, %v97
  %v110 = vpack.c.b16 %v100, %v99
  %v111 = vpack.c.b16 %v102, %v101
  %v112 = vpack.c.b16 %v104, %v103
  %v119 = vunpack.c.l.b16 %v67
  %v120 = vunpack.c.l.b16 %v68
  %v121 = vunpack.c.l.b16 %v69
  %v122 = vunpack.c.l.b16 %v70
  %v123 = vunpack.c.l.b16 %v71
  %v124 = vunpack.c.l.b16 %v72
  %v125 = vpack.c.b16 %v120, %v119
  %v126 = vpack.c.b16 %v122, %v121
  %v127 = vpack.c.b16 %v124, %v123
  %vm131 = vcmask 392192
  %v133 = vsel %vm131, %v105, 0
  %v136 = vsel %vm131, %v106, 0
  %v139 = vsel %vm131, %v107, 0
  %v142 = vsel %vm131, %v108, 0
  %v145 = vsel %vm131, %v109, 0
  %v148 = vsel %vm131, %v110, 0
  %v151 = vsel %vm131, %v111, 0
  %v154 = vsel %vm131, %v112, 0
  %156 = vmatpush.bf16.msra.mxu0 0
  %157 = vmatpush.bf16.msra.mxu0 0
  %158 = vmatpush.bf16.msra.mxu0 0
  %159 = vmatpush.bf16.msra.mxu0 0
  %160 = vmatpush.bf16.msra.mxu0 0
  %161 = vmatpush.bf16.msra.mxu0 %v127
  %162 = vmatpush.bf16.msra.mxu0 %v126
  %163 = vmatpush.bf16.msra.mxu0 %v125
  %164 = vmatmul.bf16.gmra.mxu0 %v133
  %v165 = vpop.f32.mrf.mxu0
  %v166 = vadd.f32 0.0, %v165
  %v167 = vpop.f32.mrf.mxu0
  %v168 = vadd.f32 0.0, %v167
  %169 = vmatmul.bf16.gmra.mxu0 %v136
  %v170 = vpop.f32.mrf.mxu0
  %v171 = vadd.f32 0.0, %v170
  %v172 = vpop.f32.mrf.mxu0
  %v173 = vadd.f32 0.0, %v172
  %174 = vmatmul.bf16.gmra.mxu0 %v139
  %v175 = vpop.f32.mrf.mxu0
  %v176 = vadd.f32 0.0, %v175
  %v177 = vpop.f32.mrf.mxu0
  %v178 = vadd.f32 0.0, %v177
  %179 = vmatmul.bf16.gmra.mxu0 %v142
  %v180 = vpop.f32.mrf.mxu0
  %v181 = vadd.f32 0.0, %v180
  %v182 = vpop.f32.mrf.mxu0
  %v183 = vadd.f32 0.0, %v182
  %184 = vmatmul.bf16.gmra.mxu0 %v145
  %v185 = vpop.f32.mrf.mxu0
  %v186 = vadd.f32 0.0, %v185
  %v187 = vpop.f32.mrf.mxu0
  %v188 = vadd.f32 0.0, %v187
  %189 = vmatmul.bf16.gmra.mxu0 %v148
  %v190 = vpop.f32.mrf.mxu0
  %v191 = vadd.f32 0.0, %v190
  %v192 = vpop.f32.mrf.mxu0
  %v193 = vadd.f32 0.0, %v192
  %194 = vmatmul.bf16.gmra.mxu0 %v151
  %v195 = vpop.f32.mrf.mxu0
  %v196 = vadd.f32 0.0, %v195
  %v197 = vpop.f32.mrf.mxu0
  %v198 = vadd.f32 0.0, %v197
  %199 = vmatmul.bf16.gmra.mxu0 %v154
  %v200 = vpop.f32.mrf.mxu0
  %v201 = vadd.f32 0.0, %v200
  %v202 = vpop.f32.mrf.mxu0
  %v203 = vadd.f32 0.0, %v202
  %204 = vdwg.mxu0
  %v205 = vadd.f32 %v35, %v166
  %v206 = vadd.f32 %v36, %v168
  %v207 = vadd.f32 %v37, %v171
  %v208 = vadd.f32 %v38, %v173
  %v209 = vadd.f32 %v39, %v176
  %v210 = vadd.f32 %v40, %v178
  %v211 = vadd.f32 %v41, %v181
  %v212 = vadd.f32 %v42, %v183
  %v213 = vadd.f32 %v43, %v186
  %v214 = vadd.f32 %v44, %v188
  %v215 = vadd.f32 %v45, %v191
  %v216 = vadd.f32 %v46, %v193
  %v217 = vadd.f32 %v47, %v196
  %v218 = vadd.f32 %v48, %v198
  %v219 = vadd.f32 %v49, %v201
  %v220 = vadd.f32 %v50, %v203
  %221 = vst [vmem:[#allocation2] sm:$0xff] %v205
  %222 = vst [vmem:[#allocation2 + $0x8] sm:$0xff] %v206
  %223 = vst [vmem:[#allocation2 + $0x10] sm:$0xff] %v207
  %224 = vst [vmem:[#allocation2 + $0x18] sm:$0xff] %v208
  %225 = vst [vmem:[#allocation2 + $0x20] sm:$0xff] %v209
  %226 = vst [vmem:[#allocation2 + $0x28] sm:$0xff] %v210
  %227 = vst [vmem:[#allocation2 + $0x30] sm:$0xff] %v211
  %228 = vst [vmem:[#allocation2 + $0x38] sm:$0xff] %v212
  %229 = vst [vmem:[#allocation2 + $0x40] sm:$0xff] %v213
  %230 = vst [vmem:[#allocation2 + $0x48] sm:$0xff] %v214
  %231 = vst [vmem:[#allocation2 + $0x50] sm:$0xff] %v215
  %232 = vst [vmem:[#allocation2 + $0x58] sm:$0xff] %v216
  %233 = vst [vmem:[#allocation2 + $0x60] sm:$0xff] %v217
  %234 = vst [vmem:[#allocation2 + $0x68] sm:$0xff] %v218
  %235 = vst [vmem:[#allocation2 + $0x70] sm:$0xff] %v219
  %236 = vst [vmem:[#allocation2 + $0x78] sm:$0xff] %v220
  // Predicated region
  $region18: #{discrete_vae_forward.13} parent=0 // pred_check
    %p237 = pneg %p15
  $region19: #{discrete_vae_forward.13} parent=0 // pred_check_branch
    %239 = sbr.rel (%p237) target = $region21
  $region20: #{discrete_vae_forward.13} parent=0 // pred_region
    %v240 = vld [vmem:[#allocation2] sm:$0xff]
    %v241 = vld [vmem:[#allocation2 + $0x8] sm:$0xff]
    %v242 = vld [vmem:[#allocation2 + $0x10] sm:$0xff]
    %v243 = vld [vmem:[#allocation2 + $0x18] sm:$0xff]
    %v244 = vld [vmem:[#allocation2 + $0x20] sm:$0xff]
    %v245 = vld [vmem:[#allocation2 + $0x28] sm:$0xff]
    %v246 = vld [vmem:[#allocation2 + $0x30] sm:$0xff]
    %v247 = vld [vmem:[#allocation2 + $0x38] sm:$0xff]
    %v248 = vld [vmem:[#allocation2 + $0x40] sm:$0xff]
    %v249 = vld [vmem:[#allocation2 + $0x48] sm:$0xff]
    %v250 = vld [vmem:[#allocation2 + $0x50] sm:$0xff]
    %v251 = vld [vmem:[#allocation2 + $0x58] sm:$0xff]
    %v252 = vld [vmem:[#allocation2 + $0x60] sm:$0xff]
    %v253 = vld [vmem:[#allocation2 + $0x68] sm:$0xff]
    %v254 = vld [vmem:[#allocation2 + $0x70] sm:$0xff]
    %v255 = vld [vmem:[#allocation2 + $0x78] sm:$0xff]
    %v256 = vld [vmem:[%s2] sm:$0x1]
    %v258 = vperm.slane %v256, 0
    %v260 = vadd.f32 %v240, %v258
    %v261 = vadd.f32 %v241, %v258
    %v262 = vadd.f32 %v242, %v258
    %v263 = vadd.f32 %v243, %v258
    %v264 = vadd.f32 %v244, %v258
    %v265 = vadd.f32 %v245, %v258
    %v266 = vadd.f32 %v246, %v258
    %v267 = vadd.f32 %v247, %v258
    %v268 = vadd.f32 %v248, %v258
    %v269 = vadd.f32 %v249, %v258
    %v270 = vadd.f32 %v250, %v258
    %v271 = vadd.f32 %v251, %v258
    %v272 = vadd.f32 %v252, %v258
    %v273 = vadd.f32 %v253, %v258
    %v274 = vadd.f32 %v254, %v258
    %v275 = vadd.f32 %v255, %v258
    %v276 = vmax.f32 %v260, 0.0
    %v277 = vmax.f32 %v261, 0.0
    %v278 = vmax.f32 %v262, 0.0
    %v279 = vmax.f32 %v263, 0.0
    %v280 = vmax.f32 %v264, 0.0
    %v281 = vmax.f32 %v265, 0.0
    %v282 = vmax.f32 %v266, 0.0
    %v283 = vmax.f32 %v267, 0.0
    %v284 = vmax.f32 %v268, 0.0
    %v285 = vmax.f32 %v269, 0.0
    %v286 = vmax.f32 %v270, 0.0
    %v287 = vmax.f32 %v271, 0.0
    %v288 = vmax.f32 %v272, 0.0
    %v289 = vmax.f32 %v273, 0.0
    %v290 = vmax.f32 %v274, 0.0
    %v291 = vmax.f32 %v275, 0.0
    %v292 = vpack.c.bf16 %v276, %v276
    %v293 = vpack.c.bf16 %v277, %v277
    %v294 = vpack.c.bf16 %v278, %v278
    %v295 = vpack.c.bf16 %v279, %v279
    %v296 = vpack.c.bf16 %v280, %v280
    %v297 = vpack.c.bf16 %v281, %v281
    %v298 = vpack.c.bf16 %v282, %v282
    %v299 = vpack.c.bf16 %v283, %v283
    %v300 = vpack.c.bf16 %v284, %v284
    %v301 = vpack.c.bf16 %v285, %v285
    %v302 = vpack.c.bf16 %v286, %v286
    %v303 = vpack.c.bf16 %v287, %v287
    %v304 = vpack.c.bf16 %v288, %v288
    %v305 = vpack.c.bf16 %v289, %v289
    %v306 = vpack.c.bf16 %v290, %v290
    %v307 = vpack.c.bf16 %v291, %v291
    %308 = vst [vmem:[%s3] sm:$0xf] %v292
    %309 = vst [vmem:[%s3 + $0x4] sm:$0xf] %v293
    %310 = vst [vmem:[%s3 + $0x8] sm:$0xf] %v294
    %311 = vst [vmem:[%s3 + $0xc] sm:$0xf] %v295
    %312 = vst [vmem:[%s3 + $0x10] sm:$0xf] %v296
    %313 = vst [vmem:[%s3 + $0x14] sm:$0xf] %v297
    %314 = vst [vmem:[%s3 + $0x18] sm:$0xf] %v298
    %315 = vst [vmem:[%s3 + $0x1c] sm:$0xf] %v299
    %316 = vst [vmem:[%s3 + $0x20] sm:$0xf] %v300
    %317 = vst [vmem:[%s3 + $0x24] sm:$0xf] %v301
    %318 = vst [vmem:[%s3 + $0x28] sm:$0xf] %v302
    %319 = vst [vmem:[%s3 + $0x2c] sm:$0xf] %v303
    %320 = vst [vmem:[%s3 + $0x30] sm:$0xf] %v304
    %321 = vst [vmem:[%s3 + $0x34] sm:$0xf] %v305
    %322 = vst [vmem:[%s3 + $0x38] sm:$0xf] %v306
    %323 = vst [vmem:[%s3 + $0x3c] sm:$0xf] %v307
  $region21: #{discrete_vae_forward.13} parent=0 // pred_fallthru
    _
  // Predicated region
  $region22: #{discrete_vae_forward.13} parent=0 // pred_check
    _
  $region23: #{discrete_vae_forward.13} parent=0 // pred_check_branch
    %325 = sbr.rel (0) target = $region25
  $region24: #{discrete_vae_forward.13} parent=0 // pred_region
    _
  $region25: #{discrete_vae_forward.13} parent=0 // pred_fallthru
    _
  // Predicated region
  $region26: #{discrete_vae_forward.13} parent=0 // pred_check
    _
  $region27: #{discrete_vae_forward.13} parent=0 // pred_check_branch
    %327 = sbr.rel (0) target = $region29
  $region28: #{discrete_vae_forward.13} parent=0 // pred_region
    _
  $region29: #{discrete_vae_forward.13} parent=0 // pred_fallthru
    _

// kernel: discrete_vae_forward.14
$region0: #{discrete_vae_forward.14}
  #allocation0 [shape = 'u32[]', space=smem, size = 0x4, offset = 0x4, fixed_abs, tag = 'smem constant byte address 0x4 - core index']
  #allocation1 [shape = 'u32[72,128]{1,0:T(1,128)}', space=vmem, size = 0x9000, scoped, tag = 'internal scratch']
  #allocation2 [shape = 'f32[128,128]{1,0:T(8,128)}', space=vmem, size = 0x10000, scoped, tag = 'scratch operand']
  %s0 = inlined_call_operand.vmem [shape: bf16[128,256], index: 0, kind: input, shape index: {}]
  %s1 = inlined_call_operand.vmem [shape: bf16[256,128], index: 1, kind: input, shape index: {}]
  %s2 = inlined_call_operand.vmem [shape: f32[1,128], index: 2, kind: input, shape index: {}]
  %s3 = inlined_call_operand.vmem [shape: bf16[128,128], index: 3, kind: output, shape index: {}]
  %s4 = sld [smem:[#allocation0]]
  $region30: #{discrete_vae_forward.14} parent=0
    _
  %s6 = ssub.s32 1, %s4
  %s7 = scalar_select 0, %s6, %s4
  // Predicated region
  $region2: #{discrete_vae_forward.14} parent=0 // pred_check
    _
  $region3: #{discrete_vae_forward.14} parent=0 // pred_check_branch
    %9 = sbr.rel (0) target = $region5
  $region4: #{discrete_vae_forward.14} parent=0 // pred_region
    _
  $region5: #{discrete_vae_forward.14} parent=0 // pred_fallthru
    _
  // Predicated region
  $region6: #{discrete_vae_forward.14} parent=0 // pred_check
    _
  $region7: #{discrete_vae_forward.14} parent=0 // pred_check_branch
    %11 = sbr.rel (0) target = $region9
  $region8: #{discrete_vae_forward.14} parent=0 // pred_region
    _
  $region9: #{discrete_vae_forward.14} parent=0 // pred_fallthru
    _
  // Predicated region
  $region10: #{discrete_vae_forward.14} parent=0 // pred_check
    _
  $region11: #{discrete_vae_forward.14} parent=0 // pred_check_branch
    %13 = sbr.rel (0) target = $region13
  $region12: #{discrete_vae_forward.14} parent=0 // pred_region
    _
  $region13: #{discrete_vae_forward.14} parent=0 // pred_fallthru
    _
  %p14 = scmp.eq.s32.totalorder 0, 0
  // Predicated region
  $region14: #{discrete_vae_forward.14} parent=0 // pred_check
    %p15 = pneg %p14
  $region15: #{discrete_vae_forward.14} parent=0 // pred_check_branch
    %17 = sbr.rel (%p15) target = $region17
  $region16: #{discrete_vae_forward.14} parent=0 // pred_region
    %18 = vst [vmem:[#allocation2] sm:$0xff] 0.0
    %19 = vst [vmem:[#allocation2 + $0x8] sm:$0xff] 0.0
    %20 = vst [vmem:[#allocation2 + $0x10] sm:$0xff] 0.0
    %21 = vst [vmem:[#allocation2 + $0x18] sm:$0xff] 0.0
    %22 = vst [vmem:[#allocation2 + $0x20] sm:$0xff] 0.0
    %23 = vst [vmem:[#allocation2 + $0x28] sm:$0xff] 0.0
    %24 = vst [vmem:[#allocation2 + $0x30] sm:$0xff] 0.0
    %25 = vst [vmem:[#allocation2 + $0x38] sm:$0xff] 0.0
    %26 = vst [vmem:[#allocation2 + $0x40] sm:$0xff] 0.0
    %27 = vst [vmem:[#allocation2 + $0x48] sm:$0xff] 0.0
    %28 = vst [vmem:[#allocation2 + $0x50] sm:$0xff] 0.0
    %29 = vst [vmem:[#allocation2 + $0x58] sm:$0xff] 0.0
    %30 = vst [vmem:[#allocation2 + $0x60] sm:$0xff] 0.0
    %31 = vst [vmem:[#allocation2 + $0x68] sm:$0xff] 0.0
    %32 = vst [vmem:[#allocation2 + $0x70] sm:$0xff] 0.0
    %33 = vst [vmem:[#allocation2 + $0x78] sm:$0xff] 0.0
  $region17: #{discrete_vae_forward.14} parent=0 // pred_fallthru
    _
  %v34 = vld [vmem:[#allocation2] sm:$0xff]
  %v35 = vld [vmem:[#allocation2 + $0x8] sm:$0xff]
  %v36 = vld [vmem:[#allocation2 + $0x10] sm:$0xff]
  %v37 = vld [vmem:[#allocation2 + $0x18] sm:$0xff]
  %v38 = vld [vmem:[#allocation2 + $0x20] sm:$0xff]
  %v39 = vld [vmem:[#allocation2 + $0x28] sm:$0xff]
  %v40 = vld [vmem:[#allocation2 + $0x30] sm:$0xff]
  %v41 = vld [vmem:[#allocation2 + $0x38] sm:$0xff]
  %v42 = vld [vmem:[#allocation2 + $0x40] sm:$0xff]
  %v43 = vld [vmem:[#allocation2 + $0x48] sm:$0xff]
  %v44 = vld [vmem:[#allocation2 + $0x50] sm:$0xff]
  %v45 = vld [vmem:[#allocation2 + $0x58] sm:$0xff]
  %v46 = vld [vmem:[#allocation2 + $0x60] sm:$0xff]
  %v47 = vld [vmem:[#allocation2 + $0x68] sm:$0xff]
  %v48 = vld [vmem:[#allocation2 + $0x70] sm:$0xff]
  %v49 = vld [vmem:[#allocation2 + $0x78] sm:$0xff]
  %v50 = vld [vmem:[%s0] sm:$0xff]
  %v51 = vld [vmem:[%s0 + $0x8] sm:$0xff]
  %v52 = vld [vmem:[%s0 + $0x10] sm:$0xff]
  %v53 = vld [vmem:[%s0 + $0x18] sm:$0xff]
  %v54 = vld [vmem:[%s0 + $0x20] sm:$0xff]
  %v55 = vld [vmem:[%s0 + $0x28] sm:$0xff]
  %v56 = vld [vmem:[%s0 + $0x30] sm:$0xff]
  %v57 = vld [vmem:[%s0 + $0x38] sm:$0xff]
  %v58 = vld [vmem:[%s0 + $0x40] sm:$0xff]
  %v59 = vld [vmem:[%s0 + $0x48] sm:$0xff]
  %v60 = vld [vmem:[%s0 + $0x50] sm:$0xff]
  %v61 = vld [vmem:[%s0 + $0x58] sm:$0xff]
  %v62 = vld [vmem:[%s0 + $0x60] sm:$0xff]
  %v63 = vld [vmem:[%s0 + $0x68] sm:$0xff]
  %v64 = vld [vmem:[%s0 + $0x70] sm:$0xff]
  %v65 = vld [vmem:[%s0 + $0x78] sm:$0xff]
  %v66 = vld [vmem:[%s1] sm:$0xf]
  %v67 = vld [vmem:[%s1 + $0x4] sm:$0xf]
  %v68 = vld [vmem:[%s1 + $0x8] sm:$0xf]
  %v69 = vld [vmem:[%s1 + $0xc] sm:$0xf]
  %v70 = vld [vmem:[%s1 + $0x10] sm:$0xf]
  %v71 = vld [vmem:[%s1 + $0x14] sm:$0xf]
  %v72 = vld [vmem:[%s1 + $0x18] sm:$0xf]
  %v73 = vld [vmem:[%s1 + $0x1c] sm:$0xf]
  %v74 = vld [vmem:[%s1 + $0x20] sm:$0xf]
  %v75 = vld [vmem:[%s1 + $0x24] sm:$0xf]
  %v76 = vld [vmem:[%s1 + $0x28] sm:$0xf]
  %v77 = vld [vmem:[%s1 + $0x2c] sm:$0xf]
  %v78 = vld [vmem:[%s1 + $0x30] sm:$0xf]
  %v79 = vld [vmem:[%s1 + $0x34] sm:$0xf]
  %v80 = vld [vmem:[%s1 + $0x38] sm:$0xf]
  %v81 = vld [vmem:[%s1 + $0x3c] sm:$0xf]
  %v82 = vld [vmem:[%s1 + $0x40] sm:$0xf]
  %v83 = vld [vmem:[%s1 + $0x44] sm:$0xf]
  %v84 = vld [vmem:[%s1 + $0x48] sm:$0xf]
  %v85 = vld [vmem:[%s1 + $0x4c] sm:$0xf]
  %v86 = vld [vmem:[%s1 + $0x50] sm:$0xf]
  %v87 = vld [vmem:[%s1 + $0x54] sm:$0xf]
  %v88 = vld [vmem:[%s1 + $0x58] sm:$0xf]
  %v89 = vld [vmem:[%s1 + $0x5c] sm:$0xf]
  %v90 = vld [vmem:[%s1 + $0x60] sm:$0xf]
  %v91 = vld [vmem:[%s1 + $0x64] sm:$0xf]
  %v92 = vld [vmem:[%s1 + $0x68] sm:$0xf]
  %v93 = vld [vmem:[%s1 + $0x6c] sm:$0xf]
  %v94 = vld [vmem:[%s1 + $0x70] sm:$0xf]
  %v95 = vld [vmem:[%s1 + $0x74] sm:$0xf]
  %v96 = vld [vmem:[%s1 + $0x78] sm:$0xf]
  %v97 = vld [vmem:[%s1 + $0x7c] sm:$0xf]
  %v114 = vunpack.c.l.b16 %v50
  %v115 = vunpack.c.h.b16 %v50
  %v116 = vunpack.c.l.b16 %v51
  %v117 = vunpack.c.h.b16 %v51
  %v118 = vunpack.c.l.b16 %v52
  %v119 = vunpack.c.h.b16 %v52
  %v120 = vunpack.c.l.b16 %v53
  %v121 = vunpack.c.h.b16 %v53
  %v122 = vunpack.c.l.b16 %v54
  %v123 = vunpack.c.h.b16 %v54
  %v124 = vunpack.c.l.b16 %v55
  %v125 = vunpack.c.h.b16 %v55
  %v126 = vunpack.c.l.b16 %v56
  %v127 = vunpack.c.h.b16 %v56
  %v128 = vunpack.c.l.b16 %v57
  %v129 = vunpack.c.h.b16 %v57
  %v130 = vunpack.c.l.b16 %v58
  %v131 = vunpack.c.h.b16 %v58
  %v132 = vunpack.c.l.b16 %v59
  %v133 = vunpack.c.h.b16 %v59
  %v134 = vunpack.c.l.b16 %v60
  %v135 = vunpack.c.h.b16 %v60
  %v136 = vunpack.c.l.b16 %v61
  %v137 = vunpack.c.h.b16 %v61
  %v138 = vunpack.c.l.b16 %v62
  %v139 = vunpack.c.h.b16 %v62
  %v140 = vunpack.c.l.b16 %v63
  %v141 = vunpack.c.h.b16 %v63
  %v142 = vunpack.c.l.b16 %v64
  %v143 = vunpack.c.h.b16 %v64
  %v144 = vunpack.c.l.b16 %v65
  %v145 = vunpack.c.h.b16 %v65
  %v146 = vpack.c.b16 %v116, %v114
  %v147 = vpack.c.b16 %v117, %v115
  %v148 = vpack.c.b16 %v120, %v118
  %v149 = vpack.c.b16 %v121, %v119
  %v150 = vpack.c.b16 %v124, %v122
  %v151 = vpack.c.b16 %v125, %v123
  %v152 = vpack.c.b16 %v128, %v126
  %v153 = vpack.c.b16 %v129, %v127
  %v154 = vpack.c.b16 %v132, %v130
  %v155 = vpack.c.b16 %v133, %v131
  %v156 = vpack.c.b16 %v136, %v134
  %v157 = vpack.c.b16 %v137, %v135
  %v158 = vpack.c.b16 %v140, %v138
  %v159 = vpack.c.b16 %v141, %v139
  %v160 = vpack.c.b16 %v144, %v142
  %v161 = vpack.c.b16 %v145, %v143
  %v210 = vunpack.c.l.b16 %v66
  %v211 = vunpack.c.l.b16 %v67
  %v212 = vunpack.c.l.b16 %v68
  %v213 = vunpack.c.l.b16 %v69
  %v214 = vunpack.c.l.b16 %v70
  %v215 = vunpack.c.l.b16 %v71
  %v216 = vunpack.c.l.b16 %v72
  %v217 = vunpack.c.l.b16 %v73
  %v218 = vunpack.c.l.b16 %v74
  %v219 = vunpack.c.l.b16 %v75
  %v220 = vunpack.c.l.b16 %v76
  %v221 = vunpack.c.l.b16 %v77
  %v222 = vunpack.c.l.b16 %v78
  %v223 = vunpack.c.l.b16 %v79
  %v224 = vunpack.c.l.b16 %v80
  %v225 = vunpack.c.l.b16 %v81
  %v226 = vunpack.c.l.b16 %v82
  %v227 = vunpack.c.l.b16 %v83
  %v228 = vunpack.c.l.b16 %v84
  %v229 = vunpack.c.l.b16 %v85
  %v230 = vunpack.c.l.b16 %v86
  %v231 = vunpack.c.l.b16 %v87
  %v232 = vunpack.c.l.b16 %v88
  %v233 = vunpack.c.l.b16 %v89
  %v234 = vunpack.c.l.b16 %v90
  %v235 = vunpack.c.l.b16 %v91
  %v236 = vunpack.c.l.b16 %v92
  %v237 = vunpack.c.l.b16 %v93
  %v238 = vunpack.c.l.b16 %v94
  %v239 = vunpack.c.l.b16 %v95
  %v240 = vunpack.c.l.b16 %v96
  %v241 = vunpack.c.l.b16 %v97
  %v242 = vpack.c.b16 %v211, %v210
  %v243 = vpack.c.b16 %v213, %v212
  %v244 = vpack.c.b16 %v215, %v214
  %v245 = vpack.c.b16 %v217, %v216
  %v246 = vpack.c.b16 %v219, %v218
  %v247 = vpack.c.b16 %v221, %v220
  %v248 = vpack.c.b16 %v223, %v222
  %v249 = vpack.c.b16 %v225, %v224
  %v250 = vpack.c.b16 %v227, %v226
  %v251 = vpack.c.b16 %v229, %v228
  %v252 = vpack.c.b16 %v231, %v230
  %v253 = vpack.c.b16 %v233, %v232
  %v254 = vpack.c.b16 %v235, %v234
  %v255 = vpack.c.b16 %v237, %v236
  %v256 = vpack.c.b16 %v239, %v238
  %v257 = vpack.c.b16 %v241, %v240
  %274 = vmatpush.bf16.msra.mxu0 %v249
  %275 = vmatpush.bf16.msra.mxu0 %v248
  %276 = vmatpush.bf16.msra.mxu0 %v247
  %277 = vmatpush.bf16.msra.mxu0 %v246
  %278 = vmatpush.bf16.msra.mxu0 %v245
  %279 = vmatpush.bf16.msra.mxu0 %v244
  %280 = vmatpush.bf16.msra.mxu0 %v243
  %281 = vmatpush.bf16.msra.mxu0 %v242
  %282 = vmatmul.bf16.gmra.mxu0 %v146
  %v283 = vpop.f32.mrf.mxu0
  %v284 = vadd.f32 0.0, %v283
  %v285 = vpop.f32.mrf.mxu0
  %v286 = vadd.f32 0.0, %v285
  %287 = vmatmul.bf16.gmra.mxu0 %v148
  %v288 = vpop.f32.mrf.mxu0
  %v289 = vadd.f32 0.0, %v288
  %v290 = vpop.f32.mrf.mxu0
  %v291 = vadd.f32 0.0, %v290
  %292 = vmatmul.bf16.gmra.mxu0 %v150
  %v293 = vpop.f32.mrf.mxu0
  %v294 = vadd.f32 0.0, %v293
  %v295 = vpop.f32.mrf.mxu0
  %v296 = vadd.f32 0.0, %v295
  %297 = vmatmul.bf16.gmra.mxu0 %v152
  %v298 = vpop.f32.mrf.mxu0
  %v299 = vadd.f32 0.0, %v298
  %v300 = vpop.f32.mrf.mxu0
  %v301 = vadd.f32 0.0, %v300
  %302 = vmatmul.bf16.gmra.mxu0 %v154
  %v303 = vpop.f32.mrf.mxu0
  %v304 = vadd.f32 0.0, %v303
  %v305 = vpop.f32.mrf.mxu0
  %v306 = vadd.f32 0.0, %v305
  %307 = vmatmul.bf16.gmra.mxu0 %v156
  %v308 = vpop.f32.mrf.mxu0
  %v309 = vadd.f32 0.0, %v308
  %v310 = vpop.f32.mrf.mxu0
  %v311 = vadd.f32 0.0, %v310
  %312 = vmatmul.bf16.gmra.mxu0 %v158
  %v313 = vpop.f32.mrf.mxu0
  %v314 = vadd.f32 0.0, %v313
  %v315 = vpop.f32.mrf.mxu0
  %v316 = vadd.f32 0.0, %v315
  %317 = vmatmul.bf16.gmra.mxu0 %v160
  %v318 = vpop.f32.mrf.mxu0
  %v319 = vadd.f32 0.0, %v318
  %v320 = vpop.f32.mrf.mxu0
  %v321 = vadd.f32 0.0, %v320
  %322 = vdwg.mxu0
  %323 = vmatpush.bf16.msra.mxu0 %v257
  %324 = vmatpush.bf16.msra.mxu0 %v256
  %325 = vmatpush.bf16.msra.mxu0 %v255
  %326 = vmatpush.bf16.msra.mxu0 %v254
  %327 = vmatpush.bf16.msra.mxu0 %v253
  %328 = vmatpush.bf16.msra.mxu0 %v252
  %329 = vmatpush.bf16.msra.mxu0 %v251
  %330 = vmatpush.bf16.msra.mxu0 %v250
  %331 = vmatmul.bf16.gmra.mxu0 %v147
  %v332 = vpop.f32.mrf.mxu0
  %v333 = vadd.f32 %v284, %v332
  %v334 = vpop.f32.mrf.mxu0
  %v335 = vadd.f32 %v286, %v334
  %336 = vmatmul.bf16.gmra.mxu0 %v149
  %v337 = vpop.f32.mrf.mxu0
  %v338 = vadd.f32 %v289, %v337
  %v339 = vpop.f32.mrf.mxu0
  %v340 = vadd.f32 %v291, %v339
  %341 = vmatmul.bf16.gmra.mxu0 %v151
  %v342 = vpop.f32.mrf.mxu0
  %v343 = vadd.f32 %v294, %v342
  %v344 = vpop.f32.mrf.mxu0
  %v345 = vadd.f32 %v296, %v344
  %346 = vmatmul.bf16.gmra.mxu0 %v153
  %v347 = vpop.f32.mrf.mxu0
  %v348 = vadd.f32 %v299, %v347
  %v349 = vpop.f32.mrf.mxu0
  %v350 = vadd.f32 %v301, %v349
  %351 = vmatmul.bf16.gmra.mxu0 %v155
  %v352 = vpop.f32.mrf.mxu0
  %v353 = vadd.f32 %v304, %v352
  %v354 = vpop.f32.mrf.mxu0
  %v355 = vadd.f32 %v306, %v354
  %356 = vmatmul.bf16.gmra.mxu0 %v157
  %v357 = vpop.f32.mrf.mxu0
  %v358 = vadd.f32 %v309, %v357
  %v359 = vpop.f32.mrf.mxu0
  %v360 = vadd.f32 %v311, %v359
  %361 = vmatmul.bf16.gmra.mxu0 %v159
  %v362 = vpop.f32.mrf.mxu0
  %v363 = vadd.f32 %v314, %v362
  %v364 = vpop.f32.mrf.mxu0
  %v365 = vadd.f32 %v316, %v364
  %366 = vmatmul.bf16.gmra.mxu0 %v161
  %v367 = vpop.f32.mrf.mxu0
  %v368 = vadd.f32 %v319, %v367
  %v369 = vpop.f32.mrf.mxu0
  %v370 = vadd.f32 %v321, %v369
  %371 = vdwg.mxu0
  %v372 = vadd.f32 %v34, %v333
  %v373 = vadd.f32 %v35, %v335
  %v374 = vadd.f32 %v36, %v338
  %v375 = vadd.f32 %v37, %v340
  %v376 = vadd.f32 %v38, %v343
  %v377 = vadd.f32 %v39, %v345
  %v378 = vadd.f32 %v40, %v348
  %v379 = vadd.f32 %v41, %v350
  %v380 = vadd.f32 %v42, %v353
  %v381 = vadd.f32 %v43, %v355
  %v382 = vadd.f32 %v44, %v358
  %v383 = vadd.f32 %v45, %v360
  %v384 = vadd.f32 %v46, %v363
  %v385 = vadd.f32 %v47, %v365
  %v386 = vadd.f32 %v48, %v368
  %v387 = vadd.f32 %v49, %v370
  %388 = vst [vmem:[#allocation2] sm:$0xff] %v372
  %389 = vst [vmem:[#allocation2 + $0x8] sm:$0xff] %v373
  %390 = vst [vmem:[#allocation2 + $0x10] sm:$0xff] %v374
  %391 = vst [vmem:[#allocation2 + $0x18] sm:$0xff] %v375
  %392 = vst [vmem:[#allocation2 + $0x20] sm:$0xff] %v376
  %393 = vst [vmem:[#allocation2 + $0x28] sm:$0xff] %v377
  %394 = vst [vmem:[#allocation2 + $0x30] sm:$0xff] %v378
  %395 = vst [vmem:[#allocation2 + $0x38] sm:$0xff] %v379
  %396 = vst [vmem:[#allocation2 + $0x40] sm:$0xff] %v380
  %397 = vst [vmem:[#allocation2 + $0x48] sm:$0xff] %v381
  %398 = vst [vmem:[#allocation2 + $0x50] sm:$0xff] %v382
  %399 = vst [vmem:[#allocation2 + $0x58] sm:$0xff] %v383
  %400 = vst [vmem:[#allocation2 + $0x60] sm:$0xff] %v384
  %401 = vst [vmem:[#allocation2 + $0x68] sm:$0xff] %v385
  %402 = vst [vmem:[#allocation2 + $0x70] sm:$0xff] %v386
  %403 = vst [vmem:[#allocation2 + $0x78] sm:$0xff] %v387
  // Predicated region
  $region18: #{discrete_vae_forward.14} parent=0 // pred_check
    %p404 = pneg %p14
  $region19: #{discrete_vae_forward.14} parent=0 // pred_check_branch
    %406 = sbr.rel (%p404) target = $region21
  $region20: #{discrete_vae_forward.14} parent=0 // pred_region
    %v407 = vld [vmem:[#allocation2] sm:$0xff]
    %v408 = vld [vmem:[#allocation2 + $0x8] sm:$0xff]
    %v409 = vld [vmem:[#allocation2 + $0x10] sm:$0xff]
    %v410 = vld [vmem:[#allocation2 + $0x18] sm:$0xff]
    %v411 = vld [vmem:[#allocation2 + $0x20] sm:$0xff]
    %v412 = vld [vmem:[#allocation2 + $0x28] sm:$0xff]
    %v413 = vld [vmem:[#allocation2 + $0x30] sm:$0xff]
    %v414 = vld [vmem:[#allocation2 + $0x38] sm:$0xff]
    %v415 = vld [vmem:[#allocation2 + $0x40] sm:$0xff]
    %v416 = vld [vmem:[#allocation2 + $0x48] sm:$0xff]
    %v417 = vld [vmem:[#allocation2 + $0x50] sm:$0xff]
    %v418 = vld [vmem:[#allocation2 + $0x58] sm:$0xff]
    %v419 = vld [vmem:[#allocation2 + $0x60] sm:$0xff]
    %v420 = vld [vmem:[#allocation2 + $0x68] sm:$0xff]
    %v421 = vld [vmem:[#allocation2 + $0x70] sm:$0xff]
    %v422 = vld [vmem:[#allocation2 + $0x78] sm:$0xff]
    %v423 = vld [vmem:[%s2] sm:$0x1]
    %v425 = vperm.slane %v423, 0
    %v427 = vadd.f32 %v407, %v425
    %v428 = vadd.f32 %v408, %v425
    %v429 = vadd.f32 %v409, %v425
    %v430 = vadd.f32 %v410, %v425
    %v431 = vadd.f32 %v411, %v425
    %v432 = vadd.f32 %v412, %v425
    %v433 = vadd.f32 %v413, %v425
    %v434 = vadd.f32 %v414, %v425
    %v435 = vadd.f32 %v415, %v425
    %v436 = vadd.f32 %v416, %v425
    %v437 = vadd.f32 %v417, %v425
    %v438 = vadd.f32 %v418, %v425
    %v439 = vadd.f32 %v419, %v425
    %v440 = vadd.f32 %v420, %v425
    %v441 = vadd.f32 %v421, %v425
    %v442 = vadd.f32 %v422, %v425
    %v443 = vmax.f32 %v427, 0.0
    %v444 = vmax.f32 %v428, 0.0
    %v445 = vmax.f32 %v429, 0.0
    %v446 = vmax.f32 %v430, 0.0
    %v447 = vmax.f32 %v431, 0.0
    %v448 = vmax.f32 %v432, 0.0
    %v449 = vmax.f32 %v433, 0.0
    %v450 = vmax.f32 %v434, 0.0
    %v451 = vmax.f32 %v435, 0.0
    %v452 = vmax.f32 %v436, 0.0
    %v453 = vmax.f32 %v437, 0.0
    %v454 = vmax.f32 %v438, 0.0
    %v455 = vmax.f32 %v439, 0.0
    %v456 = vmax.f32 %v440, 0.0
    %v457 = vmax.f32 %v441, 0.0
    %v458 = vmax.f32 %v442, 0.0
    %v459 = vpack.c.bf16 %v443, %v443
    %v460 = vpack.c.bf16 %v444, %v444
    %v461 = vpack.c.bf16 %v445, %v445
    %v462 = vpack.c.bf16 %v446, %v446
    %v463 = vpack.c.bf16 %v447, %v447
    %v464 = vpack.c.bf16 %v448, %v448
    %v465 = vpack.c.bf16 %v449, %v449
    %v466 = vpack.c.bf16 %v450, %v450
    %v467 = vpack.c.bf16 %v451, %v451
    %v468 = vpack.c.bf16 %v452, %v452
    %v469 = vpack.c.bf16 %v453, %v453
    %v470 = vpack.c.bf16 %v454, %v454
    %v471 = vpack.c.bf16 %v455, %v455
    %v472 = vpack.c.bf16 %v456, %v456
    %v473 = vpack.c.bf16 %v457, %v457
    %v474 = vpack.c.bf16 %v458, %v458
    %475 = vst [vmem:[%s3] sm:$0xf] %v459
    %476 = vst [vmem:[%s3 + $0x4] sm:$0xf] %v460
    %477 = vst [vmem:[%s3 + $0x8] sm:$0xf] %v461
    %478 = vst [vmem:[%s3 + $0xc] sm:$0xf] %v462
    %479 = vst [vmem:[%s3 + $0x10] sm:$0xf] %v463
    %480 = vst [vmem:[%s3 + $0x14] sm:$0xf] %v464
    %481 = vst [vmem:[%s3 + $0x18] sm:$0xf] %v465
    %482 = vst [vmem:[%s3 + $0x1c] sm:$0xf] %v466
    %483 = vst [vmem:[%s3 + $0x20] sm:$0xf] %v467
    %484 = vst [vmem:[%s3 + $0x24] sm:$0xf] %v468
    %485 = vst [vmem:[%s3 + $0x28] sm:$0xf] %v469
    %486 = vst [vmem:[%s3 + $0x2c] sm:$0xf] %v470
    %487 = vst [vmem:[%s3 + $0x30] sm:$0xf] %v471
    %488 = vst [vmem:[%s3 + $0x34] sm:$0xf] %v472
    %489 = vst [vmem:[%s3 + $0x38] sm:$0xf] %v473
    %490 = vst [vmem:[%s3 + $0x3c] sm:$0xf] %v474
  $region21: #{discrete_vae_forward.14} parent=0 // pred_fallthru
    _
  // Predicated region
  $region22: #{discrete_vae_forward.14} parent=0 // pred_check
    _
  $region23: #{discrete_vae_forward.14} parent=0 // pred_check_branch
    %492 = sbr.rel (0) target = $region25
  $region24: #{discrete_vae_forward.14} parent=0 // pred_region
    _
  $region25: #{discrete_vae_forward.14} parent=0 // pred_fallthru
    _
  // Predicated region
  $region26: #{discrete_vae_forward.14} parent=0 // pred_check
    _
  $region27: #{discrete_vae_forward.14} parent=0 // pred_check_branch
    %494 = sbr.rel (0) target = $region29
  $region28: #{discrete_vae_forward.14} parent=0 // pred_region
    _
  $region29: #{discrete_vae_forward.14} parent=0 // pred_fallthru
    _

// kernel: discrete_vae_forward.15
$region0: #{discrete_vae_forward.15}
  #allocation0 [shape = 'u32[]', space=smem, size = 0x4, offset = 0x4, fixed_abs, tag = 'smem constant byte address 0x4 - core index']
  #allocation1 [shape = 'u32[72,128]{1,0:T(1,128)}', space=vmem, size = 0x9000, scoped, tag = 'internal scratch']
  #allocation2 [shape = 'f32[128,128]{1,0:T(8,128)}', space=vmem, size = 0x10000, scoped, tag = 'scratch operand']
  %s0 = inlined_call_operand.vmem [shape: bf16[128,16], index: 0, kind: input, shape index: {}]
  %s1 = inlined_call_operand.vmem [shape: bf16[16,128], index: 1, kind: input, shape index: {}]
  %s2 = inlined_call_operand.vmem [shape: f32[1,128], index: 2, kind: input, shape index: {}]
  %s3 = inlined_call_operand.vmem [shape: f32[128,128], index: 3, kind: output, shape index: {}]
  %s4 = sld [smem:[#allocation0]]
  $region30: #{discrete_vae_forward.15} parent=0
    _
  %s6 = ssub.s32 1, %s4
  %s7 = scalar_select 0, %s6, %s4
  // Predicated region
  $region2: #{discrete_vae_forward.15} parent=0 // pred_check
    _
  $region3: #{discrete_vae_forward.15} parent=0 // pred_check_branch
    %9 = sbr.rel (0) target = $region5
  $region4: #{discrete_vae_forward.15} parent=0 // pred_region
    _
  $region5: #{discrete_vae_forward.15} parent=0 // pred_fallthru
    _
  // Predicated region
  $region6: #{discrete_vae_forward.15} parent=0 // pred_check
    _
  $region7: #{discrete_vae_forward.15} parent=0 // pred_check_branch
    %11 = sbr.rel (0) target = $region9
  $region8: #{discrete_vae_forward.15} parent=0 // pred_region
    _
  $region9: #{discrete_vae_forward.15} parent=0 // pred_fallthru
    _
  // Predicated region
  $region10: #{discrete_vae_forward.15} parent=0 // pred_check
    _
  $region11: #{discrete_vae_forward.15} parent=0 // pred_check_branch
    %13 = sbr.rel (0) target = $region13
  $region12: #{discrete_vae_forward.15} parent=0 // pred_region
    _
  $region13: #{discrete_vae_forward.15} parent=0 // pred_fallthru
    _
  %p15 = scmp.eq.s32.totalorder 0, 0
  // Predicated region
  $region14: #{discrete_vae_forward.15} parent=0 // pred_check
    %p16 = pneg %p15
  $region15: #{discrete_vae_forward.15} parent=0 // pred_check_branch
    %18 = sbr.rel (%p16) target = $region17
  $region16: #{discrete_vae_forward.15} parent=0 // pred_region
    %19 = vst [vmem:[#allocation2] sm:$0xff] 0.0
    %20 = vst [vmem:[#allocation2 + $0x8] sm:$0xff] 0.0
    %21 = vst [vmem:[#allocation2 + $0x10] sm:$0xff] 0.0
    %22 = vst [vmem:[#allocation2 + $0x18] sm:$0xff] 0.0
    %23 = vst [vmem:[#allocation2 + $0x20] sm:$0xff] 0.0
    %24 = vst [vmem:[#allocation2 + $0x28] sm:$0xff] 0.0
    %25 = vst [vmem:[#allocation2 + $0x30] sm:$0xff] 0.0
    %26 = vst [vmem:[#allocation2 + $0x38] sm:$0xff] 0.0
    %27 = vst [vmem:[#allocation2 + $0x40] sm:$0xff] 0.0
    %28 = vst [vmem:[#allocation2 + $0x48] sm:$0xff] 0.0
    %29 = vst [vmem:[#allocation2 + $0x50] sm:$0xff] 0.0
    %30 = vst [vmem:[#allocation2 + $0x58] sm:$0xff] 0.0
    %31 = vst [vmem:[#allocation2 + $0x60] sm:$0xff] 0.0
    %32 = vst [vmem:[#allocation2 + $0x68] sm:$0xff] 0.0
    %33 = vst [vmem:[#allocation2 + $0x70] sm:$0xff] 0.0
    %34 = vst [vmem:[#allocation2 + $0x78] sm:$0xff] 0.0
  $region17: #{discrete_vae_forward.15} parent=0 // pred_fallthru
    _
  %v35 = vld [vmem:[#allocation2] sm:$0xff]
  %v36 = vld [vmem:[#allocation2 + $0x8] sm:$0xff]
  %v37 = vld [vmem:[#allocation2 + $0x10] sm:$0xff]
  %v38 = vld [vmem:[#allocation2 + $0x18] sm:$0xff]
  %v39 = vld [vmem:[#allocation2 + $0x20] sm:$0xff]
  %v40 = vld [vmem:[#allocation2 + $0x28] sm:$0xff]
  %v41 = vld [vmem:[#allocation2 + $0x30] sm:$0xff]
  %v42 = vld [vmem:[#allocation2 + $0x38] sm:$0xff]
  %v43 = vld [vmem:[#allocation2 + $0x40] sm:$0xff]
  %v44 = vld [vmem:[#allocation2 + $0x48] sm:$0xff]
  %v45 = vld [vmem:[#allocation2 + $0x50] sm:$0xff]
  %v46 = vld [vmem:[#allocation2 + $0x58] sm:$0xff]
  %v47 = vld [vmem:[#allocation2 + $0x60] sm:$0xff]
  %v48 = vld [vmem:[#allocation2 + $0x68] sm:$0xff]
  %v49 = vld [vmem:[#allocation2 + $0x70] sm:$0xff]
  %v50 = vld [vmem:[#allocation2 + $0x78] sm:$0xff]
  %v51 = vld [vmem:[%s0] sm:$0xf]
  %v52 = vld [vmem:[%s0 + $0x4] sm:$0xf]
  %v53 = vld [vmem:[%s0 + $0x8] sm:$0xf]
  %v54 = vld [vmem:[%s0 + $0xc] sm:$0xf]
  %v55 = vld [vmem:[%s0 + $0x10] sm:$0xf]
  %v56 = vld [vmem:[%s0 + $0x14] sm:$0xf]
  %v57 = vld [vmem:[%s0 + $0x18] sm:$0xf]
  %v58 = vld [vmem:[%s0 + $0x1c] sm:$0xf]
  %v59 = vld [vmem:[%s0 + $0x20] sm:$0xf]
  %v60 = vld [vmem:[%s0 + $0x24] sm:$0xf]
  %v61 = vld [vmem:[%s0 + $0x28] sm:$0xf]
  %v62 = vld [vmem:[%s0 + $0x2c] sm:$0xf]
  %v63 = vld [vmem:[%s0 + $0x30] sm:$0xf]
  %v64 = vld [vmem:[%s0 + $0x34] sm:$0xf]
  %v65 = vld [vmem:[%s0 + $0x38] sm:$0xf]
  %v66 = vld [vmem:[%s0 + $0x3c] sm:$0xf]
  %v67 = vld [vmem:[%s1] sm:$0xf]
  %v68 = vld [vmem:[%s1 + $0x4] sm:$0xf]
  %v85 = vunpack.c.l.b16 %v51
  %v86 = vunpack.c.l.b16 %v52
  %v87 = vunpack.c.l.b16 %v53
  %v88 = vunpack.c.l.b16 %v54
  %v89 = vunpack.c.l.b16 %v55
  %v90 = vunpack.c.l.b16 %v56
  %v91 = vunpack.c.l.b16 %v57
  %v92 = vunpack.c.l.b16 %v58
  %v93 = vunpack.c.l.b16 %v59
  %v94 = vunpack.c.l.b16 %v60
  %v95 = vunpack.c.l.b16 %v61
  %v96 = vunpack.c.l.b16 %v62
  %v97 = vunpack.c.l.b16 %v63
  %v98 = vunpack.c.l.b16 %v64
  %v99 = vunpack.c.l.b16 %v65
  %v100 = vunpack.c.l.b16 %v66
  %v101 = vpack.c.b16 %v86, %v85
  %v102 = vpack.c.b16 %v88, %v87
  %v103 = vpack.c.b16 %v90, %v89
  %v104 = vpack.c.b16 %v92, %v91
  %v105 = vpack.c.b16 %v94, %v93
  %v106 = vpack.c.b16 %v96, %v95
  %v107 = vpack.c.b16 %v98, %v97
  %v108 = vpack.c.b16 %v100, %v99
  %v111 = vunpack.c.l.b16 %v67
  %v112 = vunpack.c.l.b16 %v68
  %v113 = vpack.c.b16 %v112, %v111
  %vm115 = vcmask 130048
  %v117 = vsel %vm115, %v101, 0
  %v120 = vsel %vm115, %v102, 0
  %v123 = vsel %vm115, %v103, 0
  %v126 = vsel %vm115, %v104, 0
  %v129 = vsel %vm115, %v105, 0
  %v132 = vsel %vm115, %v106, 0
  %v135 = vsel %vm115, %v107, 0
  %v138 = vsel %vm115, %v108, 0
  %140 = vmatpush.bf16.msra.mxu0 0
  %141 = vmatpush.bf16.msra.mxu0 0
  %142 = vmatpush.bf16.msra.mxu0 0
  %143 = vmatpush.bf16.msra.mxu0 0
  %144 = vmatpush.bf16.msra.mxu0 0
  %145 = vmatpush.bf16.msra.mxu0 0
  %146 = vmatpush.bf16.msra.mxu0 0
  %147 = vmatpush.bf16.msra.mxu0 %v113
  %148 = vmatmul.bf16.gmra.mxu0 %v117
  %v149 = vpop.f32.mrf.mxu0
  %v150 = vadd.f32 0.0, %v149
  %v151 = vpop.f32.mrf.mxu0
  %v152 = vadd.f32 0.0, %v151
  %153 = vmatmul.bf16.gmra.mxu0 %v120
  %v154 = vpop.f32.mrf.mxu0
  %v155 = vadd.f32 0.0, %v154
  %v156 = vpop.f32.mrf.mxu0
  %v157 = vadd.f32 0.0, %v156
  %158 = vmatmul.bf16.gmra.mxu0 %v123
  %v159 = vpop.f32.mrf.mxu0
  %v160 = vadd.f32 0.0, %v159
  %v161 = vpop.f32.mrf.mxu0
  %v162 = vadd.f32 0.0, %v161
  %163 = vmatmul.bf16.gmra.mxu0 %v126
  %v164 = vpop.f32.mrf.mxu0
  %v165 = vadd.f32 0.0, %v164
  %v166 = vpop.f32.mrf.mxu0
  %v167 = vadd.f32 0.0, %v166
  %168 = vmatmul.bf16.gmra.mxu0 %v129
  %v169 = vpop.f32.mrf.mxu0
  %v170 = vadd.f32 0.0, %v169
  %v171 = vpop.f32.mrf.mxu0
  %v172 = vadd.f32 0.0, %v171
  %173 = vmatmul.bf16.gmra.mxu0 %v132
  %v174 = vpop.f32.mrf.mxu0
  %v175 = vadd.f32 0.0, %v174
  %v176 = vpop.f32.mrf.mxu0
  %v177 = vadd.f32 0.0, %v176
  %178 = vmatmul.bf16.gmra.mxu0 %v135
  %v179 = vpop.f32.mrf.mxu0
  %v180 = vadd.f32 0.0, %v179
  %v181 = vpop.f32.mrf.mxu0
  %v182 = vadd.f32 0.0, %v181
  %183 = vmatmul.bf16.gmra.mxu0 %v138
  %v184 = vpop.f32.mrf.mxu0
  %v185 = vadd.f32 0.0, %v184
  %v186 = vpop.f32.mrf.mxu0
  %v187 = vadd.f32 0.0, %v186
  %188 = vdwg.mxu0
  %v189 = vadd.f32 %v35, %v150
  %v190 = vadd.f32 %v36, %v152
  %v191 = vadd.f32 %v37, %v155
  %v192 = vadd.f32 %v38, %v157
  %v193 = vadd.f32 %v39, %v160
  %v194 = vadd.f32 %v40, %v162
  %v195 = vadd.f32 %v41, %v165
  %v196 = vadd.f32 %v42, %v167
  %v197 = vadd.f32 %v43, %v170
  %v198 = vadd.f32 %v44, %v172
  %v199 = vadd.f32 %v45, %v175
  %v200 = vadd.f32 %v46, %v177
  %v201 = vadd.f32 %v47, %v180
  %v202 = vadd.f32 %v48, %v182
  %v203 = vadd.f32 %v49, %v185
  %v204 = vadd.f32 %v50, %v187
  %205 = vst [vmem:[#allocation2] sm:$0xff] %v189
  %206 = vst [vmem:[#allocation2 + $0x8] sm:$0xff] %v190
  %207 = vst [vmem:[#allocation2 + $0x10] sm:$0xff] %v191
  %208 = vst [vmem:[#allocation2 + $0x18] sm:$0xff] %v192
  %209 = vst [vmem:[#allocation2 + $0x20] sm:$0xff] %v193
  %210 = vst [vmem:[#allocation2 + $0x28] sm:$0xff] %v194
  %211 = vst [vmem:[#allocation2 + $0x30] sm:$0xff] %v195
  %212 = vst [vmem:[#allocation2 + $0x38] sm:$0xff] %v196
  %213 = vst [vmem:[#allocation2 + $0x40] sm:$0xff] %v197
  %214 = vst [vmem:[#allocation2 + $0x48] sm:$0xff] %v198
  %215 = vst [vmem:[#allocation2 + $0x50] sm:$0xff] %v199
  %216 = vst [vmem:[#allocation2 + $0x58] sm:$0xff] %v200
  %217 = vst [vmem:[#allocation2 + $0x60] sm:$0xff] %v201
  %218 = vst [vmem:[#allocation2 + $0x68] sm:$0xff] %v202
  %219 = vst [vmem:[#allocation2 + $0x70] sm:$0xff] %v203
  %220 = vst [vmem:[#allocation2 + $0x78] sm:$0xff] %v204
  // Predicated region
  $region18: #{discrete_vae_forward.15} parent=0 // pred_check
    %p221 = pneg %p15
  $region19: #{discrete_vae_forward.15} parent=0 // pred_check_branch
    %223 = sbr.rel (%p221) target = $region21
  $region20: #{discrete_vae_forward.15} parent=0 // pred_region
    %v224 = vld [vmem:[#allocation2] sm:$0xff]
    %v225 = vld [vmem:[#allocation2 + $0x8] sm:$0xff]
    %v226 = vld [vmem:[#allocation2 + $0x10] sm:$0xff]
    %v227 = vld [vmem:[#allocation2 + $0x18] sm:$0xff]
    %v228 = vld [vmem:[#allocation2 + $0x20] sm:$0xff]
    %v229 = vld [vmem:[#allocation2 + $0x28] sm:$0xff]
    %v230 = vld [vmem:[#allocation2 + $0x30] sm:$0xff]
    %v231 = vld [vmem:[#allocation2 + $0x38] sm:$0xff]
    %v232 = vld [vmem:[#allocation2 + $0x40] sm:$0xff]
    %v233 = vld [vmem:[#allocation2 + $0x48] sm:$0xff]
    %v234 = vld [vmem:[#allocation2 + $0x50] sm:$0xff]
    %v235 = vld [vmem:[#allocation2 + $0x58] sm:$0xff]
    %v236 = vld [vmem:[#allocation2 + $0x60] sm:$0xff]
    %v237 = vld [vmem:[#allocation2 + $0x68] sm:$0xff]
    %v238 = vld [vmem:[#allocation2 + $0x70] sm:$0xff]
    %v239 = vld [vmem:[#allocation2 + $0x78] sm:$0xff]
    %v240 = vld [vmem:[%s2] sm:$0x1]
    %v242 = vperm.slane %v240, 0
    %v244 = vadd.f32 %v224, %v242
    %v245 = vadd.f32 %v225, %v242
    %v246 = vadd.f32 %v226, %v242
    %v247 = vadd.f32 %v227, %v242
    %v248 = vadd.f32 %v228, %v242
    %v249 = vadd.f32 %v229, %v242
    %v250 = vadd.f32 %v230, %v242
    %v251 = vadd.f32 %v231, %v242
    %v252 = vadd.f32 %v232, %v242
    %v253 = vadd.f32 %v233, %v242
    %v254 = vadd.f32 %v234, %v242
    %v255 = vadd.f32 %v235, %v242
    %v256 = vadd.f32 %v236, %v242
    %v257 = vadd.f32 %v237, %v242
    %v258 = vadd.f32 %v238, %v242
    %v259 = vadd.f32 %v239, %v242
    %260 = vst [vmem:[%s3] sm:$0xff] %v244
    %261 = vst [vmem:[%s3 + $0x8] sm:$0xff] %v245
    %262 = vst [vmem:[%s3 + $0x10] sm:$0xff] %v246
    %263 = vst [vmem:[%s3 + $0x18] sm:$0xff] %v247
    %264 = vst [vmem:[%s3 + $0x20] sm:$0xff] %v248
    %265 = vst [vmem:[%s3 + $0x28] sm:$0xff] %v249
    %266 = vst [vmem:[%s3 + $0x30] sm:$0xff] %v250
    %267 = vst [vmem:[%s3 + $0x38] sm:$0xff] %v251
    %268 = vst [vmem:[%s3 + $0x40] sm:$0xff] %v252
    %269 = vst [vmem:[%s3 + $0x48] sm:$0xff] %v253
    %270 = vst [vmem:[%s3 + $0x50] sm:$0xff] %v254
    %271 = vst [vmem:[%s3 + $0x58] sm:$0xff] %v255
    %272 = vst [vmem:[%s3 + $0x60] sm:$0xff] %v256
    %273 = vst [vmem:[%s3 + $0x68] sm:$0xff] %v257
    %274 = vst [vmem:[%s3 + $0x70] sm:$0xff] %v258
    %275 = vst [vmem:[%s3 + $0x78] sm:$0xff] %v259
  $region21: #{discrete_vae_forward.15} parent=0 // pred_fallthru
    _
  // Predicated region
  $region22: #{discrete_vae_forward.15} parent=0 // pred_check
    _
  $region23: #{discrete_vae_forward.15} parent=0 // pred_check_branch
    %277 = sbr.rel (0) target = $region25
  $region24: #{discrete_vae_forward.15} parent=0 // pred_region
    _
  $region25: #{discrete_vae_forward.15} parent=0 // pred_fallthru
    _
  // Predicated region
  $region26: #{discrete_vae_forward.15} parent=0 // pred_check
    _
  $region27: #{discrete_vae_forward.15} parent=0 // pred_check_branch
    %279 = sbr.rel (0) target = $region29
  $region28: #{discrete_vae_forward.15} parent=0 // pred_region
    _
  $region29: #{discrete_vae_forward.15} parent=0 // pred_fallthru
    _

// kernel: discrete_vae_forward.16
$region0: #{discrete_vae_forward.16}
  #allocation0 [shape = 'u32[]', space=smem, size = 0x4, offset = 0x4, fixed_abs, tag = 'smem constant byte address 0x4 - core index']
  #allocation1 [shape = 'u32[72,128]{1,0:T(1,128)}', space=vmem, size = 0x9000, scoped, tag = 'internal scratch']
  %s0 = inlined_call_operand.vmem [shape: f32[128,64], index: 0, kind: input, shape index: {}]
  %s1 = inlined_call_operand.vmem [shape: f32[128,64], index: 1, kind: input, shape index: {}]
  %s2 = inlined_call_operand.vmem [shape: bf16[64,128], index: 2, kind: input, shape index: {}]
  %s3 = inlined_call_operand.vmem [shape: bf16[128,128], index: 3, kind: output, shape index: {}]
  %s4 = sld [smem:[#allocation0]]
  $region22: #{discrete_vae_forward.16} parent=0
    _
  %s6 = ssub.s32 1, %s4
  %s7 = scalar_select 0, %s6, %s4
  // Predicated region
  $region2: #{discrete_vae_forward.16} parent=0 // pred_check
    _
  $region3: #{discrete_vae_forward.16} parent=0 // pred_check_branch
    %9 = sbr.rel (0) target = $region5
  $region4: #{discrete_vae_forward.16} parent=0 // pred_region
    _
  $region5: #{discrete_vae_forward.16} parent=0 // pred_fallthru
    _
  // Predicated region
  $region6: #{discrete_vae_forward.16} parent=0 // pred_check
    _
  $region7: #{discrete_vae_forward.16} parent=0 // pred_check_branch
    %11 = sbr.rel (0) target = $region9
  $region8: #{discrete_vae_forward.16} parent=0 // pred_region
    _
  $region9: #{discrete_vae_forward.16} parent=0 // pred_fallthru
    _
  // Predicated region
  $region10: #{discrete_vae_forward.16} parent=0 // pred_check
    _
  $region11: #{discrete_vae_forward.16} parent=0 // pred_check_branch
    %13 = sbr.rel (0) target = $region13
  $region12: #{discrete_vae_forward.16} parent=0 // pred_region
    _
  $region13: #{discrete_vae_forward.16} parent=0 // pred_fallthru
    _
  %v15 = vld [vmem:[%s0] sm:$0xff]
  %v16 = vld [vmem:[%s0 + $0x8] sm:$0xff]
  %v17 = vld [vmem:[%s0 + $0x10] sm:$0xff]
  %v18 = vld [vmem:[%s0 + $0x18] sm:$0xff]
  %v19 = vld [vmem:[%s0 + $0x20] sm:$0xff]
  %v20 = vld [vmem:[%s0 + $0x28] sm:$0xff]
  %v21 = vld [vmem:[%s0 + $0x30] sm:$0xff]
  %v22 = vld [vmem:[%s0 + $0x38] sm:$0xff]
  %v23 = vld [vmem:[%s0 + $0x40] sm:$0xff]
  %v24 = vld [vmem:[%s0 + $0x48] sm:$0xff]
  %v25 = vld [vmem:[%s0 + $0x50] sm:$0xff]
  %v26 = vld [vmem:[%s0 + $0x58] sm:$0xff]
  %v27 = vld [vmem:[%s0 + $0x60] sm:$0xff]
  %v28 = vld [vmem:[%s0 + $0x68] sm:$0xff]
  %v29 = vld [vmem:[%s0 + $0x70] sm:$0xff]
  %v30 = vld [vmem:[%s0 + $0x78] sm:$0xff]
  %v31 = vld [vmem:[%s1] sm:$0xff]
  %v32 = vld [vmem:[%s1 + $0x8] sm:$0xff]
  %v33 = vld [vmem:[%s1 + $0x10] sm:$0xff]
  %v34 = vld [vmem:[%s1 + $0x18] sm:$0xff]
  %v35 = vld [vmem:[%s1 + $0x20] sm:$0xff]
  %v36 = vld [vmem:[%s1 + $0x28] sm:$0xff]
  %v37 = vld [vmem:[%s1 + $0x30] sm:$0xff]
  %v38 = vld [vmem:[%s1 + $0x38] sm:$0xff]
  %v39 = vld [vmem:[%s1 + $0x40] sm:$0xff]
  %v40 = vld [vmem:[%s1 + $0x48] sm:$0xff]
  %v41 = vld [vmem:[%s1 + $0x50] sm:$0xff]
  %v42 = vld [vmem:[%s1 + $0x58] sm:$0xff]
  %v43 = vld [vmem:[%s1 + $0x60] sm:$0xff]
  %v44 = vld [vmem:[%s1 + $0x68] sm:$0xff]
  %v45 = vld [vmem:[%s1 + $0x70] sm:$0xff]
  %v46 = vld [vmem:[%s1 + $0x78] sm:$0xff]
  %v47 = vadd.f32 %v15, %v31
  %v48 = vadd.f32 %v16, %v32
  %v49 = vadd.f32 %v17, %v33
  %v50 = vadd.f32 %v18, %v34
  %v51 = vadd.f32 %v19, %v35
  %v52 = vadd.f32 %v20, %v36
  %v53 = vadd.f32 %v21, %v37
  %v54 = vadd.f32 %v22, %v38
  %v55 = vadd.f32 %v23, %v39
  %v56 = vadd.f32 %v24, %v40
  %v57 = vadd.f32 %v25, %v41
  %v58 = vadd.f32 %v26, %v42
  %v59 = vadd.f32 %v27, %v43
  %v60 = vadd.f32 %v28, %v44
  %v61 = vadd.f32 %v29, %v45
  %v62 = vadd.f32 %v30, %v46
  %v63 = vmul.f32 %v47, 1.1111112
  %v64 = vmul.f32 %v48, 1.1111112
  %v65 = vmul.f32 %v49, 1.1111112
  %v66 = vmul.f32 %v50, 1.1111112
  %v67 = vmul.f32 %v51, 1.1111112
  %v68 = vmul.f32 %v52, 1.1111112
  %v69 = vmul.f32 %v53, 1.1111112
  %v70 = vmul.f32 %v54, 1.1111112
  %v71 = vmul.f32 %v55, 1.1111112
  %v72 = vmul.f32 %v56, 1.1111112
  %v73 = vmul.f32 %v57, 1.1111112
  %v74 = vmul.f32 %v58, 1.1111112
  %v75 = vmul.f32 %v59, 1.1111112
  %v76 = vmul.f32 %v60, 1.1111112
  %v77 = vmul.f32 %v61, 1.1111112
  %v78 = vmul.f32 %v62, 1.1111112
  %vm79 = vcmask 523264
  %v80 = vsel %vm79, %v63, -inf
  %81 = vmax.xlane.f32.xlu0 %v80
  %v82 = vpop.xlane.xlu0 %81
  %v83 = vsel %vm79, %v64, -inf
  %84 = vmax.xlane.f32.xlu0 %v83
  %v85 = vpop.xlane.xlu0 %84
  %v86 = vsel %vm79, %v65, -inf
  %87 = vmax.xlane.f32.xlu0 %v86
  %v88 = vpop.xlane.xlu0 %87
  %v89 = vsel %vm79, %v66, -inf
  %90 = vmax.xlane.f32.xlu0 %v89
  %v91 = vpop.xlane.xlu0 %90
  %v92 = vsel %vm79, %v67, -inf
  %93 = vmax.xlane.f32.xlu0 %v92
  %v94 = vpop.xlane.xlu0 %93
  %v95 = vsel %vm79, %v68, -inf
  %96 = vmax.xlane.f32.xlu0 %v95
  %v97 = vpop.xlane.xlu0 %96
  %v98 = vsel %vm79, %v69, -inf
  %99 = vmax.xlane.f32.xlu0 %v98
  %v100 = vpop.xlane.xlu0 %99
  %v101 = vsel %vm79, %v70, -inf
  %102 = vmax.xlane.f32.xlu0 %v101
  %v103 = vpop.xlane.xlu0 %102
  %v104 = vsel %vm79, %v71, -inf
  %105 = vmax.xlane.f32.xlu0 %v104
  %v106 = vpop.xlane.xlu0 %105
  %v107 = vsel %vm79, %v72, -inf
  %108 = vmax.xlane.f32.xlu0 %v107
  %v109 = vpop.xlane.xlu0 %108
  %v110 = vsel %vm79, %v73, -inf
  %111 = vmax.xlane.f32.xlu0 %v110
  %v112 = vpop.xlane.xlu0 %111
  %v113 = vsel %vm79, %v74, -inf
  %114 = vmax.xlane.f32.xlu0 %v113
  %v115 = vpop.xlane.xlu0 %114
  %v116 = vsel %vm79, %v75, -inf
  %117 = vmax.xlane.f32.xlu0 %v116
  %v118 = vpop.xlane.xlu0 %117
  %v119 = vsel %vm79, %v76, -inf
  %120 = vmax.xlane.f32.xlu0 %v119
  %v121 = vpop.xlane.xlu0 %120
  %v122 = vsel %vm79, %v77, -inf
  %123 = vmax.xlane.f32.xlu0 %v122
  %v124 = vpop.xlane.xlu0 %123
  %v125 = vsel %vm79, %v78, -inf
  %126 = vmax.xlane.f32.xlu0 %v125
  %v127 = vpop.xlane.xlu0 %126
  %v128 = vsub.f32 %v63, %v82
  %v129 = vsub.f32 %v64, %v85
  %v130 = vsub.f32 %v65, %v88
  %v131 = vsub.f32 %v66, %v91
  %v132 = vsub.f32 %v67, %v94
  %v133 = vsub.f32 %v68, %v97
  %v134 = vsub.f32 %v69, %v100
  %v135 = vsub.f32 %v70, %v103
  %v136 = vsub.f32 %v71, %v106
  %v137 = vsub.f32 %v72, %v109
  %v138 = vsub.f32 %v73, %v112
  %v139 = vsub.f32 %v74, %v115
  %v140 = vsub.f32 %v75, %v118
  %v141 = vsub.f32 %v76, %v121
  %v142 = vsub.f32 %v77, %v124
  %v143 = vsub.f32 %v78, %v127
  %v144 = vmul.f32 %v128, 1.442695
  %v145 = vpow.pop %v144
  %v146 = vmul.f32 %v129, 1.442695
  %v147 = vpow.pop %v146
  %v148 = vmul.f32 %v130, 1.442695
  %v149 = vpow.pop %v148
  %v150 = vmul.f32 %v131, 1.442695
  %v151 = vpow.pop %v150
  %v152 = vmul.f32 %v132, 1.442695
  %v153 = vpow.pop %v152
  %v154 = vmul.f32 %v133, 1.442695
  %v155 = vpow.pop %v154
  %v156 = vmul.f32 %v134, 1.442695
  %v157 = vpow.pop %v156
  %v158 = vmul.f32 %v135, 1.442695
  %v159 = vpow.pop %v158
  %v160 = vmul.f32 %v136, 1.442695
  %v161 = vpow.pop %v160
  %v162 = vmul.f32 %v137, 1.442695
  %v163 = vpow.pop %v162
  %v164 = vmul.f32 %v138, 1.442695
  %v165 = vpow.pop %v164
  %v166 = vmul.f32 %v139, 1.442695
  %v167 = vpow.pop %v166
  %v168 = vmul.f32 %v140, 1.442695
  %v169 = vpow.pop %v168
  %v170 = vmul.f32 %v141, 1.442695
  %v171 = vpow.pop %v170
  %v172 = vmul.f32 %v142, 1.442695
  %v173 = vpow.pop %v172
  %v174 = vmul.f32 %v143, 1.442695
  %v175 = vpow.pop %v174
  %v176 = vsel %vm79, %v145, 0.0
  %177 = vadd.xlane.f32.xlu0 %v176
  %v178 = vpop.xlane.xlu0 %177
  %v179 = vsel %vm79, %v147, 0.0
  %180 = vadd.xlane.f32.xlu0 %v179
  %v181 = vpop.xlane.xlu0 %180
  %v182 = vsel %vm79, %v149, 0.0
  %183 = vadd.xlane.f32.xlu0 %v182
  %v184 = vpop.xlane.xlu0 %183
  %v185 = vsel %vm79, %v151, 0.0
  %186 = vadd.xlane.f32.xlu0 %v185
  %v187 = vpop.xlane.xlu0 %186
  %v188 = vsel %vm79, %v153, 0.0
  %189 = vadd.xlane.f32.xlu0 %v188
  %v190 = vpop.xlane.xlu0 %189
  %v191 = vsel %vm79, %v155, 0.0
  %192 = vadd.xlane.f32.xlu0 %v191
  %v193 = vpop.xlane.xlu0 %192
  %v194 = vsel %vm79, %v157, 0.0
  %195 = vadd.xlane.f32.xlu0 %v194
  %v196 = vpop.xlane.xlu0 %195
  %v197 = vsel %vm79, %v159, 0.0
  %198 = vadd.xlane.f32.xlu0 %v197
  %v199 = vpop.xlane.xlu0 %198
  %v200 = vsel %vm79, %v161, 0.0
  %201 = vadd.xlane.f32.xlu0 %v200
  %v202 = vpop.xlane.xlu0 %201
  %v203 = vsel %vm79, %v163, 0.0
  %204 = vadd.xlane.f32.xlu0 %v203
  %v205 = vpop.xlane.xlu0 %204
  %v206 = vsel %vm79, %v165, 0.0
  %207 = vadd.xlane.f32.xlu0 %v206
  %v208 = vpop.xlane.xlu0 %207
  %v209 = vsel %vm79, %v167, 0.0
  %210 = vadd.xlane.f32.xlu0 %v209
  %v211 = vpop.xlane.xlu0 %210
  %v212 = vsel %vm79, %v169, 0.0
  %213 = vadd.xlane.f32.xlu0 %v212
  %v214 = vpop.xlane.xlu0 %213
  %v215 = vsel %vm79, %v171, 0.0
  %216 = vadd.xlane.f32.xlu0 %v215
  %v217 = vpop.xlane.xlu0 %216
  %v218 = vsel %vm79, %v173, 0.0
  %219 = vadd.xlane.f32.xlu0 %v218
  %v220 = vpop.xlane.xlu0 %219
  %v221 = vsel %vm79, %v175, 0.0
  %222 = vadd.xlane.f32.xlu0 %v221
  %v223 = vpop.xlane.xlu0 %222
  %v224 = vpack.c.bf16 %v147, %v145
  %v225 = vpack.c.bf16 %v151, %v149
  %v226 = vpack.c.bf16 %v155, %v153
  %v227 = vpack.c.bf16 %v159, %v157
  %v228 = vpack.c.bf16 %v163, %v161
  %v229 = vpack.c.bf16 %v167, %v165
  %v230 = vpack.c.bf16 %v171, %v169
  %v231 = vpack.c.bf16 %v175, %v173
  %v232 = vld [vmem:[%s2] sm:$0xf]
  %v233 = vld [vmem:[%s2 + $0x4] sm:$0xf]
  %v234 = vld [vmem:[%s2 + $0x8] sm:$0xf]
  %v235 = vld [vmem:[%s2 + $0xc] sm:$0xf]
  %v236 = vld [vmem:[%s2 + $0x10] sm:$0xf]
  %v237 = vld [vmem:[%s2 + $0x14] sm:$0xf]
  %v238 = vld [vmem:[%s2 + $0x18] sm:$0xf]
  %v239 = vld [vmem:[%s2 + $0x1c] sm:$0xf]
  %v248 = vunpack.c.l.b16 %v232
  %v249 = vunpack.c.l.b16 %v233
  %v250 = vunpack.c.l.b16 %v234
  %v251 = vunpack.c.l.b16 %v235
  %v252 = vunpack.c.l.b16 %v236
  %v253 = vunpack.c.l.b16 %v237
  %v254 = vunpack.c.l.b16 %v238
  %v255 = vunpack.c.l.b16 %v239
  %v256 = vpack.c.b16 %v249, %v248
  %v257 = vpack.c.b16 %v251, %v250
  %v258 = vpack.c.b16 %v253, %v252
  %v259 = vpack.c.b16 %v255, %v254
  %v265 = vsel %vm79, %v224, 0
  %v268 = vsel %vm79, %v225, 0
  %v271 = vsel %vm79, %v226, 0
  %v274 = vsel %vm79, %v227, 0
  %v277 = vsel %vm79, %v228, 0
  %v280 = vsel %vm79, %v229, 0
  %v283 = vsel %vm79, %v230, 0
  %v286 = vsel %vm79, %v231, 0
  %288 = vmatpush.bf16.msra.mxu0 0
  %289 = vmatpush.bf16.msra.mxu0 0
  %290 = vmatpush.bf16.msra.mxu0 0
  %291 = vmatpush.bf16.msra.mxu0 0
  %292 = vmatpush.bf16.msra.mxu0 %v259
  %293 = vmatpush.bf16.msra.mxu0 %v258
  %294 = vmatpush.bf16.msra.mxu0 %v257
  %295 = vmatpush.bf16.msra.mxu0 %v256
  %296 = vmatmul.bf16.gmra.mxu0 %v265
  %v297 = vpop.f32.mrf.mxu0
  %v298 = vadd.f32 0.0, %v297
  %v299 = vpop.f32.mrf.mxu0
  %v300 = vadd.f32 0.0, %v299
  %301 = vmatmul.bf16.gmra.mxu0 %v268
  %v302 = vpop.f32.mrf.mxu0
  %v303 = vadd.f32 0.0, %v302
  %v304 = vpop.f32.mrf.mxu0
  %v305 = vadd.f32 0.0, %v304
  %306 = vmatmul.bf16.gmra.mxu0 %v271
  %v307 = vpop.f32.mrf.mxu0
  %v308 = vadd.f32 0.0, %v307
  %v309 = vpop.f32.mrf.mxu0
  %v310 = vadd.f32 0.0, %v309
  %311 = vmatmul.bf16.gmra.mxu0 %v274
  %v312 = vpop.f32.mrf.mxu0
  %v313 = vadd.f32 0.0, %v312
  %v314 = vpop.f32.mrf.mxu0
  %v315 = vadd.f32 0.0, %v314
  %316 = vmatmul.bf16.gmra.mxu0 %v277
  %v317 = vpop.f32.mrf.mxu0
  %v318 = vadd.f32 0.0, %v317
  %v319 = vpop.f32.mrf.mxu0
  %v320 = vadd.f32 0.0, %v319
  %321 = vmatmul.bf16.gmra.mxu0 %v280
  %v322 = vpop.f32.mrf.mxu0
  %v323 = vadd.f32 0.0, %v322
  %v324 = vpop.f32.mrf.mxu0
  %v325 = vadd.f32 0.0, %v324
  %326 = vmatmul.bf16.gmra.mxu0 %v283
  %v327 = vpop.f32.mrf.mxu0
  %v328 = vadd.f32 0.0, %v327
  %v329 = vpop.f32.mrf.mxu0
  %v330 = vadd.f32 0.0, %v329
  %331 = vmatmul.bf16.gmra.mxu0 %v286
  %v332 = vpop.f32.mrf.mxu0
  %v333 = vadd.f32 0.0, %v332
  %v334 = vpop.f32.mrf.mxu0
  %v335 = vadd.f32 0.0, %v334
  %336 = vdwg.mxu0
  %v337 = vrcp.pop %v178
  %v338 = vrcp.pop %v181
  %v339 = vrcp.pop %v184
  %v340 = vrcp.pop %v187
  %v341 = vrcp.pop %v190
  %v342 = vrcp.pop %v193
  %v343 = vrcp.pop %v196
  %v344 = vrcp.pop %v199
  %v345 = vrcp.pop %v202
  %v346 = vrcp.pop %v205
  %v347 = vrcp.pop %v208
  %v348 = vrcp.pop %v211
  %v349 = vrcp.pop %v214
  %v350 = vrcp.pop %v217
  %v351 = vrcp.pop %v220
  %v352 = vrcp.pop %v223
  %v353 = vmul.f32 %v298, %v337
  %v354 = vmul.f32 %v300, %v338
  %v355 = vmul.f32 %v303, %v339
  %v356 = vmul.f32 %v305, %v340
  %v357 = vmul.f32 %v308, %v341
  %v358 = vmul.f32 %v310, %v342
  %v359 = vmul.f32 %v313, %v343
  %v360 = vmul.f32 %v315, %v344
  %v361 = vmul.f32 %v318, %v345
  %v362 = vmul.f32 %v320, %v346
  %v363 = vmul.f32 %v323, %v347
  %v364 = vmul.f32 %v325, %v348
  %v365 = vmul.f32 %v328, %v349
  %v366 = vmul.f32 %v330, %v350
  %v367 = vmul.f32 %v333, %v351
  %v368 = vmul.f32 %v335, %v352
  %v369 = vpack.c.bf16 %v353, %v353
  %v370 = vpack.c.bf16 %v354, %v354
  %v371 = vpack.c.bf16 %v355, %v355
  %v372 = vpack.c.bf16 %v356, %v356
  %v373 = vpack.c.bf16 %v357, %v357
  %v374 = vpack.c.bf16 %v358, %v358
  %v375 = vpack.c.bf16 %v359, %v359
  %v376 = vpack.c.bf16 %v360, %v360
  %v377 = vpack.c.bf16 %v361, %v361
  %v378 = vpack.c.bf16 %v362, %v362
  %v379 = vpack.c.bf16 %v363, %v363
  %v380 = vpack.c.bf16 %v364, %v364
  %v381 = vpack.c.bf16 %v365, %v365
  %v382 = vpack.c.bf16 %v366, %v366
  %v383 = vpack.c.bf16 %v367, %v367
  %v384 = vpack.c.bf16 %v368, %v368
  %385 = vst [vmem:[%s3] sm:$0xf] %v369
  %386 = vst [vmem:[%s3 + $0x4] sm:$0xf] %v370
  %387 = vst [vmem:[%s3 + $0x8] sm:$0xf] %v371
  %388 = vst [vmem:[%s3 + $0xc] sm:$0xf] %v372
  %389 = vst [vmem:[%s3 + $0x10] sm:$0xf] %v373
  %390 = vst [vmem:[%s3 + $0x14] sm:$0xf] %v374
  %391 = vst [vmem:[%s3 + $0x18] sm:$0xf] %v375
  %392 = vst [vmem:[%s3 + $0x1c] sm:$0xf] %v376
  %393 = vst [vmem:[%s3 + $0x20] sm:$0xf] %v377
  %394 = vst [vmem:[%s3 + $0x24] sm:$0xf] %v378
  %395 = vst [vmem:[%s3 + $0x28] sm:$0xf] %v379
  %396 = vst [vmem:[%s3 + $0x2c] sm:$0xf] %v380
  %397 = vst [vmem:[%s3 + $0x30] sm:$0xf] %v381
  %398 = vst [vmem:[%s3 + $0x34] sm:$0xf] %v382
  %399 = vst [vmem:[%s3 + $0x38] sm:$0xf] %v383
  %400 = vst [vmem:[%s3 + $0x3c] sm:$0xf] %v384
  // Predicated region
  $region14: #{discrete_vae_forward.16} parent=0 // pred_check
    _
  $region15: #{discrete_vae_forward.16} parent=0 // pred_check_branch
    %402 = sbr.rel (0) target = $region17
  $region16: #{discrete_vae_forward.16} parent=0 // pred_region
    _
  $region17: #{discrete_vae_forward.16} parent=0 // pred_fallthru
    _
  // Predicated region
  $region18: #{discrete_vae_forward.16} parent=0 // pred_check
    _
  $region19: #{discrete_vae_forward.16} parent=0 // pred_check_branch
    %404 = sbr.rel (0) target = $region21
  $region20: #{discrete_vae_forward.16} parent=0 // pred_region
    _
  $region21: #{discrete_vae_forward.16} parent=0 // pred_fallthru
    _

// kernel: discrete_vae_forward.17
$region0: #{discrete_vae_forward.17}
  #allocation0 [shape = 'u32[]', space=smem, size = 0x4, offset = 0x4, fixed_abs, tag = 'smem constant byte address 0x4 - core index']
  #allocation1 [shape = 'u32[72,128]{1,0:T(1,128)}', space=vmem, size = 0x9000, scoped, tag = 'internal scratch']
  #allocation2 [shape = 'f32[128,128]{1,0:T(8,128)}', space=vmem, size = 0x10000, scoped, tag = 'scratch operand']
  %s0 = inlined_call_operand.vmem [shape: bf16[128,128], index: 0, kind: input, shape index: {}]
  %s1 = inlined_call_operand.vmem [shape: bf16[128,128], index: 1, kind: input, shape index: {}]
  %s2 = inlined_call_operand.vmem [shape: f32[1,128], index: 2, kind: input, shape index: {}]
  %s3 = inlined_call_operand.vmem [shape: bf16[128,128], index: 3, kind: output, shape index: {}]
  %s4 = sld [smem:[#allocation0]]
  $region30: #{discrete_vae_forward.17} parent=0
    _
  %s6 = ssub.s32 1, %s4
  %s7 = scalar_select 0, %s6, %s4
  // Predicated region
  $region2: #{discrete_vae_forward.17} parent=0 // pred_check
    _
  $region3: #{discrete_vae_forward.17} parent=0 // pred_check_branch
    %9 = sbr.rel (0) target = $region5
  $region4: #{discrete_vae_forward.17} parent=0 // pred_region
    _
  $region5: #{discrete_vae_forward.17} parent=0 // pred_fallthru
    _
  // Predicated region
  $region6: #{discrete_vae_forward.17} parent=0 // pred_check
    _
  $region7: #{discrete_vae_forward.17} parent=0 // pred_check_branch
    %11 = sbr.rel (0) target = $region9
  $region8: #{discrete_vae_forward.17} parent=0 // pred_region
    _
  $region9: #{discrete_vae_forward.17} parent=0 // pred_fallthru
    _
  // Predicated region
  $region10: #{discrete_vae_forward.17} parent=0 // pred_check
    _
  $region11: #{discrete_vae_forward.17} parent=0 // pred_check_branch
    %13 = sbr.rel (0) target = $region13
  $region12: #{discrete_vae_forward.17} parent=0 // pred_region
    _
  $region13: #{discrete_vae_forward.17} parent=0 // pred_fallthru
    _
  %p14 = scmp.eq.s32.totalorder 0, 0
  // Predicated region
  $region14: #{discrete_vae_forward.17} parent=0 // pred_check
    %p15 = pneg %p14
  $region15: #{discrete_vae_forward.17} parent=0 // pred_check_branch
    %17 = sbr.rel (%p15) target = $region17
  $region16: #{discrete_vae_forward.17} parent=0 // pred_region
    %18 = vst [vmem:[#allocation2] sm:$0xff] 0.0
    %19 = vst [vmem:[#allocation2 + $0x8] sm:$0xff] 0.0
    %20 = vst [vmem:[#allocation2 + $0x10] sm:$0xff] 0.0
    %21 = vst [vmem:[#allocation2 + $0x18] sm:$0xff] 0.0
    %22 = vst [vmem:[#allocation2 + $0x20] sm:$0xff] 0.0
    %23 = vst [vmem:[#allocation2 + $0x28] sm:$0xff] 0.0
    %24 = vst [vmem:[#allocation2 + $0x30] sm:$0xff] 0.0
    %25 = vst [vmem:[#allocation2 + $0x38] sm:$0xff] 0.0
    %26 = vst [vmem:[#allocation2 + $0x40] sm:$0xff] 0.0
    %27 = vst [vmem:[#allocation2 + $0x48] sm:$0xff] 0.0
    %28 = vst [vmem:[#allocation2 + $0x50] sm:$0xff] 0.0
    %29 = vst [vmem:[#allocation2 + $0x58] sm:$0xff] 0.0
    %30 = vst [vmem:[#allocation2 + $0x60] sm:$0xff] 0.0
    %31 = vst [vmem:[#allocation2 + $0x68] sm:$0xff] 0.0
    %32 = vst [vmem:[#allocation2 + $0x70] sm:$0xff] 0.0
    %33 = vst [vmem:[#allocation2 + $0x78] sm:$0xff] 0.0
  $region17: #{discrete_vae_forward.17} parent=0 // pred_fallthru
    _
  %v34 = vld [vmem:[#allocation2] sm:$0xff]
  %v35 = vld [vmem:[#allocation2 + $0x8] sm:$0xff]
  %v36 = vld [vmem:[#allocation2 + $0x10] sm:$0xff]
  %v37 = vld [vmem:[#allocation2 + $0x18] sm:$0xff]
  %v38 = vld [vmem:[#allocation2 + $0x20] sm:$0xff]
  %v39 = vld [vmem:[#allocation2 + $0x28] sm:$0xff]
  %v40 = vld [vmem:[#allocation2 + $0x30] sm:$0xff]
  %v41 = vld [vmem:[#allocation2 + $0x38] sm:$0xff]
  %v42 = vld [vmem:[#allocation2 + $0x40] sm:$0xff]
  %v43 = vld [vmem:[#allocation2 + $0x48] sm:$0xff]
  %v44 = vld [vmem:[#allocation2 + $0x50] sm:$0xff]
  %v45 = vld [vmem:[#allocation2 + $0x58] sm:$0xff]
  %v46 = vld [vmem:[#allocation2 + $0x60] sm:$0xff]
  %v47 = vld [vmem:[#allocation2 + $0x68] sm:$0xff]
  %v48 = vld [vmem:[#allocation2 + $0x70] sm:$0xff]
  %v49 = vld [vmem:[#allocation2 + $0x78] sm:$0xff]
  %v50 = vld [vmem:[%s0] sm:$0xf]
  %v51 = vld [vmem:[%s0 + $0x4] sm:$0xf]
  %v52 = vld [vmem:[%s0 + $0x8] sm:$0xf]
  %v53 = vld [vmem:[%s0 + $0xc] sm:$0xf]
  %v54 = vld [vmem:[%s0 + $0x10] sm:$0xf]
  %v55 = vld [vmem:[%s0 + $0x14] sm:$0xf]
  %v56 = vld [vmem:[%s0 + $0x18] sm:$0xf]
  %v57 = vld [vmem:[%s0 + $0x1c] sm:$0xf]
  %v58 = vld [vmem:[%s0 + $0x20] sm:$0xf]
  %v59 = vld [vmem:[%s0 + $0x24] sm:$0xf]
  %v60 = vld [vmem:[%s0 + $0x28] sm:$0xf]
  %v61 = vld [vmem:[%s0 + $0x2c] sm:$0xf]
  %v62 = vld [vmem:[%s0 + $0x30] sm:$0xf]
  %v63 = vld [vmem:[%s0 + $0x34] sm:$0xf]
  %v64 = vld [vmem:[%s0 + $0x38] sm:$0xf]
  %v65 = vld [vmem:[%s0 + $0x3c] sm:$0xf]
  %v66 = vld [vmem:[%s1] sm:$0xf]
  %v67 = vld [vmem:[%s1 + $0x4] sm:$0xf]
  %v68 = vld [vmem:[%s1 + $0x8] sm:$0xf]
  %v69 = vld [vmem:[%s1 + $0xc] sm:$0xf]
  %v70 = vld [vmem:[%s1 + $0x10] sm:$0xf]
  %v71 = vld [vmem:[%s1 + $0x14] sm:$0xf]
  %v72 = vld [vmem:[%s1 + $0x18] sm:$0xf]
  %v73 = vld [vmem:[%s1 + $0x1c] sm:$0xf]
  %v74 = vld [vmem:[%s1 + $0x20] sm:$0xf]
  %v75 = vld [vmem:[%s1 + $0x24] sm:$0xf]
  %v76 = vld [vmem:[%s1 + $0x28] sm:$0xf]
  %v77 = vld [vmem:[%s1 + $0x2c] sm:$0xf]
  %v78 = vld [vmem:[%s1 + $0x30] sm:$0xf]
  %v79 = vld [vmem:[%s1 + $0x34] sm:$0xf]
  %v80 = vld [vmem:[%s1 + $0x38] sm:$0xf]
  %v81 = vld [vmem:[%s1 + $0x3c] sm:$0xf]
  %v98 = vunpack.c.l.b16 %v50
  %v99 = vunpack.c.l.b16 %v51
  %v100 = vunpack.c.l.b16 %v52
  %v101 = vunpack.c.l.b16 %v53
  %v102 = vunpack.c.l.b16 %v54
  %v103 = vunpack.c.l.b16 %v55
  %v104 = vunpack.c.l.b16 %v56
  %v105 = vunpack.c.l.b16 %v57
  %v106 = vunpack.c.l.b16 %v58
  %v107 = vunpack.c.l.b16 %v59
  %v108 = vunpack.c.l.b16 %v60
  %v109 = vunpack.c.l.b16 %v61
  %v110 = vunpack.c.l.b16 %v62
  %v111 = vunpack.c.l.b16 %v63
  %v112 = vunpack.c.l.b16 %v64
  %v113 = vunpack.c.l.b16 %v65
  %v114 = vpack.c.b16 %v99, %v98
  %v115 = vpack.c.b16 %v101, %v100
  %v116 = vpack.c.b16 %v103, %v102
  %v117 = vpack.c.b16 %v105, %v104
  %v118 = vpack.c.b16 %v107, %v106
  %v119 = vpack.c.b16 %v109, %v108
  %v120 = vpack.c.b16 %v111, %v110
  %v121 = vpack.c.b16 %v113, %v112
  %v146 = vunpack.c.l.b16 %v66
  %v147 = vunpack.c.l.b16 %v67
  %v148 = vunpack.c.l.b16 %v68
  %v149 = vunpack.c.l.b16 %v69
  %v150 = vunpack.c.l.b16 %v70
  %v151 = vunpack.c.l.b16 %v71
  %v152 = vunpack.c.l.b16 %v72
  %v153 = vunpack.c.l.b16 %v73
  %v154 = vunpack.c.l.b16 %v74
  %v155 = vunpack.c.l.b16 %v75
  %v156 = vunpack.c.l.b16 %v76
  %v157 = vunpack.c.l.b16 %v77
  %v158 = vunpack.c.l.b16 %v78
  %v159 = vunpack.c.l.b16 %v79
  %v160 = vunpack.c.l.b16 %v80
  %v161 = vunpack.c.l.b16 %v81
  %v162 = vpack.c.b16 %v147, %v146
  %v163 = vpack.c.b16 %v149, %v148
  %v164 = vpack.c.b16 %v151, %v150
  %v165 = vpack.c.b16 %v153, %v152
  %v166 = vpack.c.b16 %v155, %v154
  %v167 = vpack.c.b16 %v157, %v156
  %v168 = vpack.c.b16 %v159, %v158
  %v169 = vpack.c.b16 %v161, %v160
  %178 = vmatpush.bf16.msra.mxu0 %v169
  %179 = vmatpush.bf16.msra.mxu0 %v168
  %180 = vmatpush.bf16.msra.mxu0 %v167
  %181 = vmatpush.bf16.msra.mxu0 %v166
  %182 = vmatpush.bf16.msra.mxu0 %v165
  %183 = vmatpush.bf16.msra.mxu0 %v164
  %184 = vmatpush.bf16.msra.mxu0 %v163
  %185 = vmatpush.bf16.msra.mxu0 %v162
  %186 = vmatmul.bf16.gmra.mxu0 %v114
  %v187 = vpop.f32.mrf.mxu0
  %v188 = vadd.f32 0.0, %v187
  %v189 = vpop.f32.mrf.mxu0
  %v190 = vadd.f32 0.0, %v189
  %191 = vmatmul.bf16.gmra.mxu0 %v115
  %v192 = vpop.f32.mrf.mxu0
  %v193 = vadd.f32 0.0, %v192
  %v194 = vpop.f32.mrf.mxu0
  %v195 = vadd.f32 0.0, %v194
  %196 = vmatmul.bf16.gmra.mxu0 %v116
  %v197 = vpop.f32.mrf.mxu0
  %v198 = vadd.f32 0.0, %v197
  %v199 = vpop.f32.mrf.mxu0
  %v200 = vadd.f32 0.0, %v199
  %201 = vmatmul.bf16.gmra.mxu0 %v117
  %v202 = vpop.f32.mrf.mxu0
  %v203 = vadd.f32 0.0, %v202
  %v204 = vpop.f32.mrf.mxu0
  %v205 = vadd.f32 0.0, %v204
  %206 = vmatmul.bf16.gmra.mxu0 %v118
  %v207 = vpop.f32.mrf.mxu0
  %v208 = vadd.f32 0.0, %v207
  %v209 = vpop.f32.mrf.mxu0
  %v210 = vadd.f32 0.0, %v209
  %211 = vmatmul.bf16.gmra.mxu0 %v119
  %v212 = vpop.f32.mrf.mxu0
  %v213 = vadd.f32 0.0, %v212
  %v214 = vpop.f32.mrf.mxu0
  %v215 = vadd.f32 0.0, %v214
  %216 = vmatmul.bf16.gmra.mxu0 %v120
  %v217 = vpop.f32.mrf.mxu0
  %v218 = vadd.f32 0.0, %v217
  %v219 = vpop.f32.mrf.mxu0
  %v220 = vadd.f32 0.0, %v219
  %221 = vmatmul.bf16.gmra.mxu0 %v121
  %v222 = vpop.f32.mrf.mxu0
  %v223 = vadd.f32 0.0, %v222
  %v224 = vpop.f32.mrf.mxu0
  %v225 = vadd.f32 0.0, %v224
  %226 = vdwg.mxu0
  %v227 = vadd.f32 %v34, %v188
  %v228 = vadd.f32 %v35, %v190
  %v229 = vadd.f32 %v36, %v193
  %v230 = vadd.f32 %v37, %v195
  %v231 = vadd.f32 %v38, %v198
  %v232 = vadd.f32 %v39, %v200
  %v233 = vadd.f32 %v40, %v203
  %v234 = vadd.f32 %v41, %v205
  %v235 = vadd.f32 %v42, %v208
  %v236 = vadd.f32 %v43, %v210
  %v237 = vadd.f32 %v44, %v213
  %v238 = vadd.f32 %v45, %v215
  %v239 = vadd.f32 %v46, %v218
  %v240 = vadd.f32 %v47, %v220
  %v241 = vadd.f32 %v48, %v223
  %v242 = vadd.f32 %v49, %v225
  %243 = vst [vmem:[#allocation2] sm:$0xff] %v227
  %244 = vst [vmem:[#allocation2 + $0x8] sm:$0xff] %v228
  %245 = vst [vmem:[#allocation2 + $0x10] sm:$0xff] %v229
  %246 = vst [vmem:[#allocation2 + $0x18] sm:$0xff] %v230
  %247 = vst [vmem:[#allocation2 + $0x20] sm:$0xff] %v231
  %248 = vst [vmem:[#allocation2 + $0x28] sm:$0xff] %v232
  %249 = vst [vmem:[#allocation2 + $0x30] sm:$0xff] %v233
  %250 = vst [vmem:[#allocation2 + $0x38] sm:$0xff] %v234
  %251 = vst [vmem:[#allocation2 + $0x40] sm:$0xff] %v235
  %252 = vst [vmem:[#allocation2 + $0x48] sm:$0xff] %v236
  %253 = vst [vmem:[#allocation2 + $0x50] sm:$0xff] %v237
  %254 = vst [vmem:[#allocation2 + $0x58] sm:$0xff] %v238
  %255 = vst [vmem:[#allocation2 + $0x60] sm:$0xff] %v239
  %256 = vst [vmem:[#allocation2 + $0x68] sm:$0xff] %v240
  %257 = vst [vmem:[#allocation2 + $0x70] sm:$0xff] %v241
  %258 = vst [vmem:[#allocation2 + $0x78] sm:$0xff] %v242
  // Predicated region
  $region18: #{discrete_vae_forward.17} parent=0 // pred_check
    %p259 = pneg %p14
  $region19: #{discrete_vae_forward.17} parent=0 // pred_check_branch
    %261 = sbr.rel (%p259) target = $region21
  $region20: #{discrete_vae_forward.17} parent=0 // pred_region
    %v262 = vld [vmem:[#allocation2] sm:$0xff]
    %v263 = vld [vmem:[#allocation2 + $0x8] sm:$0xff]
    %v264 = vld [vmem:[#allocation2 + $0x10] sm:$0xff]
    %v265 = vld [vmem:[#allocation2 + $0x18] sm:$0xff]
    %v266 = vld [vmem:[#allocation2 + $0x20] sm:$0xff]
    %v267 = vld [vmem:[#allocation2 + $0x28] sm:$0xff]
    %v268 = vld [vmem:[#allocation2 + $0x30] sm:$0xff]
    %v269 = vld [vmem:[#allocation2 + $0x38] sm:$0xff]
    %v270 = vld [vmem:[#allocation2 + $0x40] sm:$0xff]
    %v271 = vld [vmem:[#allocation2 + $0x48] sm:$0xff]
    %v272 = vld [vmem:[#allocation2 + $0x50] sm:$0xff]
    %v273 = vld [vmem:[#allocation2 + $0x58] sm:$0xff]
    %v274 = vld [vmem:[#allocation2 + $0x60] sm:$0xff]
    %v275 = vld [vmem:[#allocation2 + $0x68] sm:$0xff]
    %v276 = vld [vmem:[#allocation2 + $0x70] sm:$0xff]
    %v277 = vld [vmem:[#allocation2 + $0x78] sm:$0xff]
    %v278 = vld [vmem:[%s2] sm:$0x1]
    %v280 = vperm.slane %v278, 0
    %v282 = vadd.f32 %v262, %v280
    %v283 = vadd.f32 %v263, %v280
    %v284 = vadd.f32 %v264, %v280
    %v285 = vadd.f32 %v265, %v280
    %v286 = vadd.f32 %v266, %v280
    %v287 = vadd.f32 %v267, %v280
    %v288 = vadd.f32 %v268, %v280
    %v289 = vadd.f32 %v269, %v280
    %v290 = vadd.f32 %v270, %v280
    %v291 = vadd.f32 %v271, %v280
    %v292 = vadd.f32 %v272, %v280
    %v293 = vadd.f32 %v273, %v280
    %v294 = vadd.f32 %v274, %v280
    %v295 = vadd.f32 %v275, %v280
    %v296 = vadd.f32 %v276, %v280
    %v297 = vadd.f32 %v277, %v280
    %v298 = vmax.f32 %v282, 0.0
    %v299 = vmax.f32 %v283, 0.0
    %v300 = vmax.f32 %v284, 0.0
    %v301 = vmax.f32 %v285, 0.0
    %v302 = vmax.f32 %v286, 0.0
    %v303 = vmax.f32 %v287, 0.0
    %v304 = vmax.f32 %v288, 0.0
    %v305 = vmax.f32 %v289, 0.0
    %v306 = vmax.f32 %v290, 0.0
    %v307 = vmax.f32 %v291, 0.0
    %v308 = vmax.f32 %v292, 0.0
    %v309 = vmax.f32 %v293, 0.0
    %v310 = vmax.f32 %v294, 0.0
    %v311 = vmax.f32 %v295, 0.0
    %v312 = vmax.f32 %v296, 0.0
    %v313 = vmax.f32 %v297, 0.0
    %v314 = vpack.c.bf16 %v298, %v298
    %v315 = vpack.c.bf16 %v299, %v299
    %v316 = vpack.c.bf16 %v300, %v300
    %v317 = vpack.c.bf16 %v301, %v301
    %v318 = vpack.c.bf16 %v302, %v302
    %v319 = vpack.c.bf16 %v303, %v303
    %v320 = vpack.c.bf16 %v304, %v304
    %v321 = vpack.c.bf16 %v305, %v305
    %v322 = vpack.c.bf16 %v306, %v306
    %v323 = vpack.c.bf16 %v307, %v307
    %v324 = vpack.c.bf16 %v308, %v308
    %v325 = vpack.c.bf16 %v309, %v309
    %v326 = vpack.c.bf16 %v310, %v310
    %v327 = vpack.c.bf16 %v311, %v311
    %v328 = vpack.c.bf16 %v312, %v312
    %v329 = vpack.c.bf16 %v313, %v313
    %330 = vst [vmem:[%s3] sm:$0xf] %v314
    %331 = vst [vmem:[%s3 + $0x4] sm:$0xf] %v315
    %332 = vst [vmem:[%s3 + $0x8] sm:$0xf] %v316
    %333 = vst [vmem:[%s3 + $0xc] sm:$0xf] %v317
    %334 = vst [vmem:[%s3 + $0x10] sm:$0xf] %v318
    %335 = vst [vmem:[%s3 + $0x14] sm:$0xf] %v319
    %336 = vst [vmem:[%s3 + $0x18] sm:$0xf] %v320
    %337 = vst [vmem:[%s3 + $0x1c] sm:$0xf] %v321
    %338 = vst [vmem:[%s3 + $0x20] sm:$0xf] %v322
    %339 = vst [vmem:[%s3 + $0x24] sm:$0xf] %v323
    %340 = vst [vmem:[%s3 + $0x28] sm:$0xf] %v324
    %341 = vst [vmem:[%s3 + $0x2c] sm:$0xf] %v325
    %342 = vst [vmem:[%s3 + $0x30] sm:$0xf] %v326
    %343 = vst [vmem:[%s3 + $0x34] sm:$0xf] %v327
    %344 = vst [vmem:[%s3 + $0x38] sm:$0xf] %v328
    %345 = vst [vmem:[%s3 + $0x3c] sm:$0xf] %v329
  $region21: #{discrete_vae_forward.17} parent=0 // pred_fallthru
    _
  // Predicated region
  $region22: #{discrete_vae_forward.17} parent=0 // pred_check
    _
  $region23: #{discrete_vae_forward.17} parent=0 // pred_check_branch
    %347 = sbr.rel (0) target = $region25
  $region24: #{discrete_vae_forward.17} parent=0 // pred_region
    _
  $region25: #{discrete_vae_forward.17} parent=0 // pred_fallthru
    _
  // Predicated region
  $region26: #{discrete_vae_forward.17} parent=0 // pred_check
    _
  $region27: #{discrete_vae_forward.17} parent=0 // pred_check_branch
    %349 = sbr.rel (0) target = $region29
  $region28: #{discrete_vae_forward.17} parent=0 // pred_region
    _
  $region29: #{discrete_vae_forward.17} parent=0 // pred_fallthru
    _

// kernel: discrete_vae_forward.21
$region0: #{discrete_vae_forward.21}
  #allocation0 [shape = 'u32[]', space=smem, size = 0x4, offset = 0x4, fixed_abs, tag = 'smem constant byte address 0x4 - core index']
  #allocation1 [shape = 'u32[72,128]{1,0:T(1,128)}', space=vmem, size = 0x9000, scoped, tag = 'internal scratch']
  #allocation2 [shape = 'f32[128,128]{1,0:T(8,128)}', space=vmem, size = 0x10000, scoped, tag = 'scratch operand']
  %s0 = inlined_call_operand.vmem [shape: bf16[128,64], index: 0, kind: input, shape index: {}]
  %s1 = inlined_call_operand.vmem [shape: bf16[64,128], index: 1, kind: input, shape index: {}]
  %s2 = inlined_call_operand.vmem [shape: f32[1,128], index: 2, kind: input, shape index: {}]
  %s3 = inlined_call_operand.vmem [shape: bf16[128,128], index: 3, kind: output, shape index: {}]
  %s4 = sld [smem:[#allocation0]]
  $region30: #{discrete_vae_forward.21} parent=0
    _
  %s6 = ssub.s32 1, %s4
  %s7 = scalar_select 0, %s6, %s4
  // Predicated region
  $region2: #{discrete_vae_forward.21} parent=0 // pred_check
    _
  $region3: #{discrete_vae_forward.21} parent=0 // pred_check_branch
    %9 = sbr.rel (0) target = $region5
  $region4: #{discrete_vae_forward.21} parent=0 // pred_region
    _
  $region5: #{discrete_vae_forward.21} parent=0 // pred_fallthru
    _
  // Predicated region
  $region6: #{discrete_vae_forward.21} parent=0 // pred_check
    _
  $region7: #{discrete_vae_forward.21} parent=0 // pred_check_branch
    %11 = sbr.rel (0) target = $region9
  $region8: #{discrete_vae_forward.21} parent=0 // pred_region
    _
  $region9: #{discrete_vae_forward.21} parent=0 // pred_fallthru
    _
  // Predicated region
  $region10: #{discrete_vae_forward.21} parent=0 // pred_check
    _
  $region11: #{discrete_vae_forward.21} parent=0 // pred_check_branch
    %13 = sbr.rel (0) target = $region13
  $region12: #{discrete_vae_forward.21} parent=0 // pred_region
    _
  $region13: #{discrete_vae_forward.21} parent=0 // pred_fallthru
    _
  %p15 = scmp.eq.s32.totalorder 0, 0
  // Predicated region
  $region14: #{discrete_vae_forward.21} parent=0 // pred_check
    %p16 = pneg %p15
  $region15: #{discrete_vae_forward.21} parent=0 // pred_check_branch
    %18 = sbr.rel (%p16) target = $region17
  $region16: #{discrete_vae_forward.21} parent=0 // pred_region
    %19 = vst [vmem:[#allocation2] sm:$0xff] 0.0
    %20 = vst [vmem:[#allocation2 + $0x8] sm:$0xff] 0.0
    %21 = vst [vmem:[#allocation2 + $0x10] sm:$0xff] 0.0
    %22 = vst [vmem:[#allocation2 + $0x18] sm:$0xff] 0.0
    %23 = vst [vmem:[#allocation2 + $0x20] sm:$0xff] 0.0
    %24 = vst [vmem:[#allocation2 + $0x28] sm:$0xff] 0.0
    %25 = vst [vmem:[#allocation2 + $0x30] sm:$0xff] 0.0
    %26 = vst [vmem:[#allocation2 + $0x38] sm:$0xff] 0.0
    %27 = vst [vmem:[#allocation2 + $0x40] sm:$0xff] 0.0
    %28 = vst [vmem:[#allocation2 + $0x48] sm:$0xff] 0.0
    %29 = vst [vmem:[#allocation2 + $0x50] sm:$0xff] 0.0
    %30 = vst [vmem:[#allocation2 + $0x58] sm:$0xff] 0.0
    %31 = vst [vmem:[#allocation2 + $0x60] sm:$0xff] 0.0
    %32 = vst [vmem:[#allocation2 + $0x68] sm:$0xff] 0.0
    %33 = vst [vmem:[#allocation2 + $0x70] sm:$0xff] 0.0
    %34 = vst [vmem:[#allocation2 + $0x78] sm:$0xff] 0.0
  $region17: #{discrete_vae_forward.21} parent=0 // pred_fallthru
    _
  %v35 = vld [vmem:[#allocation2] sm:$0xff]
  %v36 = vld [vmem:[#allocation2 + $0x8] sm:$0xff]
  %v37 = vld [vmem:[#allocation2 + $0x10] sm:$0xff]
  %v38 = vld [vmem:[#allocation2 + $0x18] sm:$0xff]
  %v39 = vld [vmem:[#allocation2 + $0x20] sm:$0xff]
  %v40 = vld [vmem:[#allocation2 + $0x28] sm:$0xff]
  %v41 = vld [vmem:[#allocation2 + $0x30] sm:$0xff]
  %v42 = vld [vmem:[#allocation2 + $0x38] sm:$0xff]
  %v43 = vld [vmem:[#allocation2 + $0x40] sm:$0xff]
  %v44 = vld [vmem:[#allocation2 + $0x48] sm:$0xff]
  %v45 = vld [vmem:[#allocation2 + $0x50] sm:$0xff]
  %v46 = vld [vmem:[#allocation2 + $0x58] sm:$0xff]
  %v47 = vld [vmem:[#allocation2 + $0x60] sm:$0xff]
  %v48 = vld [vmem:[#allocation2 + $0x68] sm:$0xff]
  %v49 = vld [vmem:[#allocation2 + $0x70] sm:$0xff]
  %v50 = vld [vmem:[#allocation2 + $0x78] sm:$0xff]
  %v51 = vld [vmem:[%s0] sm:$0xf]
  %v52 = vld [vmem:[%s0 + $0x4] sm:$0xf]
  %v53 = vld [vmem:[%s0 + $0x8] sm:$0xf]
  %v54 = vld [vmem:[%s0 + $0xc] sm:$0xf]
  %v55 = vld [vmem:[%s0 + $0x10] sm:$0xf]
  %v56 = vld [vmem:[%s0 + $0x14] sm:$0xf]
  %v57 = vld [vmem:[%s0 + $0x18] sm:$0xf]
  %v58 = vld [vmem:[%s0 + $0x1c] sm:$0xf]
  %v59 = vld [vmem:[%s0 + $0x20] sm:$0xf]
  %v60 = vld [vmem:[%s0 + $0x24] sm:$0xf]
  %v61 = vld [vmem:[%s0 + $0x28] sm:$0xf]
  %v62 = vld [vmem:[%s0 + $0x2c] sm:$0xf]
  %v63 = vld [vmem:[%s0 + $0x30] sm:$0xf]
  %v64 = vld [vmem:[%s0 + $0x34] sm:$0xf]
  %v65 = vld [vmem:[%s0 + $0x38] sm:$0xf]
  %v66 = vld [vmem:[%s0 + $0x3c] sm:$0xf]
  %v67 = vld [vmem:[%s1] sm:$0xf]
  %v68 = vld [vmem:[%s1 + $0x4] sm:$0xf]
  %v69 = vld [vmem:[%s1 + $0x8] sm:$0xf]
  %v70 = vld [vmem:[%s1 + $0xc] sm:$0xf]
  %v71 = vld [vmem:[%s1 + $0x10] sm:$0xf]
  %v72 = vld [vmem:[%s1 + $0x14] sm:$0xf]
  %v73 = vld [vmem:[%s1 + $0x18] sm:$0xf]
  %v74 = vld [vmem:[%s1 + $0x1c] sm:$0xf]
  %v91 = vunpack.c.l.b16 %v51
  %v92 = vunpack.c.l.b16 %v52
  %v93 = vunpack.c.l.b16 %v53
  %v94 = vunpack.c.l.b16 %v54
  %v95 = vunpack.c.l.b16 %v55
  %v96 = vunpack.c.l.b16 %v56
  %v97 = vunpack.c.l.b16 %v57
  %v98 = vunpack.c.l.b16 %v58
  %v99 = vunpack.c.l.b16 %v59
  %v100 = vunpack.c.l.b16 %v60
  %v101 = vunpack.c.l.b16 %v61
  %v102 = vunpack.c.l.b16 %v62
  %v103 = vunpack.c.l.b16 %v63
  %v104 = vunpack.c.l.b16 %v64
  %v105 = vunpack.c.l.b16 %v65
  %v106 = vunpack.c.l.b16 %v66
  %v107 = vpack.c.b16 %v92, %v91
  %v108 = vpack.c.b16 %v94, %v93
  %v109 = vpack.c.b16 %v96, %v95
  %v110 = vpack.c.b16 %v98, %v97
  %v111 = vpack.c.b16 %v100, %v99
  %v112 = vpack.c.b16 %v102, %v101
  %v113 = vpack.c.b16 %v104, %v103
  %v114 = vpack.c.b16 %v106, %v105
  %v123 = vunpack.c.l.b16 %v67
  %v124 = vunpack.c.l.b16 %v68
  %v125 = vunpack.c.l.b16 %v69
  %v126 = vunpack.c.l.b16 %v70
  %v127 = vunpack.c.l.b16 %v71
  %v128 = vunpack.c.l.b16 %v72
  %v129 = vunpack.c.l.b16 %v73
  %v130 = vunpack.c.l.b16 %v74
  %v131 = vpack.c.b16 %v124, %v123
  %v132 = vpack.c.b16 %v126, %v125
  %v133 = vpack.c.b16 %v128, %v127
  %v134 = vpack.c.b16 %v130, %v129
  %vm139 = vcmask 523264
  %v141 = vsel %vm139, %v107, 0
  %v144 = vsel %vm139, %v108, 0
  %v147 = vsel %vm139, %v109, 0
  %v150 = vsel %vm139, %v110, 0
  %v153 = vsel %vm139, %v111, 0
  %v156 = vsel %vm139, %v112, 0
  %v159 = vsel %vm139, %v113, 0
  %v162 = vsel %vm139, %v114, 0
  %164 = vmatpush.bf16.msra.mxu0 0
  %165 = vmatpush.bf16.msra.mxu0 0
  %166 = vmatpush.bf16.msra.mxu0 0
  %167 = vmatpush.bf16.msra.mxu0 0
  %168 = vmatpush.bf16.msra.mxu0 %v134
  %169 = vmatpush.bf16.msra.mxu0 %v133
  %170 = vmatpush.bf16.msra.mxu0 %v132
  %171 = vmatpush.bf16.msra.mxu0 %v131
  %172 = vmatmul.bf16.gmra.mxu0 %v141
  %v173 = vpop.f32.mrf.mxu0
  %v174 = vadd.f32 0.0, %v173
  %v175 = vpop.f32.mrf.mxu0
  %v176 = vadd.f32 0.0, %v175
  %177 = vmatmul.bf16.gmra.mxu0 %v144
  %v178 = vpop.f32.mrf.mxu0
  %v179 = vadd.f32 0.0, %v178
  %v180 = vpop.f32.mrf.mxu0
  %v181 = vadd.f32 0.0, %v180
  %182 = vmatmul.bf16.gmra.mxu0 %v147
  %v183 = vpop.f32.mrf.mxu0
  %v184 = vadd.f32 0.0, %v183
  %v185 = vpop.f32.mrf.mxu0
  %v186 = vadd.f32 0.0, %v185
  %187 = vmatmul.bf16.gmra.mxu0 %v150
  %v188 = vpop.f32.mrf.mxu0
  %v189 = vadd.f32 0.0, %v188
  %v190 = vpop.f32.mrf.mxu0
  %v191 = vadd.f32 0.0, %v190
  %192 = vmatmul.bf16.gmra.mxu0 %v153
  %v193 = vpop.f32.mrf.mxu0
  %v194 = vadd.f32 0.0, %v193
  %v195 = vpop.f32.mrf.mxu0
  %v196 = vadd.f32 0.0, %v195
  %197 = vmatmul.bf16.gmra.mxu0 %v156
  %v198 = vpop.f32.mrf.mxu0
  %v199 = vadd.f32 0.0, %v198
  %v200 = vpop.f32.mrf.mxu0
  %v201 = vadd.f32 0.0, %v200
  %202 = vmatmul.bf16.gmra.mxu0 %v159
  %v203 = vpop.f32.mrf.mxu0
  %v204 = vadd.f32 0.0, %v203
  %v205 = vpop.f32.mrf.mxu0
  %v206 = vadd.f32 0.0, %v205
  %207 = vmatmul.bf16.gmra.mxu0 %v162
  %v208 = vpop.f32.mrf.mxu0
  %v209 = vadd.f32 0.0, %v208
  %v210 = vpop.f32.mrf.mxu0
  %v211 = vadd.f32 0.0, %v210
  %212 = vdwg.mxu0
  %v213 = vadd.f32 %v35, %v174
  %v214 = vadd.f32 %v36, %v176
  %v215 = vadd.f32 %v37, %v179
  %v216 = vadd.f32 %v38, %v181
  %v217 = vadd.f32 %v39, %v184
  %v218 = vadd.f32 %v40, %v186
  %v219 = vadd.f32 %v41, %v189
  %v220 = vadd.f32 %v42, %v191
  %v221 = vadd.f32 %v43, %v194
  %v222 = vadd.f32 %v44, %v196
  %v223 = vadd.f32 %v45, %v199
  %v224 = vadd.f32 %v46, %v201
  %v225 = vadd.f32 %v47, %v204
  %v226 = vadd.f32 %v48, %v206
  %v227 = vadd.f32 %v49, %v209
  %v228 = vadd.f32 %v50, %v211
  %229 = vst [vmem:[#allocation2] sm:$0xff] %v213
  %230 = vst [vmem:[#allocation2 + $0x8] sm:$0xff] %v214
  %231 = vst [vmem:[#allocation2 + $0x10] sm:$0xff] %v215
  %232 = vst [vmem:[#allocation2 + $0x18] sm:$0xff] %v216
  %233 = vst [vmem:[#allocation2 + $0x20] sm:$0xff] %v217
  %234 = vst [vmem:[#allocation2 + $0x28] sm:$0xff] %v218
  %235 = vst [vmem:[#allocation2 + $0x30] sm:$0xff] %v219
  %236 = vst [vmem:[#allocation2 + $0x38] sm:$0xff] %v220
  %237 = vst [vmem:[#allocation2 + $0x40] sm:$0xff] %v221
  %238 = vst [vmem:[#allocation2 + $0x48] sm:$0xff] %v222
  %239 = vst [vmem:[#allocation2 + $0x50] sm:$0xff] %v223
  %240 = vst [vmem:[#allocation2 + $0x58] sm:$0xff] %v224
  %241 = vst [vmem:[#allocation2 + $0x60] sm:$0xff] %v225
  %242 = vst [vmem:[#allocation2 + $0x68] sm:$0xff] %v226
  %243 = vst [vmem:[#allocation2 + $0x70] sm:$0xff] %v227
  %244 = vst [vmem:[#allocation2 + $0x78] sm:$0xff] %v228
  // Predicated region
  $region18: #{discrete_vae_forward.21} parent=0 // pred_check
    %p245 = pneg %p15
  $region19: #{discrete_vae_forward.21} parent=0 // pred_check_branch
    %247 = sbr.rel (%p245) target = $region21
  $region20: #{discrete_vae_forward.21} parent=0 // pred_region
    %v248 = vld [vmem:[#allocation2] sm:$0xff]
    %v249 = vld [vmem:[#allocation2 + $0x8] sm:$0xff]
    %v250 = vld [vmem:[#allocation2 + $0x10] sm:$0xff]
    %v251 = vld [vmem:[#allocation2 + $0x18] sm:$0xff]
    %v252 = vld [vmem:[#allocation2 + $0x20] sm:$0xff]
    %v253 = vld [vmem:[#allocation2 + $0x28] sm:$0xff]
    %v254 = vld [vmem:[#allocation2 + $0x30] sm:$0xff]
    %v255 = vld [vmem:[#allocation2 + $0x38] sm:$0xff]
    %v256 = vld [vmem:[#allocation2 + $0x40] sm:$0xff]
    %v257 = vld [vmem:[#allocation2 + $0x48] sm:$0xff]
    %v258 = vld [vmem:[#allocation2 + $0x50] sm:$0xff]
    %v259 = vld [vmem:[#allocation2 + $0x58] sm:$0xff]
    %v260 = vld [vmem:[#allocation2 + $0x60] sm:$0xff]
    %v261 = vld [vmem:[#allocation2 + $0x68] sm:$0xff]
    %v262 = vld [vmem:[#allocation2 + $0x70] sm:$0xff]
    %v263 = vld [vmem:[#allocation2 + $0x78] sm:$0xff]
    %v264 = vld [vmem:[%s2] sm:$0x1]
    %v266 = vperm.slane %v264, 0
    %v268 = vadd.f32 %v248, %v266
    %v269 = vadd.f32 %v249, %v266
    %v270 = vadd.f32 %v250, %v266
    %v271 = vadd.f32 %v251, %v266
    %v272 = vadd.f32 %v252, %v266
    %v273 = vadd.f32 %v253, %v266
    %v274 = vadd.f32 %v254, %v266
    %v275 = vadd.f32 %v255, %v266
    %v276 = vadd.f32 %v256, %v266
    %v277 = vadd.f32 %v257, %v266
    %v278 = vadd.f32 %v258, %v266
    %v279 = vadd.f32 %v259, %v266
    %v280 = vadd.f32 %v260, %v266
    %v281 = vadd.f32 %v261, %v266
    %v282 = vadd.f32 %v262, %v266
    %v283 = vadd.f32 %v263, %v266
    %v284 = vmax.f32 %v268, 0.0
    %v285 = vmax.f32 %v269, 0.0
    %v286 = vmax.f32 %v270, 0.0
    %v287 = vmax.f32 %v271, 0.0
    %v288 = vmax.f32 %v272, 0.0
    %v289 = vmax.f32 %v273, 0.0
    %v290 = vmax.f32 %v274, 0.0
    %v291 = vmax.f32 %v275, 0.0
    %v292 = vmax.f32 %v276, 0.0
    %v293 = vmax.f32 %v277, 0.0
    %v294 = vmax.f32 %v278, 0.0
    %v295 = vmax.f32 %v279, 0.0
    %v296 = vmax.f32 %v280, 0.0
    %v297 = vmax.f32 %v281, 0.0
    %v298 = vmax.f32 %v282, 0.0
    %v299 = vmax.f32 %v283, 0.0
    %v300 = vpack.c.bf16 %v284, %v284
    %v301 = vpack.c.bf16 %v285, %v285
    %v302 = vpack.c.bf16 %v286, %v286
    %v303 = vpack.c.bf16 %v287, %v287
    %v304 = vpack.c.bf16 %v288, %v288
    %v305 = vpack.c.bf16 %v289, %v289
    %v306 = vpack.c.bf16 %v290, %v290
    %v307 = vpack.c.bf16 %v291, %v291
    %v308 = vpack.c.bf16 %v292, %v292
    %v309 = vpack.c.bf16 %v293, %v293
    %v310 = vpack.c.bf16 %v294, %v294
    %v311 = vpack.c.bf16 %v295, %v295
    %v312 = vpack.c.bf16 %v296, %v296
    %v313 = vpack.c.bf16 %v297, %v297
    %v314 = vpack.c.bf16 %v298, %v298
    %v315 = vpack.c.bf16 %v299, %v299
    %316 = vst [vmem:[%s3] sm:$0xf] %v300
    %317 = vst [vmem:[%s3 + $0x4] sm:$0xf] %v301
    %318 = vst [vmem:[%s3 + $0x8] sm:$0xf] %v302
    %319 = vst [vmem:[%s3 + $0xc] sm:$0xf] %v303
    %320 = vst [vmem:[%s3 + $0x10] sm:$0xf] %v304
    %321 = vst [vmem:[%s3 + $0x14] sm:$0xf] %v305
    %322 = vst [vmem:[%s3 + $0x18] sm:$0xf] %v306
    %323 = vst [vmem:[%s3 + $0x1c] sm:$0xf] %v307
    %324 = vst [vmem:[%s3 + $0x20] sm:$0xf] %v308
    %325 = vst [vmem:[%s3 + $0x24] sm:$0xf] %v309
    %326 = vst [vmem:[%s3 + $0x28] sm:$0xf] %v310
    %327 = vst [vmem:[%s3 + $0x2c] sm:$0xf] %v311
    %328 = vst [vmem:[%s3 + $0x30] sm:$0xf] %v312
    %329 = vst [vmem:[%s3 + $0x34] sm:$0xf] %v313
    %330 = vst [vmem:[%s3 + $0x38] sm:$0xf] %v314
    %331 = vst [vmem:[%s3 + $0x3c] sm:$0xf] %v315
  $region21: #{discrete_vae_forward.21} parent=0 // pred_fallthru
    _
  // Predicated region
  $region22: #{discrete_vae_forward.21} parent=0 // pred_check
    _
  $region23: #{discrete_vae_forward.21} parent=0 // pred_check_branch
    %333 = sbr.rel (0) target = $region25
  $region24: #{discrete_vae_forward.21} parent=0 // pred_region
    _
  $region25: #{discrete_vae_forward.21} parent=0 // pred_fallthru
    _
  // Predicated region
  $region26: #{discrete_vae_forward.21} parent=0 // pred_check
    _
  $region27: #{discrete_vae_forward.21} parent=0 // pred_check_branch
    %335 = sbr.rel (0) target = $region29
  $region28: #{discrete_vae_forward.21} parent=0 // pred_region
    _
  $region29: #{discrete_vae_forward.21} parent=0 // pred_fallthru
    _

// kernel: discrete_vae_forward.25
$region0: #{discrete_vae_forward.25}
  #allocation0 [shape = 'u32[]', space=smem, size = 0x4, offset = 0x4, fixed_abs, tag = 'smem constant byte address 0x4 - core index']
  #allocation1 [shape = 'u32[72,128]{1,0:T(1,128)}', space=vmem, size = 0x9000, scoped, tag = 'internal scratch']
  #allocation2 [shape = 'f32[256,128]{1,0:T(8,128)}', space=vmem, size = 0x20000, scoped, tag = 'scratch operand']
  %s0 = inlined_call_operand.vmem [shape: bf16[512,16], index: 0, kind: input, shape index: {}]
  %s1 = inlined_call_operand.vmem [shape: bf16[16,128], index: 1, kind: input, shape index: {}]
  %s2 = inlined_call_operand.vmem [shape: f32[1,128], index: 2, kind: input, shape index: {}]
  %s3 = inlined_call_operand.vmem [shape: f32[512,128], index: 3, kind: output, shape index: {}]
  %s4 = sld [smem:[#allocation0]]
  $region53: #{discrete_vae_forward.25} parent=0
    _
  %s6 = ssub.s32 1, %s4
  %s7 = scalar_select 0, %s6, %s4
  loop: start=0, step=1, limit=4
  $region2: #{discrete_vae_forward.25} parent=0 // loop_pre_header
    _
  $region3: #{discrete_vae_forward.25} parent=0 // loop_header
    %s9 = sphi 0, %s13
    %p10 = scmp.ge.s32.totalorder %s9, 4
    %s16 = sphi 0, %s35
    %s17 = sphi 0, %s31
    %s18 = sphi 0, %s27
    %s19 = sphi 0, %s16
    %s20 = sphi 0, %s17
    %s21 = sphi 0, %s18
    %s22 = sphi 0, %s19
    %s23 = sphi 0, %s20
    %s24 = sphi 0, %s21
    %s40 = sphi 0, %s42
    %s43 = sphi 0, %s40
    %s44 = sphi 0, %s43
    %s60 = sphi 0, %s44
    %s68 = sphi 0, %s70
    %s71 = sphi 0, %s68
    %s72 = sphi 0, %s71
    %s88 = sphi 0, %s72
    %s94 = sphi 0, %s96
    %s97 = sphi 0, %s94
    %s98 = sphi 0, %s97
    %s114 = sphi 0, %s98
    %s122 = sphi 0, %s124
    %s125 = sphi 0, %s122
    %s126 = sphi 0, %s125
    %s142 = sphi 0, %s126
  $region4: #{discrete_vae_forward.25} parent=0 // loop_header_branch
    %12 = sbr.rel (%p10) target = $region8
  $region5: #{discrete_vae_forward.25} parent=0 // loop_body
    %s14 = ssub.s32 %s9, 1
    %s15 = ssub.s32 %s9, 2
    %s25 = sadd.s32 1, %s18
    %p26 = scmp.ge.s32.totalorder %s25, 1
    %s27 = scalar_select %p26, 0, %s25
    %s28 = sadd.s32 1, %s17
    %s29 = scalar_select %p26, %s28, %s17
    %p30 = scmp.ge.s32.totalorder %s29, 1
    %s31 = scalar_select %p30, 0, %s29
    %s32 = sadd.s32 1, %s16
    %s33 = scalar_select %p30, %s32, %s16
    %p34 = scmp.ge.s32.totalorder %s33, 2
    %s35 = scalar_select %p34, 0, %s33
    %s36 = ssub.s32 %s16, %s35
    %s37 = ssub.s32 %s18, %s27
    %s38 = sor.u32 %s36, %s37
    %p39 = scmp.eq.s32.totalorder %s38, 0
    %s41 = sadd.s32 %s40, 1
    %s42 = scalar_select %p39, %s40, %s41
    %p45 = pneg %p39
    %p46 = scmp.eq.s32.totalorder %s9, 1
    %p47 = por %p45, %p46
    %p48 = scmp.ne.s32.totalorder %s40, %s43
    %p49 = scmp.eq.s32.totalorder %s9, 0
    %p50 = por %p48, %p49
    %p51 = scmp.ne.s32.totalorder %s40, %s43
    %p52 = scmp.eq.s32.totalorder %s14, 1
    %p53 = por %p51, %p52
    %p54 = scmp.ne.s32.totalorder %s43, %s44
    %p55 = scmp.eq.s32.totalorder %s14, 0
    %p56 = por %p54, %p55
    %p57 = scmp.ne.s32.totalorder %s43, %s44
    %p58 = scmp.eq.s32.totalorder %s15, 1
    %p59 = por %p57, %p58
    %p61 = scmp.ne.s32.totalorder %s44, %s60
    %p62 = scmp.eq.s32.totalorder %s15, 0
    %p63 = por %p61, %p62
    %s64 = ssub.s32 %s18, %s27
    %s65 = ssub.s32 %s17, %s31
    %s66 = sor.u32 %s64, %s65
    %p67 = scmp.eq.s32.totalorder %s66, 0
    %s69 = sadd.s32 %s68, 1
    %s70 = scalar_select %p67, %s68, %s69
    %p73 = pneg %p67
    %p74 = scmp.eq.s32.totalorder %s9, 1
    %p75 = por %p73, %p74
    %p76 = scmp.ne.s32.totalorder %s68, %s71
    %p77 = scmp.eq.s32.totalorder %s9, 0
    %p78 = por %p76, %p77
    %p79 = scmp.ne.s32.totalorder %s68, %s71
    %p80 = scmp.eq.s32.totalorder %s14, 1
    %p81 = por %p79, %p80
    %p82 = scmp.ne.s32.totalorder %s71, %s72
    %p83 = scmp.eq.s32.totalorder %s14, 0
    %p84 = por %p82, %p83
    %p85 = scmp.ne.s32.totalorder %s71, %s72
    %p86 = scmp.eq.s32.totalorder %s15, 1
    %p87 = por %p85, %p86
    %p89 = scmp.ne.s32.totalorder %s72, %s88
    %p90 = scmp.eq.s32.totalorder %s15, 0
    %p91 = por %p89, %p90
    %s92 = ssub.s32 %s17, %s31
    %p93 = scmp.eq.s32.totalorder %s92, 0
    %s95 = sadd.s32 %s94, 1
    %s96 = scalar_select %p93, %s94, %s95
    %p99 = pneg %p93
    %p100 = scmp.eq.s32.totalorder %s9, 1
    %p101 = por %p99, %p100
    %p102 = scmp.ne.s32.totalorder %s94, %s97
    %p103 = scmp.eq.s32.totalorder %s9, 0
    %p104 = por %p102, %p103
    %p105 = scmp.ne.s32.totalorder %s94, %s97
    %p106 = scmp.eq.s32.totalorder %s14, 1
    %p107 = por %p105, %p106
    %p108 = scmp.ne.s32.totalorder %s97, %s98
    %p109 = scmp.eq.s32.totalorder %s14, 0
    %p110 = por %p108, %p109
    %p111 = scmp.ne.s32.totalorder %s97, %s98
    %p112 = scmp.eq.s32.totalorder %s15, 1
    %p113 = por %p111, %p112
    %p115 = scmp.ne.s32.totalorder %s98, %s114
    %p116 = scmp.eq.s32.totalorder %s15, 0
    %p117 = por %p115, %p116
    %s118 = ssub.s32 %s16, %s35
    %s119 = ssub.s32 %s17, %s31
    %s120 = sor.u32 %s118, %s119
    %p121 = scmp.eq.s32.totalorder %s120, 0
    %s123 = sadd.s32 %s122, 1
    %s124 = scalar_select %p121, %s122, %s123
    %p127 = pneg %p121
    %p128 = scmp.eq.s32.totalorder %s9, 1
    %p129 = por %p127, %p128
    %p130 = scmp.ne.s32.totalorder %s122, %s125
    %p131 = scmp.eq.s32.totalorder %s9, 0
    %p132 = por %p130, %p131
    %p133 = scmp.ne.s32.totalorder %s122, %s125
    %p134 = scmp.eq.s32.totalorder %s14, 1
    %p135 = por %p133, %p134
    %p136 = scmp.ne.s32.totalorder %s125, %s126
    %p137 = scmp.eq.s32.totalorder %s14, 0
    %p138 = por %p136, %p137
    %p139 = scmp.ne.s32.totalorder %s125, %s126
    %p140 = scmp.eq.s32.totalorder %s15, 1
    %p141 = por %p139, %p140
    %p143 = scmp.ne.s32.totalorder %s126, %s142
    %p144 = scmp.eq.s32.totalorder %s15, 0
    %p145 = por %p143, %p144
    %p146 = scmp.le.s32.totalorder 1, %s9
    %p147 = scmp.lt.s32.totalorder %s9, 3
    %p148 = pnand %p146, %p147
    %p149 = pneg %p148
    // Predicated region
    $region9: #{discrete_vae_forward.25} parent=5 // pred_check
      _
    $region10: #{discrete_vae_forward.25} parent=5 // pred_check_branch
      %151 = sbr.rel (%p148) target = $region12
    $region11: #{discrete_vae_forward.25} parent=5 // pred_region
      %s152 = ssub.s32 %s9, 1
      // Predicated region
      $region13: #{discrete_vae_forward.25} parent=11 // pred_check
        %p153 = pneg %p84
      $region14: #{discrete_vae_forward.25} parent=11 // pred_check_branch
        %155 = sbr.rel (%p153) target = $region16
      $region15: #{discrete_vae_forward.25} parent=11 // pred_region
        %s156 = smul.u32 2, %s21
        %p157 = scmp.lt.s32.totalorder %s156, 1
        %s158 = scalar_select %p157, %s156, 1
        %p159 = scmp.lt.s32.totalorder %s20, 0
        %s160 = scalar_select %p159, %s20, 0
        %s161 = sadd.s32 %s160, %s158
        %s162 = smul.addr %s161, 4
        %s163 = scalar_lea.vmem %s1, %s162
        %s164 = smul.u32 2, %s21
      $region16: #{discrete_vae_forward.25} parent=11 // pred_fallthru
        _
      // Predicated region
      $region17: #{discrete_vae_forward.25} parent=11 // pred_check
        %p165 = pneg %p110
      $region18: #{discrete_vae_forward.25} parent=11 // pred_check_branch
        %167 = sbr.rel (%p165) target = $region20
      $region19: #{discrete_vae_forward.25} parent=11 // pred_region
        %p168 = scmp.lt.s32.totalorder %s20, 0
        %s169 = scalar_select %p168, %s20, 0
        %s170 = scalar_lea.vmem %s2, %s169
      $region20: #{discrete_vae_forward.25} parent=11 // pred_fallthru
        _
    $region12: #{discrete_vae_forward.25} parent=5 // pred_fallthru
      _
    %p171 = scmp.lt.s32.totalorder %s9, 2
    // Predicated region
    $region21: #{discrete_vae_forward.25} parent=5 // pred_check
      %p172 = pneg %p171
    $region22: #{discrete_vae_forward.25} parent=5 // pred_check_branch
      %174 = sbr.rel (%p172) target = $region24
    $region23: #{discrete_vae_forward.25} parent=5 // pred_region
      // Predicated region
      $region25: #{discrete_vae_forward.25} parent=23 // pred_check
        %p175 = pneg %p50
      $region26: #{discrete_vae_forward.25} parent=23 // pred_check_branch
        %177 = sbr.rel (%p175) target = $region28
      $region27: #{discrete_vae_forward.25} parent=23 // pred_region
        %s178 = smul.u32 32, %s16
        %p179 = scmp.lt.s32.totalorder %s178, 63
        %s180 = scalar_select %p179, %s178, 63
        %p181 = scmp.lt.s32.totalorder %s18, 0
        %s182 = scalar_select %p181, %s18, 0
        %s183 = sadd.s32 %s182, %s180
        %s184 = smul.addr %s183, 4
        %s185 = scalar_lea.vmem %s0, %s184
        %s186 = smul.u32 32, %s16
      $region28: #{discrete_vae_forward.25} parent=23 // pred_fallthru
        _
    $region24: #{discrete_vae_forward.25} parent=5 // pred_fallthru
      _
    %p187 = scmp.le.s32.totalorder 1, %s9
    %p188 = scmp.lt.s32.totalorder %s9, 3
    %p189 = pnand %p187, %p188
    %p190 = pneg %p189
    // Predicated region
    $region29: #{discrete_vae_forward.25} parent=5 // pred_check
      _
    $region30: #{discrete_vae_forward.25} parent=5 // pred_check_branch
      %192 = sbr.rel (%p189) target = $region32
    $region31: #{discrete_vae_forward.25} parent=5 // pred_region
      %s193 = ssub.s32 %s9, 1
      %s194 = smul.u32 32, %s19
      %p195 = scmp.lt.s32.totalorder %s194, 63
      %s196 = scalar_select %p195, %s194, 63
      %p197 = scmp.lt.s32.totalorder %s21, 0
      %s198 = scalar_select %p197, %s21, 0
      %s199 = sadd.s32 %s198, %s196
      %s200 = smul.addr %s199, 4
      %s201 = scalar_lea.vmem %s0, %s200
      %p202 = pneg %p56
      %p203 = pneg %p53
      %s204 = smul.u32 2, %s21
      %p205 = scmp.lt.s32.totalorder %s204, 1
      %s206 = scalar_select %p205, %s204, 1
      %p207 = scmp.lt.s32.totalorder %s20, 0
      %s208 = scalar_select %p207, %s20, 0
      %s209 = sadd.s32 %s208, %s206
      %s210 = smul.addr %s209, 4
      %s211 = scalar_lea.vmem %s1, %s210
      %p212 = pneg %p84
      %p213 = pneg %p81
      %p214 = scmp.lt.s32.totalorder %s20, 0
      %s215 = scalar_select %p214, %s20, 0
      %s216 = scalar_lea.vmem %s2, %s215
      %p217 = pneg %p110
      %p218 = pneg %p107
      %p219 = pneg %p138
      %p220 = pneg %p135
      %s221 = smul.u32 32, %s19
      %p222 = scmp.lt.s32.totalorder %s221, 63
      %s223 = scalar_select %p222, %s221, 63
      %p224 = scmp.lt.s32.totalorder %s20, 0
      %s225 = scalar_select %p224, %s20, 0
      %s226 = sadd.s32 %s225, %s223
      %s227 = smul.addr %s226, 8
      %s228 = scalar_lea.vmem %s3, %s227
      %s229 = smul.u32 32, %s19
      %p230 = scmp.lt.s32.totalorder %s229, 63
      %s231 = scalar_select %p230, %s229, 63
      %p232 = scmp.lt.s32.totalorder %s21, 0
      %s233 = scalar_select %p232, %s21, 0
      %s234 = sadd.s32 %s233, %s231
      %s235 = smul.addr %s234, 4
      %s236 = scalar_lea.vmem %s0, %s235
      %s237 = smul.u32 32, %s19
      %s238 = smul.u32 2, %s21
      %p239 = scmp.lt.s32.totalorder %s238, 1
      %s240 = scalar_select %p239, %s238, 1
      %p241 = scmp.lt.s32.totalorder %s20, 0
      %s242 = scalar_select %p241, %s20, 0
      %s243 = sadd.s32 %s242, %s240
      %s244 = smul.addr %s243, 4
      %s245 = scalar_lea.vmem %s1, %s244
      %s246 = smul.u32 2, %s21
      %p247 = scmp.lt.s32.totalorder %s20, 0
      %s248 = scalar_select %p247, %s20, 0
      %s249 = scalar_lea.vmem %s2, %s248
      %s250 = smul.u32 32, %s19
      %p251 = scmp.lt.s32.totalorder %s250, 63
      %s252 = scalar_select %p251, %s250, 63
      %p253 = scmp.lt.s32.totalorder %s20, 0
      %s254 = scalar_select %p253, %s20, 0
      %s255 = sadd.s32 %s254, %s252
      %s256 = smul.addr %s255, 8
      %s257 = scalar_lea.vmem %s3, %s256
      %s258 = smul.u32 32, %s19
      %p260 = scmp.eq.s32.totalorder %s21, 0
      // Predicated region
      $region33: #{discrete_vae_forward.25} parent=31 // pred_check
        %p261 = pneg %p260
      $region34: #{discrete_vae_forward.25} parent=31 // pred_check_branch
        %263 = sbr.rel (%p261) target = $region36
      $region35: #{discrete_vae_forward.25} parent=31 // pred_region
        %264 = vst [vmem:[#allocation2] sm:$0xff] 0.0
        %265 = vst [vmem:[#allocation2 + $0x8] sm:$0xff] 0.0
        %266 = vst [vmem:[#allocation2 + $0x10] sm:$0xff] 0.0
        %267 = vst [vmem:[#allocation2 + $0x18] sm:$0xff] 0.0
        %268 = vst [vmem:[#allocation2 + $0x20] sm:$0xff] 0.0
        %269 = vst [vmem:[#allocation2 + $0x28] sm:$0xff] 0.0
        %270 = vst [vmem:[#allocation2 + $0x30] sm:$0xff] 0.0
        %271 = vst [vmem:[#allocation2 + $0x38] sm:$0xff] 0.0
        %272 = vst [vmem:[#allocation2 + $0x40] sm:$0xff] 0.0
        %273 = vst [vmem:[#allocation2 + $0x48] sm:$0xff] 0.0
        %274 = vst [vmem:[#allocation2 + $0x50] sm:$0xff] 0.0
        %275 = vst [vmem:[#allocation2 + $0x58] sm:$0xff] 0.0
        %276 = vst [vmem:[#allocation2 + $0x60] sm:$0xff] 0.0
        %277 = vst [vmem:[#allocation2 + $0x68] sm:$0xff] 0.0
        %278 = vst [vmem:[#allocation2 + $0x70] sm:$0xff] 0.0
        %279 = vst [vmem:[#allocation2 + $0x78] sm:$0xff] 0.0
        %280 = vst [vmem:[#allocation2 + $0x80] sm:$0xff] 0.0
        %281 = vst [vmem:[#allocation2 + $0x88] sm:$0xff] 0.0
        %282 = vst [vmem:[#allocation2 + $0x90] sm:$0xff] 0.0
        %283 = vst [vmem:[#allocation2 + $0x98] sm:$0xff] 0.0
        %284 = vst [vmem:[#allocation2 + $0xa0] sm:$0xff] 0.0
        %285 = vst [vmem:[#allocation2 + $0xa8] sm:$0xff] 0.0
        %286 = vst [vmem:[#allocation2 + $0xb0] sm:$0xff] 0.0
        %287 = vst [vmem:[#allocation2 + $0xb8] sm:$0xff] 0.0
        %288 = vst [vmem:[#allocation2 + $0xc0] sm:$0xff] 0.0
        %289 = vst [vmem:[#allocation2 + $0xc8] sm:$0xff] 0.0
        %290 = vst [vmem:[#allocation2 + $0xd0] sm:$0xff] 0.0
        %291 = vst [vmem:[#allocation2 + $0xd8] sm:$0xff] 0.0
        %292 = vst [vmem:[#allocation2 + $0xe0] sm:$0xff] 0.0
        %293 = vst [vmem:[#allocation2 + $0xe8] sm:$0xff] 0.0
        %294 = vst [vmem:[#allocation2 + $0xf0] sm:$0xff] 0.0
        %295 = vst [vmem:[#allocation2 + $0xf8] sm:$0xff] 0.0
      $region36: #{discrete_vae_forward.25} parent=31 // pred_fallthru
        _
      %v296 = vld [vmem:[#allocation2] sm:$0xff]
      %v297 = vld [vmem:[#allocation2 + $0x8] sm:$0xff]
      %v298 = vld [vmem:[#allocation2 + $0x10] sm:$0xff]
      %v299 = vld [vmem:[#allocation2 + $0x18] sm:$0xff]
      %v300 = vld [vmem:[#allocation2 + $0x20] sm:$0xff]
      %v301 = vld [vmem:[#allocation2 + $0x28] sm:$0xff]
      %v302 = vld [vmem:[#allocation2 + $0x30] sm:$0xff]
      %v303 = vld [vmem:[#allocation2 + $0x38] sm:$0xff]
      %v304 = vld [vmem:[#allocation2 + $0x40] sm:$0xff]
      %v305 = vld [vmem:[#allocation2 + $0x48] sm:$0xff]
      %v306 = vld [vmem:[#allocation2 + $0x50] sm:$0xff]
      %v307 = vld [vmem:[#allocation2 + $0x58] sm:$0xff]
      %v308 = vld [vmem:[#allocation2 + $0x60] sm:$0xff]
      %v309 = vld [vmem:[#allocation2 + $0x68] sm:$0xff]
      %v310 = vld [vmem:[#allocation2 + $0x70] sm:$0xff]
      %v311 = vld [vmem:[#allocation2 + $0x78] sm:$0xff]
      %v312 = vld [vmem:[#allocation2 + $0x80] sm:$0xff]
      %v313 = vld [vmem:[#allocation2 + $0x88] sm:$0xff]
      %v314 = vld [vmem:[#allocation2 + $0x90] sm:$0xff]
      %v315 = vld [vmem:[#allocation2 + $0x98] sm:$0xff]
      %v316 = vld [vmem:[#allocation2 + $0xa0] sm:$0xff]
      %v317 = vld [vmem:[#allocation2 + $0xa8] sm:$0xff]
      %v318 = vld [vmem:[#allocation2 + $0xb0] sm:$0xff]
      %v319 = vld [vmem:[#allocation2 + $0xb8] sm:$0xff]
      %v320 = vld [vmem:[#allocation2 + $0xc0] sm:$0xff]
      %v321 = vld [vmem:[#allocation2 + $0xc8] sm:$0xff]
      %v322 = vld [vmem:[#allocation2 + $0xd0] sm:$0xff]
      %v323 = vld [vmem:[#allocation2 + $0xd8] sm:$0xff]
      %v324 = vld [vmem:[#allocation2 + $0xe0] sm:$0xff]
      %v325 = vld [vmem:[#allocation2 + $0xe8] sm:$0xff]
      %v326 = vld [vmem:[#allocation2 + $0xf0] sm:$0xff]
      %v327 = vld [vmem:[#allocation2 + $0xf8] sm:$0xff]
      %v328 = vld [vmem:[%s236] sm:$0xf]
      %v329 = vld [vmem:[%s236 + $0x4] sm:$0xf]
      %v330 = vld [vmem:[%s236 + $0x8] sm:$0xf]
      %v331 = vld [vmem:[%s236 + $0xc] sm:$0xf]
      %v332 = vld [vmem:[%s236 + $0x10] sm:$0xf]
      %v333 = vld [vmem:[%s236 + $0x14] sm:$0xf]
      %v334 = vld [vmem:[%s236 + $0x18] sm:$0xf]
      %v335 = vld [vmem:[%s236 + $0x1c] sm:$0xf]
      %v336 = vld [vmem:[%s236 + $0x20] sm:$0xf]
      %v337 = vld [vmem:[%s236 + $0x24] sm:$0xf]
      %v338 = vld [vmem:[%s236 + $0x28] sm:$0xf]
      %v339 = vld [vmem:[%s236 + $0x2c] sm:$0xf]
      %v340 = vld [vmem:[%s236 + $0x30] sm:$0xf]
      %v341 = vld [vmem:[%s236 + $0x34] sm:$0xf]
      %v342 = vld [vmem:[%s236 + $0x38] sm:$0xf]
      %v343 = vld [vmem:[%s236 + $0x3c] sm:$0xf]
      %v344 = vld [vmem:[%s236 + $0x40] sm:$0xf]
      %v345 = vld [vmem:[%s236 + $0x44] sm:$0xf]
      %v346 = vld [vmem:[%s236 + $0x48] sm:$0xf]
      %v347 = vld [vmem:[%s236 + $0x4c] sm:$0xf]
      %v348 = vld [vmem:[%s236 + $0x50] sm:$0xf]
      %v349 = vld [vmem:[%s236 + $0x54] sm:$0xf]
      %v350 = vld [vmem:[%s236 + $0x58] sm:$0xf]
      %v351 = vld [vmem:[%s236 + $0x5c] sm:$0xf]
      %v352 = vld [vmem:[%s236 + $0x60] sm:$0xf]
      %v353 = vld [vmem:[%s236 + $0x64] sm:$0xf]
      %v354 = vld [vmem:[%s236 + $0x68] sm:$0xf]
      %v355 = vld [vmem:[%s236 + $0x6c] sm:$0xf]
      %v356 = vld [vmem:[%s236 + $0x70] sm:$0xf]
      %v357 = vld [vmem:[%s236 + $0x74] sm:$0xf]
      %v358 = vld [vmem:[%s236 + $0x78] sm:$0xf]
      %v359 = vld [vmem:[%s236 + $0x7c] sm:$0xf]
      %v360 = vld [vmem:[%s245] sm:$0xf]
      %v361 = vld [vmem:[%s245 + $0x4] sm:$0xf]
      %v394 = vunpack.c.l.b16 %v328
      %v395 = vunpack.c.l.b16 %v329
      %v396 = vunpack.c.l.b16 %v330
      %v397 = vunpack.c.l.b16 %v331
      %v398 = vunpack.c.l.b16 %v332
      %v399 = vunpack.c.l.b16 %v333
      %v400 = vunpack.c.l.b16 %v334
      %v401 = vunpack.c.l.b16 %v335
      %v402 = vunpack.c.l.b16 %v336
      %v403 = vunpack.c.l.b16 %v337
      %v404 = vunpack.c.l.b16 %v338
      %v405 = vunpack.c.l.b16 %v339
      %v406 = vunpack.c.l.b16 %v340
      %v407 = vunpack.c.l.b16 %v341
      %v408 = vunpack.c.l.b16 %v342
      %v409 = vunpack.c.l.b16 %v343
      %v410 = vunpack.c.l.b16 %v344
      %v411 = vunpack.c.l.b16 %v345
      %v412 = vunpack.c.l.b16 %v346
      %v413 = vunpack.c.l.b16 %v347
      %v414 = vunpack.c.l.b16 %v348
      %v415 = vunpack.c.l.b16 %v349
      %v416 = vunpack.c.l.b16 %v350
      %v417 = vunpack.c.l.b16 %v351
      %v418 = vunpack.c.l.b16 %v352
      %v419 = vunpack.c.l.b16 %v353
      %v420 = vunpack.c.l.b16 %v354
      %v421 = vunpack.c.l.b16 %v355
      %v422 = vunpack.c.l.b16 %v356
      %v423 = vunpack.c.l.b16 %v357
      %v424 = vunpack.c.l.b16 %v358
      %v425 = vunpack.c.l.b16 %v359
      %v426 = vpack.c.b16 %v395, %v394
      %v427 = vpack.c.b16 %v397, %v396
      %v428 = vpack.c.b16 %v399, %v398
      %v429 = vpack.c.b16 %v401, %v400
      %v430 = vpack.c.b16 %v403, %v402
      %v431 = vpack.c.b16 %v405, %v404
      %v432 = vpack.c.b16 %v407, %v406
      %v433 = vpack.c.b16 %v409, %v408
      %v434 = vpack.c.b16 %v411, %v410
      %v435 = vpack.c.b16 %v413, %v412
      %v436 = vpack.c.b16 %v415, %v414
      %v437 = vpack.c.b16 %v417, %v416
      %v438 = vpack.c.b16 %v419, %v418
      %v439 = vpack.c.b16 %v421, %v420
      %v440 = vpack.c.b16 %v423, %v422
      %v441 = vpack.c.b16 %v425, %v424
      %v444 = vunpack.c.l.b16 %v360
      %v445 = vunpack.c.l.b16 %v361
      %v446 = vpack.c.b16 %v445, %v444
      %vm448 = vcmask 130048
      %v450 = vsel %vm448, %v426, 0
      %v453 = vsel %vm448, %v427, 0
      %v456 = vsel %vm448, %v428, 0
      %v459 = vsel %vm448, %v429, 0
      %v462 = vsel %vm448, %v430, 0
      %v465 = vsel %vm448, %v431, 0
      %v468 = vsel %vm448, %v432, 0
      %v471 = vsel %vm448, %v433, 0
      %v474 = vsel %vm448, %v434, 0
      %v477 = vsel %vm448, %v435, 0
      %v480 = vsel %vm448, %v436, 0
      %v483 = vsel %vm448, %v437, 0
      %v486 = vsel %vm448, %v438, 0
      %v489 = vsel %vm448, %v439, 0
      %v492 = vsel %vm448, %v440, 0
      %v495 = vsel %vm448, %v441, 0
      %497 = vmatpush.bf16.msra.mxu0 0
      %498 = vmatpush.bf16.msra.mxu0 0
      %499 = vmatpush.bf16.msra.mxu0 0
      %500 = vmatpush.bf16.msra.mxu0 0
      %501 = vmatpush.bf16.msra.mxu0 0
      %502 = vmatpush.bf16.msra.mxu0 0
      %503 = vmatpush.bf16.msra.mxu0 0
      %504 = vmatpush.bf16.msra.mxu0 %v446
      %505 = vmatmul.bf16.gmra.mxu0 %v450
      %v506 = vpop.f32.mrf.mxu0
      %v507 = vadd.f32 0.0, %v506
      %v508 = vpop.f32.mrf.mxu0
      %v509 = vadd.f32 0.0, %v508
      %510 = vmatmul.bf16.gmra.mxu0 %v453
      %v511 = vpop.f32.mrf.mxu0
      %v512 = vadd.f32 0.0, %v511
      %v513 = vpop.f32.mrf.mxu0
      %v514 = vadd.f32 0.0, %v513
      %515 = vmatmul.bf16.gmra.mxu0 %v456
      %v516 = vpop.f32.mrf.mxu0
      %v517 = vadd.f32 0.0, %v516
      %v518 = vpop.f32.mrf.mxu0
      %v519 = vadd.f32 0.0, %v518
      %520 = vmatmul.bf16.gmra.mxu0 %v459
      %v521 = vpop.f32.mrf.mxu0
      %v522 = vadd.f32 0.0, %v521
      %v523 = vpop.f32.mrf.mxu0
      %v524 = vadd.f32 0.0, %v523
      %525 = vmatmul.bf16.gmra.mxu0 %v462
      %v526 = vpop.f32.mrf.mxu0
      %v527 = vadd.f32 0.0, %v526
      %v528 = vpop.f32.mrf.mxu0
      %v529 = vadd.f32 0.0, %v528
      %530 = vmatmul.bf16.gmra.mxu0 %v465
      %v531 = vpop.f32.mrf.mxu0
      %v532 = vadd.f32 0.0, %v531
      %v533 = vpop.f32.mrf.mxu0
      %v534 = vadd.f32 0.0, %v533
      %535 = vmatmul.bf16.gmra.mxu0 %v468
      %v536 = vpop.f32.mrf.mxu0
      %v537 = vadd.f32 0.0, %v536
      %v538 = vpop.f32.mrf.mxu0
      %v539 = vadd.f32 0.0, %v538
      %540 = vmatmul.bf16.gmra.mxu0 %v471
      %v541 = vpop.f32.mrf.mxu0
      %v542 = vadd.f32 0.0, %v541
      %v543 = vpop.f32.mrf.mxu0
      %v544 = vadd.f32 0.0, %v543
      %545 = vmatmul.bf16.gmra.mxu0 %v474
      %v546 = vpop.f32.mrf.mxu0
      %v547 = vadd.f32 0.0, %v546
      %v548 = vpop.f32.mrf.mxu0
      %v549 = vadd.f32 0.0, %v548
      %550 = vmatmul.bf16.gmra.mxu0 %v477
      %v551 = vpop.f32.mrf.mxu0
      %v552 = vadd.f32 0.0, %v551
      %v553 = vpop.f32.mrf.mxu0
      %v554 = vadd.f32 0.0, %v553
      %555 = vmatmul.bf16.gmra.mxu0 %v480
      %v556 = vpop.f32.mrf.mxu0
      %v557 = vadd.f32 0.0, %v556
      %v558 = vpop.f32.mrf.mxu0
      %v559 = vadd.f32 0.0, %v558
      %560 = vmatmul.bf16.gmra.mxu0 %v483
      %v561 = vpop.f32.mrf.mxu0
      %v562 = vadd.f32 0.0, %v561
      %v563 = vpop.f32.mrf.mxu0
      %v564 = vadd.f32 0.0, %v563
      %565 = vmatmul.bf16.gmra.mxu0 %v486
      %v566 = vpop.f32.mrf.mxu0
      %v567 = vadd.f32 0.0, %v566
      %v568 = vpop.f32.mrf.mxu0
      %v569 = vadd.f32 0.0, %v568
      %570 = vmatmul.bf16.gmra.mxu0 %v489
      %v571 = vpop.f32.mrf.mxu0
      %v572 = vadd.f32 0.0, %v571
      %v573 = vpop.f32.mrf.mxu0
      %v574 = vadd.f32 0.0, %v573
      %575 = vmatmul.bf16.gmra.mxu0 %v492
      %v576 = vpop.f32.mrf.mxu0
      %v577 = vadd.f32 0.0, %v576
      %v578 = vpop.f32.mrf.mxu0
      %v579 = vadd.f32 0.0, %v578
      %580 = vmatmul.bf16.gmra.mxu0 %v495
      %v581 = vpop.f32.mrf.mxu0
      %v582 = vadd.f32 0.0, %v581
      %v583 = vpop.f32.mrf.mxu0
      %v584 = vadd.f32 0.0, %v583
      %585 = vdwg.mxu0
      %v586 = vadd.f32 %v296, %v507
      %v587 = vadd.f32 %v297, %v509
      %v588 = vadd.f32 %v298, %v512
      %v589 = vadd.f32 %v299, %v514
      %v590 = vadd.f32 %v300, %v517
      %v591 = vadd.f32 %v301, %v519
      %v592 = vadd.f32 %v302, %v522
      %v593 = vadd.f32 %v303, %v524
      %v594 = vadd.f32 %v304, %v527
      %v595 = vadd.f32 %v305, %v529
      %v596 = vadd.f32 %v306, %v532
      %v597 = vadd.f32 %v307, %v534
      %v598 = vadd.f32 %v308, %v537
      %v599 = vadd.f32 %v309, %v539
      %v600 = vadd.f32 %v310, %v542
      %v601 = vadd.f32 %v311, %v544
      %v602 = vadd.f32 %v312, %v547
      %v603 = vadd.f32 %v313, %v549
      %v604 = vadd.f32 %v314, %v552
      %v605 = vadd.f32 %v315, %v554
      %v606 = vadd.f32 %v316, %v557
      %v607 = vadd.f32 %v317, %v559
      %v608 = vadd.f32 %v318, %v562
      %v609 = vadd.f32 %v319, %v564
      %v610 = vadd.f32 %v320, %v567
      %v611 = vadd.f32 %v321, %v569
      %v612 = vadd.f32 %v322, %v572
      %v613 = vadd.f32 %v323, %v574
      %v614 = vadd.f32 %v324, %v577
      %v615 = vadd.f32 %v325, %v579
      %v616 = vadd.f32 %v326, %v582
      %v617 = vadd.f32 %v327, %v584
      %618 = vst [vmem:[#allocation2] sm:$0xff] %v586
      %619 = vst [vmem:[#allocation2 + $0x8] sm:$0xff] %v587
      %620 = vst [vmem:[#allocation2 + $0x10] sm:$0xff] %v588
      %621 = vst [vmem:[#allocation2 + $0x18] sm:$0xff] %v589
      %622 = vst [vmem:[#allocation2 + $0x20] sm:$0xff] %v590
      %623 = vst [vmem:[#allocation2 + $0x28] sm:$0xff] %v591
      %624 = vst [vmem:[#allocation2 + $0x30] sm:$0xff] %v592
      %625 = vst [vmem:[#allocation2 + $0x38] sm:$0xff] %v593
      %626 = vst [vmem:[#allocation2 + $0x40] sm:$0xff] %v594
      %627 = vst [vmem:[#allocation2 + $0x48] sm:$0xff] %v595
      %628 = vst [vmem:[#allocation2 + $0x50] sm:$0xff] %v596
      %629 = vst [vmem:[#allocation2 + $0x58] sm:$0xff] %v597
      %630 = vst [vmem:[#allocation2 + $0x60] sm:$0xff] %v598
      %631 = vst [vmem:[#allocation2 + $0x68] sm:$0xff] %v599
      %632 = vst [vmem:[#allocation2 + $0x70] sm:$0xff] %v600
      %633 = vst [vmem:[#allocation2 + $0x78] sm:$0xff] %v601
      %634 = vst [vmem:[#allocation2 + $0x80] sm:$0xff] %v602
      %635 = vst [vmem:[#allocation2 + $0x88] sm:$0xff] %v603
      %636 = vst [vmem:[#allocation2 + $0x90] sm:$0xff] %v604
      %637 = vst [vmem:[#allocation2 + $0x98] sm:$0xff] %v605
      %638 = vst [vmem:[#allocation2 + $0xa0] sm:$0xff] %v606
      %639 = vst [vmem:[#allocation2 + $0xa8] sm:$0xff] %v607
      %640 = vst [vmem:[#allocation2 + $0xb0] sm:$0xff] %v608
      %641 = vst [vmem:[#allocation2 + $0xb8] sm:$0xff] %v609
      %642 = vst [vmem:[#allocation2 + $0xc0] sm:$0xff] %v610
      %643 = vst [vmem:[#allocation2 + $0xc8] sm:$0xff] %v611
      %644 = vst [vmem:[#allocation2 + $0xd0] sm:$0xff] %v612
      %645 = vst [vmem:[#allocation2 + $0xd8] sm:$0xff] %v613
      %646 = vst [vmem:[#allocation2 + $0xe0] sm:$0xff] %v614
      %647 = vst [vmem:[#allocation2 + $0xe8] sm:$0xff] %v615
      %648 = vst [vmem:[#allocation2 + $0xf0] sm:$0xff] %v616
      %649 = vst [vmem:[#allocation2 + $0xf8] sm:$0xff] %v617
      // Predicated region
      $region37: #{discrete_vae_forward.25} parent=31 // pred_check
        %p650 = pneg %p260
      $region38: #{discrete_vae_forward.25} parent=31 // pred_check_branch
        %652 = sbr.rel (%p650) target = $region40
      $region39: #{discrete_vae_forward.25} parent=31 // pred_region
        %v653 = vld [vmem:[#allocation2] sm:$0xff]
        %v654 = vld [vmem:[#allocation2 + $0x8] sm:$0xff]
        %v655 = vld [vmem:[#allocation2 + $0x10] sm:$0xff]
        %v656 = vld [vmem:[#allocation2 + $0x18] sm:$0xff]
        %v657 = vld [vmem:[#allocation2 + $0x20] sm:$0xff]
        %v658 = vld [vmem:[#allocation2 + $0x28] sm:$0xff]
        %v659 = vld [vmem:[#allocation2 + $0x30] sm:$0xff]
        %v660 = vld [vmem:[#allocation2 + $0x38] sm:$0xff]
        %v661 = vld [vmem:[#allocation2 + $0x40] sm:$0xff]
        %v662 = vld [vmem:[#allocation2 + $0x48] sm:$0xff]
        %v663 = vld [vmem:[#allocation2 + $0x50] sm:$0xff]
        %v664 = vld [vmem:[#allocation2 + $0x58] sm:$0xff]
        %v665 = vld [vmem:[#allocation2 + $0x60] sm:$0xff]
        %v666 = vld [vmem:[#allocation2 + $0x68] sm:$0xff]
        %v667 = vld [vmem:[#allocation2 + $0x70] sm:$0xff]
        %v668 = vld [vmem:[#allocation2 + $0x78] sm:$0xff]
        %v669 = vld [vmem:[#allocation2 + $0x80] sm:$0xff]
        %v670 = vld [vmem:[#allocation2 + $0x88] sm:$0xff]
        %v671 = vld [vmem:[#allocation2 + $0x90] sm:$0xff]
        %v672 = vld [vmem:[#allocation2 + $0x98] sm:$0xff]
        %v673 = vld [vmem:[#allocation2 + $0xa0] sm:$0xff]
        %v674 = vld [vmem:[#allocation2 + $0xa8] sm:$0xff]
        %v675 = vld [vmem:[#allocation2 + $0xb0] sm:$0xff]
        %v676 = vld [vmem:[#allocation2 + $0xb8] sm:$0xff]
        %v677 = vld [vmem:[#allocation2 + $0xc0] sm:$0xff]
        %v678 = vld [vmem:[#allocation2 + $0xc8] sm:$0xff]
        %v679 = vld [vmem:[#allocation2 + $0xd0] sm:$0xff]
        %v680 = vld [vmem:[#allocation2 + $0xd8] sm:$0xff]
        %v681 = vld [vmem:[#allocation2 + $0xe0] sm:$0xff]
        %v682 = vld [vmem:[#allocation2 + $0xe8] sm:$0xff]
        %v683 = vld [vmem:[#allocation2 + $0xf0] sm:$0xff]
        %v684 = vld [vmem:[#allocation2 + $0xf8] sm:$0xff]
        %v685 = vld [vmem:[%s249] sm:$0x1]
        %v687 = vperm.slane %v685, 0
        %v689 = vadd.f32 %v653, %v687
        %v690 = vadd.f32 %v654, %v687
        %v691 = vadd.f32 %v655, %v687
        %v692 = vadd.f32 %v656, %v687
        %v693 = vadd.f32 %v657, %v687
        %v694 = vadd.f32 %v658, %v687
        %v695 = vadd.f32 %v659, %v687
        %v696 = vadd.f32 %v660, %v687
        %v697 = vadd.f32 %v661, %v687
        %v698 = vadd.f32 %v662, %v687
        %v699 = vadd.f32 %v663, %v687
        %v700 = vadd.f32 %v664, %v687
        %v701 = vadd.f32 %v665, %v687
        %v702 = vadd.f32 %v666, %v687
        %v703 = vadd.f32 %v667, %v687
        %v704 = vadd.f32 %v668, %v687
        %v705 = vadd.f32 %v669, %v687
        %v706 = vadd.f32 %v670, %v687
        %v707 = vadd.f32 %v671, %v687
        %v708 = vadd.f32 %v672, %v687
        %v709 = vadd.f32 %v673, %v687
        %v710 = vadd.f32 %v674, %v687
        %v711 = vadd.f32 %v675, %v687
        %v712 = vadd.f32 %v676, %v687
        %v713 = vadd.f32 %v677, %v687
        %v714 = vadd.f32 %v678, %v687
        %v715 = vadd.f32 %v679, %v687
        %v716 = vadd.f32 %v680, %v687
        %v717 = vadd.f32 %v681, %v687
        %v718 = vadd.f32 %v682, %v687
        %v719 = vadd.f32 %v683, %v687
        %v720 = vadd.f32 %v684, %v687
        %721 = vst [vmem:[%s257] sm:$0xff] %v689
        %722 = vst [vmem:[%s257 + $0x8] sm:$0xff] %v690
        %723 = vst [vmem:[%s257 + $0x10] sm:$0xff] %v691
        %724 = vst [vmem:[%s257 + $0x18] sm:$0xff] %v692
        %725 = vst [vmem:[%s257 + $0x20] sm:$0xff] %v693
        %726 = vst [vmem:[%s257 + $0x28] sm:$0xff] %v694
        %727 = vst [vmem:[%s257 + $0x30] sm:$0xff] %v695
        %728 = vst [vmem:[%s257 + $0x38] sm:$0xff] %v696
        %729 = vst [vmem:[%s257 + $0x40] sm:$0xff] %v697
        %730 = vst [vmem:[%s257 + $0x48] sm:$0xff] %v698
        %731 = vst [vmem:[%s257 + $0x50] sm:$0xff] %v699
        %732 = vst [vmem:[%s257 + $0x58] sm:$0xff] %v700
        %733 = vst [vmem:[%s257 + $0x60] sm:$0xff] %v701
        %734 = vst [vmem:[%s257 + $0x68] sm:$0xff] %v702
        %735 = vst [vmem:[%s257 + $0x70] sm:$0xff] %v703
        %736 = vst [vmem:[%s257 + $0x78] sm:$0xff] %v704
        %737 = vst [vmem:[%s257 + $0x80] sm:$0xff] %v705
        %738 = vst [vmem:[%s257 + $0x88] sm:$0xff] %v706
        %739 = vst [vmem:[%s257 + $0x90] sm:$0xff] %v707
        %740 = vst [vmem:[%s257 + $0x98] sm:$0xff] %v708
        %741 = vst [vmem:[%s257 + $0xa0] sm:$0xff] %v709
        %742 = vst [vmem:[%s257 + $0xa8] sm:$0xff] %v710
        %743 = vst [vmem:[%s257 + $0xb0] sm:$0xff] %v711
        %744 = vst [vmem:[%s257 + $0xb8] sm:$0xff] %v712
        %745 = vst [vmem:[%s257 + $0xc0] sm:$0xff] %v713
        %746 = vst [vmem:[%s257 + $0xc8] sm:$0xff] %v714
        %747 = vst [vmem:[%s257 + $0xd0] sm:$0xff] %v715
        %748 = vst [vmem:[%s257 + $0xd8] sm:$0xff] %v716
        %749 = vst [vmem:[%s257 + $0xe0] sm:$0xff] %v717
        %750 = vst [vmem:[%s257 + $0xe8] sm:$0xff] %v718
        %751 = vst [vmem:[%s257 + $0xf0] sm:$0xff] %v719
        %752 = vst [vmem:[%s257 + $0xf8] sm:$0xff] %v720
      $region40: #{discrete_vae_forward.25} parent=31 // pred_fallthru
        _
      %s753 = smul.u32 32, %s19
      %p754 = scmp.lt.s32.totalorder %s753, 63
      %s755 = scalar_select %p754, %s753, 63
      %p756 = scmp.lt.s32.totalorder %s20, 0
      %s757 = scalar_select %p756, %s20, 0
      %s758 = sadd.s32 %s757, %s755
      %s759 = smul.addr %s758, 8
      %s760 = scalar_lea.vmem %s3, %s759
      // Predicated region
      $region41: #{discrete_vae_forward.25} parent=31 // pred_check
        %p761 = pneg %p135
      $region42: #{discrete_vae_forward.25} parent=31 // pred_check_branch
        %763 = sbr.rel (%p761) target = $region44
      $region43: #{discrete_vae_forward.25} parent=31 // pred_region
        %s764 = smul.u32 32, %s19
      $region44: #{discrete_vae_forward.25} parent=31 // pred_fallthru
        _
    $region32: #{discrete_vae_forward.25} parent=5 // pred_fallthru
      _
    %p765 = scmp.le.s32.totalorder 2, %s9
    // Predicated region
    $region45: #{discrete_vae_forward.25} parent=5 // pred_check
      %p766 = pneg %p765
    $region46: #{discrete_vae_forward.25} parent=5 // pred_check_branch
      %768 = sbr.rel (%p766) target = $region48
    $region47: #{discrete_vae_forward.25} parent=5 // pred_region
      %s769 = ssub.s32 %s9, 2
      // Predicated region
      $region49: #{discrete_vae_forward.25} parent=47 // pred_check
        %p770 = pneg %p141
      $region50: #{discrete_vae_forward.25} parent=47 // pred_check_branch
        %772 = sbr.rel (%p770) target = $region52
      $region51: #{discrete_vae_forward.25} parent=47 // pred_region
        %s773 = smul.u32 32, %s22
        %p774 = scmp.lt.s32.totalorder %s773, 63
        %s775 = scalar_select %p774, %s773, 63
        %p776 = scmp.lt.s32.totalorder %s23, 0
        %s777 = scalar_select %p776, %s23, 0
        %s778 = sadd.s32 %s777, %s775
        %s779 = smul.addr %s778, 8
        %s780 = scalar_lea.vmem %s3, %s779
      $region52: #{discrete_vae_forward.25} parent=47 // pred_fallthru
        _
    $region48: #{discrete_vae_forward.25} parent=5 // pred_fallthru
      _
  $region6: #{discrete_vae_forward.25} parent=0 // loop_footer
    %s13 = sadd.s32 1, %s9
  $region7: #{discrete_vae_forward.25} parent=0 // loop_footer_branch
    %8 = sbr.rel target = $region3
  $region8: #{discrete_vae_forward.25} parent=0 // loop_exit
    _

</llo_original>
